<compile_context>
chip_gen: v7x
topology: tpu7x:2x2x1
jax: 0.10.0
libtpu: 0.0.40
codegen_flags: <defaults>
</compile_context>

<pallas_src>
import functools

import jax
import jax.numpy as jnp
import numpy as np
from jax.experimental import pallas as pl
from jax.experimental.pallas import tpu as pltpu


def _vmem_capacity_bytes():
    """Generation-aware VMEM capacity (128 MiB v5e/v6e, 64 MiB per-TC v7x)."""
    try:
        cap = int(pltpu.get_tpu_info().vmem_capacity_bytes)
        if cap > 0:
            return cap
    except Exception:
        pass
    return 64 << 20  # conservative fallback (v7x per-TensorCore VMEM)


# ---------------------------------------------------------------------------
# Pallas kernel: window attention for a batch of WB windows (one grid step)
# ---------------------------------------------------------------------------
def _window_attn_kernel(x_ref, wqkv_ref, bqkv_ref, bias_ref, wproj_ref,
                        bproj_ref, *refs, num_heads, head_dim, wb, n_tok,
                        channels, has_dw, compute_dtype):
    if has_dw:
        dw_ref, o_ref = refs
    else:
        dw_ref = None
        (o_ref,) = refs

    m = wb * n_tok

    # ---- fused qkv projection over the whole window batch: (M, C) @ (C, 3C).
    # x is cast in-kernel (the wrapper passes it at its source dtype); the q
    # scale is already folded into wqkv / bqkv.
    # TODO(synk): for windows with N not a multiple of 8 (e.g. 7x7 -> N=49),
    # pad N upstream instead of relying on this (WB, N, C) -> (M, C) reshape.
    x2d = x_ref[...].reshape(m, channels).astype(compute_dtype)
    qkv = jnp.dot(x2d, wqkv_ref[...],
                  preferred_element_type=jnp.float32) + bqkv_ref[...]  # (M,3C) f32
    qkv_c = qkv.astype(compute_dtype)        # single full-width cast (hoisted)

    # ---- lane-dense f32 accumulator for the projected output.  The dw
    # residual is folded in via linearity: (attn_out + dw) @ Wp
    #                                      == attn_out @ Wp + dw @ Wp.
    if has_dw:
        dw2d = dw_ref[...].reshape(m, channels).astype(compute_dtype)
        acc = jnp.dot(dw2d, wproj_ref[...], preferred_element_type=jnp.float32)
    else:
        acc = jnp.zeros((m, channels), jnp.float32)

    # ---- per-head attention (static unroll), batched over the WB windows.
    for h in range(num_heads):
        lo = h * head_dim
        q3 = qkv_c[:, lo:lo + head_dim].reshape(wb, n_tok, head_dim)
        k3 = qkv_c[:, channels + lo:channels + lo + head_dim].reshape(
            wb, n_tok, head_dim)
        v3 = qkv_c[:, 2 * channels + lo:2 * channels + lo + head_dim].reshape(
            wb, n_tok, head_dim)

        s = jnp.einsum("bqd,bkd->bqk", q3, k3,
                       preferred_element_type=jnp.float32)      # (WB, N, N)
        s = s + bias_ref[h][None, :, :]                         # rel-pos bias

        # softmax over keys (f32); reciprocal goes to the EUP slot.
        s = s - jnp.max(s, axis=-1, keepdims=True)
        p = jnp.exp(s)
        p = p * pl.reciprocal(jnp.sum(p, axis=-1, keepdims=True), approx=True)

        o_h = jnp.einsum("bqk,bkd->bqd", p.astype(compute_dtype), v3,
                         preferred_element_type=jnp.float32)    # (WB, N, D)

        # Fused per-head output projection: (M, D) @ (D, C).  The wproj row
        # slice is a cheap sublane slice and acc stays lane-dense, so there
        # are no masked 32-lane stores and no (M, C) scratch slab.
        acc = acc + jnp.dot(o_h.reshape(m, head_dim).astype(compute_dtype),
                            wproj_ref[lo:lo + head_dim, :],
                            preferred_element_type=jnp.float32)

    out = acc + bproj_ref[...]
    o_ref[...] = out.reshape(wb, n_tok, channels).astype(o_ref.dtype)


# ---------------------------------------------------------------------------
# Window-batch selection (generation-aware)
# ---------------------------------------------------------------------------
def _choose_window_batch(B_, N, C, num_heads, x_itemsize, dw_itemsize,
                         out_itemsize, compute_itemsize, vmem_cap):
    """Pick how many windows one grid step processes.

    Priorities (per perf review):
      * keep the grid >= 4 steps (DMA/compute pipelining + v7x 2-TC sharding);
      * prefer an even number of grid steps (v7x megacore split);
      * grow WB*N toward the MXU M-dim target (256 rows, 512 on 128-MiB parts)
        while the per-step VMEM footprint stays inside a fraction of this
        generation's VMEM capacity.
    """
    target_rows = 512 if vmem_cap >= (96 << 20) else 256
    budget = int(0.35 * vmem_cap)
    max_wb = max(1, B_ // 4)          # grid >= 4 whenever B_ >= 4

    def vmem_need(wb):
        m = wb * N
        # double-buffered streamed blocks (x, optional dw, out)
        stream = 2 * m * C * (x_itemsize + dw_itemsize + out_itemsize)
        # resident weights / biases (double-buffered by the default pipeline;
        # < 1 MiB at these sizes so single-buffering them is not worth the
        # pipeline_mode complexity here)
        weights = 2 * (4 * C * C * compute_itemsize
                       + (4 * C + num_heads * N * N) * 4)
        # live in-kernel values: qkv (f32 + compute-dtype copy), accumulator,
        # a couple of attention tiles
        live = (m * 3 * C * (4 + compute_itemsize) + m * C * 4
                + 2 * wb * N * N * 4)
        return stream + weights + live

    cands = [d for d in range(1, max_wb + 1)
             if B_ % d == 0 and vmem_need(d) <= budget]
    if not cands:
        cands = [1]

    def score(d):
        rows = d * N
        grid = B_ // d
        return (min(rows, target_rows),   # feed the MXU, but don't over-grow
                grid % 2 == 0,            # even grid -> both v7x TCs busy
                -d)                       # deeper pipeline on ties
    return max(cands, key=score)


# ---------------------------------------------------------------------------
# Wrapper
# ---------------------------------------------------------------------------
def window_attention(x, params, window_size, num_heads, dw=None, mask=None,
                     compute_dtype=jnp.float32, out_dtype=None):
    """Pallas implementation of WindowAttention.forward (mask=None path).

    compute_dtype: dtype fed to the MXU (f32 or bf16).  Accumulation, softmax
    and all elementwise math stay in f32 (v5e-safe).  out_dtype defaults to
    x.dtype (pass bf16 to halve HBM write traffic when acceptable).
    """
    # TODO(synk): additive attention `mask` path (mask reshaped over nW) is not
    # implemented; only the mask=None branch is supported.
    assert mask is None
    # attn_drop / proj_drop are identity at p=0.0 (module default) / eval time.

    B_, N, C = x.shape
    head_dim = C // num_heads
    scale = head_dim ** (-0.5)
    has_dw = dw is not None
    if out_dtype is None:
        out_dtype = x.dtype

    # Fold the q scale into the qkv weights/bias (removes a full-width VPU
    # scale pass per grid step); weights are tiny, cast them once here.
    wqkv = params["wqkv"].at[:, :C].multiply(scale).astype(compute_dtype)   # (C,3C)
    bqkv = (params["bqkv"].at[:C].multiply(scale)
            .reshape(1, 3 * C).astype(jnp.float32))
    wproj = params["wproj"].astype(compute_dtype)                           # (C,C)
    bproj = params["bproj"].reshape(1, C).astype(jnp.float32)
    bias = params["rel_pos_bias"].astype(jnp.float32)                       # (H,N,N)

    x_bytes = jnp.dtype(x.dtype).itemsize
    dw_bytes = jnp.dtype(dw.dtype).itemsize if has_dw else 0
    out_bytes = jnp.dtype(out_dtype).itemsize
    cd_bytes = jnp.dtype(compute_dtype).itemsize
    vmem_cap = _vmem_capacity_bytes()

    WB = _choose_window_batch(B_, N, C, num_heads, x_bytes, dw_bytes,
                              out_bytes, cd_bytes, vmem_cap)
    M = WB * N

    # x / dw are passed at source dtype; the cast happens in-kernel (a wrapper
    # cast would be a separate un-fused HBM read+write of the big tensors).
    inputs = [x, wqkv, bqkv, bias, wproj, bproj]
    in_specs = [
        pl.BlockSpec((WB, N, C), lambda b: (b, 0, 0)),               # x
        pl.BlockSpec((C, 3 * C), lambda b: (0, 0)),                  # wqkv (const)
        pl.BlockSpec((1, 3 * C), lambda b: (0, 0)),                  # bqkv (const)
        pl.BlockSpec((num_heads, N, N), lambda b: (0, 0, 0)),        # rel-pos bias
        pl.BlockSpec((C, C), lambda b: (0, 0)),                      # wproj (const)
        pl.BlockSpec((1, C), lambda b: (0, 0)),                      # bproj (const)
    ]
    if has_dw:
        inputs.append(dw)
        in_specs.append(pl.BlockSpec((WB, N, C), lambda b: (b, 0, 0)))

    kernel = functools.partial(
        _window_attn_kernel, num_heads=num_heads, head_dim=head_dim,
        wb=WB, n_tok=N, channels=C, has_dw=has_dw, compute_dtype=compute_dtype)

    # Advisory cost estimate for XLA scheduling.
    flops = (2 * B_ * N * C * 3 * C                       # qkv projection
             + 4 * B_ * num_heads * N * N * head_dim      # q@k^T and attn@v
             + 2 * B_ * N * C * C)                        # output projection
    if has_dw:
        flops += 2 * B_ * N * C * C                       # dw @ Wproj
    bytes_accessed = (B_ * N * C * (x_bytes + dw_bytes + out_bytes)
                      + 4 * C * C * cd_bytes
                      + (4 * C + num_heads * N * N) * 4)
    cost = pl.CostEstimate(flops=int(flops),
                           transcendentals=int(B_ * num_heads * N * (N + 1)),
                           bytes_accessed=int(bytes_accessed))

    # VMEM limit with headroom: never request more than 75% of this
    # generation's VMEM (48 MiB of 64 on v7x; 96 MiB of 128 on v5e/v6e).
    stream = 2 * M * C * (x_bytes + dw_bytes + out_bytes)
    weights = 2 * (4 * C * C * cd_bytes + (4 * C + num_heads * N * N) * 4)
    live = M * 3 * C * (4 + cd_bytes) + M * C * 4 + 2 * WB * N * N * 4
    vmem_est = stream + weights + live
    vmem_limit = int(min(max(2 * vmem_est, 32 << 20), int(0.75 * vmem_cap)))

    grid_spec = pltpu.PrefetchScalarGridSpec(
        num_scalar_prefetch=0,
        grid=(B_ // WB,),
        in_specs=in_specs,
        out_specs=pl.BlockSpec((WB, N, C), lambda b: (b, 0, 0)),
    )

    return pl.pallas_call(
        kernel,
        out_shape=jax.ShapeDtypeStruct((B_, N, C), out_dtype),
        grid_spec=grid_spec,
        compiler_params=pltpu.CompilerParams(
            dimension_semantics=("parallel",),
            vmem_limit_bytes=vmem_limit),
        cost_estimate=cost,
    )(*inputs)


# ---------------------------------------------------------------------------
# Parameter / buffer construction (deterministic, mirrors __init__)
# ---------------------------------------------------------------------------
def make_relative_position_index(window_size):
    ws0, ws1 = window_size
    coords = np.stack(np.meshgrid(np.arange(ws0), np.arange(ws1), indexing="ij"))
    coords_flatten = coords.reshape(2, -1)                              # (2, N)
    rel = coords_flatten[:, :, None] - coords_flatten[:, None, :]       # (2, N, N)
    rel = rel.transpose(1, 2, 0).copy()                                 # (N, N, 2)
    rel[:, :, 0] += ws0 - 1
    rel[:, :, 1] += ws1 - 1
    rel[:, :, 0] *= 2 * ws1 - 1
    return rel.sum(-1)                                                  # (N, N)


def init_params(key, dim, window_size, num_heads):
    ws0, ws1 = window_size
    N = ws0 * ws1
    k1, k2, k3, k4, k5 = jax.random.split(key, 5)

    # relative_position_bias_table ~ trunc_normal(std=0.02)
    table = 0.02 * jax.random.truncated_normal(
        k1, -2.0, 2.0, ((2 * ws0 - 1) * (2 * ws1 - 1), num_heads), jnp.float32)

    rel_idx = jnp.asarray(make_relative_position_index(window_size))    # (N, N)
    rel_bias = table[rel_idx.reshape(-1)].reshape(N, N, num_heads)
    rel_bias = jnp.transpose(rel_bias, (2, 0, 1))                       # (H, N, N)

    return {
        "wqkv": 0.05 * jax.random.normal(k2, (dim, 3 * dim), jnp.float32),
        "bqkv": 0.05 * jax.random.normal(k3, (3 * dim,), jnp.float32),
        "wproj": 0.05 * jax.random.normal(k4, (dim, dim), jnp.float32),
        "bproj": 0.05 * jax.random.normal(k5, (dim,), jnp.float32),
        "rel_pos_bias": rel_bias,
    }


# ---------------------------------------------------------------------------
# Pure-JAX reference (mirrors the PyTorch forward, mask=None)
# ---------------------------------------------------------------------------
def reference_forward(x, params, num_heads, dw=None):
    B_, N, C = x.shape
    D = C // num_heads
    scale = D ** (-0.5)
    qkv = x @ params["wqkv"] + params["bqkv"]                 # (B_, N, 3C)
    qkv = qkv.reshape(B_, N, 3, num_heads, D).transpose(2, 0, 3, 1, 4)
    q, k, v = qkv[0] * scale, qkv[1], qkv[2]                  # (B_, H, N, D)
    attn = q @ jnp.swapaxes(k, -2, -1)                        # (B_, H, N, N)
    attn = attn + params["rel_pos_bias"][None]
    attn = jax.nn.softmax(attn, axis=-1)
    o = (attn @ v).transpose(0, 2, 1, 3).reshape(B_, N, C)
    if dw is not None:
        o = o + dw
    return o @ params["wproj"] + params["bproj"]


if __name__ == "__main__":
    # Small shapes consistent with the module: dim=128, window 4x4 -> N=16,
    # num_heads=4 (head_dim=32), B_ (= num_windows * batch) = 8
    # -> WB=2 windows per step, grid=(4,) (>=4 steps, even for v7x).
    dim = 128
    window_size = (4, 4)
    num_heads = 4
    B_ = 8
    N = window_size[0] * window_size[1]

    key = jax.random.PRNGKey(0)
    kp, kx, kd = jax.random.split(key, 3)
    params = init_params(kp, dim, window_size, num_heads)
    x = jax.random.normal(kx, (B_, N, dim), jnp.float32)
    dw = jax.random.normal(kd, (B_, N, dim), jnp.float32)

    ref = reference_forward(x, params, num_heads, dw=dw)

    # f32 kernel with the dw residual (tolerance loosened slightly for the
    # approx=True EUP reciprocal in the softmax normalization).
    out = jax.block_until_ready(
        window_attention(x, params, window_size, num_heads, dw=dw))
    np.testing.assert_allclose(np.asarray(out), np.asarray(ref),
                               rtol=5e-3, atol=5e-3)

    # dw=None variant (kernel compiled without the dw stream)
    out_nodw = jax.block_until_ready(
        window_attention(x, params, window_size, num_heads))
    ref_nodw = reference_forward(x, params, num_heads, dw=None)
    np.testing.assert_allclose(np.asarray(out_nodw), np.asarray(ref_nodw),
                               rtol=5e-3, atol=5e-3)

    # bf16 MXU-input + bf16-output variant (f32 accumulation + f32 softmax):
    # loose check only.
    out_bf16 = jax.block_until_ready(
        window_attention(x, params, window_size, num_heads, dw=dw,
                         compute_dtype=jnp.bfloat16, out_dtype=jnp.bfloat16))
    assert float(jnp.max(jnp.abs(out_bf16.astype(jnp.float32) - ref))) < 0.1

    print("KERNEL_OK")
</pallas_src>

<mosaic_0001>
module attributes {stable_mosaic.version = 11 : i64} {
  func.func @_window_attn_kernel(%arg0: i32, %arg1: memref<2x16x128xf32, #tpu.memory_space<vmem>>, %arg2: memref<128x384xf32, #tpu.memory_space<vmem>>, %arg3: memref<1x384xf32, #tpu.memory_space<vmem>>, %arg4: memref<4x16x16xf32, #tpu.memory_space<vmem>>, %arg5: memref<128x128xf32, #tpu.memory_space<vmem>>, %arg6: memref<1x128xf32, #tpu.memory_space<vmem>>, %arg7: memref<2x16x128xf32, #tpu.memory_space<vmem>>, %arg8: memref<2x16x128xf32, #tpu.memory_space<vmem>>) attributes {dimension_semantics = [#tpu.dimension_semantics<parallel>], iteration_bounds = array<i64: 4>, scalar_prefetch = 0 : i64, scratch_operands = 0 : i64, tpu.core_type = #tpu.core_type<tc>, window_params = [{transform_indices = @transform_0, window_bounds = array<i64: 2, 16, 128>}, {pipeline_mode = #tpu.pipeline_mode<synchronous>, transform_indices = @transform_1, window_bounds = array<i64: 128, 384>}, {pipeline_mode = #tpu.pipeline_mode<synchronous>, transform_indices = @transform_2, window_bounds = array<i64: 1, 384>}, {pipeline_mode = #tpu.pipeline_mode<synchronous>, transform_indices = @transform_3, window_bounds = array<i64: 4, 16, 16>}, {pipeline_mode = #tpu.pipeline_mode<synchronous>, transform_indices = @transform_4, window_bounds = array<i64: 128, 128>}, {pipeline_mode = #tpu.pipeline_mode<synchronous>, transform_indices = @transform_5, window_bounds = array<i64: 1, 128>}, {transform_indices = @transform_6, window_bounds = array<i64: 2, 16, 128>}, {transform_indices = @transform_7, window_bounds = array<i64: 2, 16, 128>}]} {
    %c0 = arith.constant 0 : index
    %c0_0 = arith.constant 0 : index
    %c0_1 = arith.constant 0 : index
    %0 = vector.load %arg1[%c0, %c0_0, %c0_1] : memref<2x16x128xf32, #tpu.memory_space<vmem>>, vector<2x16x128xf32>
    %1 = vector.shape_cast %0 : vector<2x16x128xf32> to vector<32x128xf32>
    %c0_2 = arith.constant 0 : index
    %c0_3 = arith.constant 0 : index
    %2 = vector.load %arg2[%c0_2, %c0_3] : memref<128x384xf32, #tpu.memory_space<vmem>>, vector<128x384xf32>
    %cst = arith.constant dense<0.000000e+00> : vector<32x384xf32>
    %3 = tpu.matmul %1, %2, %cst {dimension_numbers = #tpu.dot_dimension_numbers<[1], [0], [0], [1], [0, 0, 1, 1], [], []>} : vector<32x128xf32>, vector<128x384xf32>, vector<32x384xf32> -> vector<32x384xf32>
    %c0_4 = arith.constant 0 : index
    %c0_5 = arith.constant 0 : index
    %4 = vector.load %arg3[%c0_4, %c0_5] : memref<1x384xf32, #tpu.memory_space<vmem>>, vector<1x384xf32>
    %5 = vector.broadcast %4 : vector<1x384xf32> to vector<32x384xf32>
    %6 = arith.addf %3, %5 : vector<32x384xf32>
    %c0_6 = arith.constant 0 : index
    %c0_7 = arith.constant 0 : index
    %c0_8 = arith.constant 0 : index
    %7 = vector.load %arg7[%c0_6, %c0_7, %c0_8] : memref<2x16x128xf32, #tpu.memory_space<vmem>>, vector<2x16x128xf32>
    %8 = vector.shape_cast %7 : vector<2x16x128xf32> to vector<32x128xf32>
    %c0_9 = arith.constant 0 : index
    %c0_10 = arith.constant 0 : index
    %9 = vector.load %arg5[%c0_9, %c0_10] : memref<128x128xf32, #tpu.memory_space<vmem>>, vector<128x128xf32>
    %cst_11 = arith.constant dense<0.000000e+00> : vector<32x128xf32>
    %10 = tpu.matmul %8, %9, %cst_11 {dimension_numbers = #tpu.dot_dimension_numbers<[1], [0], [0], [1], [0, 0, 1, 1], [], []>} : vector<32x128xf32>, vector<128x128xf32>, vector<32x128xf32> -> vector<32x128xf32>
    %11 = vector.extract_strided_slice %6 {offsets = [0, 0], sizes = [32, 32], strides = [1, 1]} : vector<32x384xf32> to vector<32x32xf32>
    %12 = vector.shape_cast %11 : vector<32x32xf32> to vector<2x16x32xf32>
    %13 = vector.extract_strided_slice %6 {offsets = [0, 128], sizes = [32, 32], strides = [1, 1]} : vector<32x384xf32> to vector<32x32xf32>
    %14 = vector.shape_cast %13 : vector<32x32xf32> to vector<2x16x32xf32>
    %15 = vector.extract_strided_slice %6 {offsets = [0, 256], sizes = [32, 32], strides = [1, 1]} : vector<32x384xf32> to vector<32x32xf32>
    %16 = vector.shape_cast %15 : vector<32x32xf32> to vector<2x16x32xf32>
    "tpu.trace_start"() <{level = 10 : i32, message = "bqd,bkd->bqk"}> : () -> ()
    %cst_12 = arith.constant dense<0.000000e+00> : vector<2x16x16xf32>
    %17 = tpu.matmul %12, %14, %cst_12 {dimension_numbers = #tpu.dot_dimension_numbers<[2], [2], [1], [1], [0, 0, 0, 1, 1, 1], [0], [0]>} : vector<2x16x32xf32>, vector<2x16x32xf32>, vector<2x16x16xf32> -> vector<2x16x16xf32>
    "tpu.trace_stop"() : () -> ()
    %c0_13 = arith.constant 0 : index
    %c0_14 = arith.constant 0 : index
    %c0_15 = arith.constant 0 : index
    %18 = vector.load %arg4[%c0_13, %c0_14, %c0_15] : memref<4x16x16xf32, #tpu.memory_space<vmem>>, vector<1x16x16xf32>
    %19 = vector.shape_cast %18 : vector<1x16x16xf32> to vector<16x16xf32>
    %20 = vector.shape_cast %19 : vector<16x16xf32> to vector<1x16x16xf32>
    %21 = vector.broadcast %20 : vector<1x16x16xf32> to vector<2x16x16xf32>
    %22 = arith.addf %17, %21 : vector<2x16x16xf32>
    %cst_16 = arith.constant dense<0xFF800000> : vector<2x16xf32>
    %23 = vector.multi_reduction <maximumf>, %22, %cst_16 [2] : vector<2x16x16xf32> to vector<2x16xf32>
    %24 = vector.shape_cast %23 : vector<2x16xf32> to vector<2x16x1xf32>
    %25 = vector.broadcast %24 : vector<2x16x1xf32> to vector<2x16x16xf32>
    %26 = arith.subf %22, %25 : vector<2x16x16xf32>
    %27 = math.exp %26 : vector<2x16x16xf32>
    %cst_17 = arith.constant dense<0.000000e+00> : vector<2x16xf32>
    %28 = vector.multi_reduction <add>, %27, %cst_17 [2] : vector<2x16x16xf32> to vector<2x16xf32>
    %29 = vector.shape_cast %28 : vector<2x16xf32> to vector<2x16x1xf32>
    %30 = tpu.reciprocal %29 {approx = true} : vector<2x16x1xf32> -> vector<2x16x1xf32>
    %31 = vector.broadcast %30 : vector<2x16x1xf32> to vector<2x16x16xf32>
    %32 = arith.mulf %27, %31 : vector<2x16x16xf32>
    "tpu.trace_start"() <{level = 10 : i32, message = "bqk,bkd->bqd"}> : () -> ()
    %cst_18 = arith.constant dense<0.000000e+00> : vector<2x16x32xf32>
    %33 = tpu.matmul %32, %16, %cst_18 {dimension_numbers = #tpu.dot_dimension_numbers<[2], [1], [1], [2], [0, 0, 0, 1, 1, 2], [0], [0]>} : vector<2x16x16xf32>, vector<2x16x32xf32>, vector<2x16x32xf32> -> vector<2x16x32xf32>
    "tpu.trace_stop"() : () -> ()
    %34 = vector.shape_cast %33 : vector<2x16x32xf32> to vector<32x32xf32>
    %c0_19 = arith.constant 0 : index
    %c0_20 = arith.constant 0 : index
    %35 = vector.load %arg5[%c0_19, %c0_20] : memref<128x128xf32, #tpu.memory_space<vmem>>, vector<32x128xf32>
    %cst_21 = arith.constant dense<0.000000e+00> : vector<32x128xf32>
    %36 = tpu.matmul %34, %35, %cst_21 {dimension_numbers = #tpu.dot_dimension_numbers<[1], [0], [0], [1], [0, 0, 1, 1], [], []>} : vector<32x32xf32>, vector<32x128xf32>, vector<32x128xf32> -> vector<32x128xf32>
    %37 = arith.addf %10, %36 : vector<32x128xf32>
    %38 = vector.extract_strided_slice %6 {offsets = [0, 32], sizes = [32, 32], strides = [1, 1]} : vector<32x384xf32> to vector<32x32xf32>
    %39 = vector.shape_cast %38 : vector<32x32xf32> to vector<2x16x32xf32>
    %40 = vector.extract_strided_slice %6 {offsets = [0, 160], sizes = [32, 32], strides = [1, 1]} : vector<32x384xf32> to vector<32x32xf32>
    %41 = vector.shape_cast %40 : vector<32x32xf32> to vector<2x16x32xf32>
    %42 = vector.extract_strided_slice %6 {offsets = [0, 288], sizes = [32, 32], strides = [1, 1]} : vector<32x384xf32> to vector<32x32xf32>
    %43 = vector.shape_cast %42 : vector<32x32xf32> to vector<2x16x32xf32>
    "tpu.trace_start"() <{level = 10 : i32, message = "bqd,bkd->bqk"}> : () -> ()
    %cst_22 = arith.constant dense<0.000000e+00> : vector<2x16x16xf32>
    %44 = tpu.matmul %39, %41, %cst_22 {dimension_numbers = #tpu.dot_dimension_numbers<[2], [2], [1], [1], [0, 0, 0, 1, 1, 1], [0], [0]>} : vector<2x16x32xf32>, vector<2x16x32xf32>, vector<2x16x16xf32> -> vector<2x16x16xf32>
    "tpu.trace_stop"() : () -> ()
    %c1 = arith.constant 1 : index
    %c0_23 = arith.constant 0 : index
    %c0_24 = arith.constant 0 : index
    %45 = vector.load %arg4[%c1, %c0_23, %c0_24] : memref<4x16x16xf32, #tpu.memory_space<vmem>>, vector<1x16x16xf32>
    %46 = vector.shape_cast %45 : vector<1x16x16xf32> to vector<16x16xf32>
    %47 = vector.shape_cast %46 : vector<16x16xf32> to vector<1x16x16xf32>
    %48 = vector.broadcast %47 : vector<1x16x16xf32> to vector<2x16x16xf32>
    %49 = arith.addf %44, %48 : vector<2x16x16xf32>
    %cst_25 = arith.constant dense<0xFF800000> : vector<2x16xf32>
    %50 = vector.multi_reduction <maximumf>, %49, %cst_25 [2] : vector<2x16x16xf32> to vector<2x16xf32>
    %51 = vector.shape_cast %50 : vector<2x16xf32> to vector<2x16x1xf32>
    %52 = vector.broadcast %51 : vector<2x16x1xf32> to vector<2x16x16xf32>
    %53 = arith.subf %49, %52 : vector<2x16x16xf32>
    %54 = math.exp %53 : vector<2x16x16xf32>
    %cst_26 = arith.constant dense<0.000000e+00> : vector<2x16xf32>
    %55 = vector.multi_reduction <add>, %54, %cst_26 [2] : vector<2x16x16xf32> to vector<2x16xf32>
    %56 = vector.shape_cast %55 : vector<2x16xf32> to vector<2x16x1xf32>
    %57 = tpu.reciprocal %56 {approx = true} : vector<2x16x1xf32> -> vector<2x16x1xf32>
    %58 = vector.broadcast %57 : vector<2x16x1xf32> to vector<2x16x16xf32>
    %59 = arith.mulf %54, %58 : vector<2x16x16xf32>
    "tpu.trace_start"() <{level = 10 : i32, message = "bqk,bkd->bqd"}> : () -> ()
    %cst_27 = arith.constant dense<0.000000e+00> : vector<2x16x32xf32>
    %60 = tpu.matmul %59, %43, %cst_27 {dimension_numbers = #tpu.dot_dimension_numbers<[2], [1], [1], [2], [0, 0, 0, 1, 1, 2], [0], [0]>} : vector<2x16x16xf32>, vector<2x16x32xf32>, vector<2x16x32xf32> -> vector<2x16x32xf32>
    "tpu.trace_stop"() : () -> ()
    %61 = vector.shape_cast %60 : vector<2x16x32xf32> to vector<32x32xf32>
    %c32 = arith.constant 32 : index
    %c0_28 = arith.constant 0 : index
    %62 = vector.load %arg5[%c32, %c0_28] : memref<128x128xf32, #tpu.memory_space<vmem>>, vector<32x128xf32>
    %cst_29 = arith.constant dense<0.000000e+00> : vector<32x128xf32>
    %63 = tpu.matmul %61, %62, %cst_29 {dimension_numbers = #tpu.dot_dimension_numbers<[1], [0], [0], [1], [0, 0, 1, 1], [], []>} : vector<32x32xf32>, vector<32x128xf32>, vector<32x128xf32> -> vector<32x128xf32>
    %64 = arith.addf %37, %63 : vector<32x128xf32>
    %65 = vector.extract_strided_slice %6 {offsets = [0, 64], sizes = [32, 32], strides = [1, 1]} : vector<32x384xf32> to vector<32x32xf32>
    %66 = vector.shape_cast %65 : vector<32x32xf32> to vector<2x16x32xf32>
    %67 = vector.extract_strided_slice %6 {offsets = [0, 192], sizes = [32, 32], strides = [1, 1]} : vector<32x384xf32> to vector<32x32xf32>
    %68 = vector.shape_cast %67 : vector<32x32xf32> to vector<2x16x32xf32>
    %69 = vector.extract_strided_slice %6 {offsets = [0, 320], sizes = [32, 32], strides = [1, 1]} : vector<32x384xf32> to vector<32x32xf32>
    %70 = vector.shape_cast %69 : vector<32x32xf32> to vector<2x16x32xf32>
    "tpu.trace_start"() <{level = 10 : i32, message = "bqd,bkd->bqk"}> : () -> ()
    %cst_30 = arith.constant dense<0.000000e+00> : vector<2x16x16xf32>
    %71 = tpu.matmul %66, %68, %cst_30 {dimension_numbers = #tpu.dot_dimension_numbers<[2], [2], [1], [1], [0, 0, 0, 1, 1, 1], [0], [0]>} : vector<2x16x32xf32>, vector<2x16x32xf32>, vector<2x16x16xf32> -> vector<2x16x16xf32>
    "tpu.trace_stop"() : () -> ()
    %c2 = arith.constant 2 : index
    %c0_31 = arith.constant 0 : index
    %c0_32 = arith.constant 0 : index
    %72 = vector.load %arg4[%c2, %c0_31, %c0_32] : memref<4x16x16xf32, #tpu.memory_space<vmem>>, vector<1x16x16xf32>
    %73 = vector.shape_cast %72 : vector<1x16x16xf32> to vector<16x16xf32>
    %74 = vector.shape_cast %73 : vector<16x16xf32> to vector<1x16x16xf32>
    %75 = vector.broadcast %74 : vector<1x16x16xf32> to vector<2x16x16xf32>
    %76 = arith.addf %71, %75 : vector<2x16x16xf32>
    %cst_33 = arith.constant dense<0xFF800000> : vector<2x16xf32>
    %77 = vector.multi_reduction <maximumf>, %76, %cst_33 [2] : vector<2x16x16xf32> to vector<2x16xf32>
    %78 = vector.shape_cast %77 : vector<2x16xf32> to vector<2x16x1xf32>
    %79 = vector.broadcast %78 : vector<2x16x1xf32> to vector<2x16x16xf32>
    %80 = arith.subf %76, %79 : vector<2x16x16xf32>
    %81 = math.exp %80 : vector<2x16x16xf32>
    %cst_34 = arith.constant dense<0.000000e+00> : vector<2x16xf32>
    %82 = vector.multi_reduction <add>, %81, %cst_34 [2] : vector<2x16x16xf32> to vector<2x16xf32>
    %83 = vector.shape_cast %82 : vector<2x16xf32> to vector<2x16x1xf32>
    %84 = tpu.reciprocal %83 {approx = true} : vector<2x16x1xf32> -> vector<2x16x1xf32>
    %85 = vector.broadcast %84 : vector<2x16x1xf32> to vector<2x16x16xf32>
    %86 = arith.mulf %81, %85 : vector<2x16x16xf32>
    "tpu.trace_start"() <{level = 10 : i32, message = "bqk,bkd->bqd"}> : () -> ()
    %cst_35 = arith.constant dense<0.000000e+00> : vector<2x16x32xf32>
    %87 = tpu.matmul %86, %70, %cst_35 {dimension_numbers = #tpu.dot_dimension_numbers<[2], [1], [1], [2], [0, 0, 0, 1, 1, 2], [0], [0]>} : vector<2x16x16xf32>, vector<2x16x32xf32>, vector<2x16x32xf32> -> vector<2x16x32xf32>
    "tpu.trace_stop"() : () -> ()
    %88 = vector.shape_cast %87 : vector<2x16x32xf32> to vector<32x32xf32>
    %c64 = arith.constant 64 : index
    %c0_36 = arith.constant 0 : index
    %89 = vector.load %arg5[%c64, %c0_36] : memref<128x128xf32, #tpu.memory_space<vmem>>, vector<32x128xf32>
    %cst_37 = arith.constant dense<0.000000e+00> : vector<32x128xf32>
    %90 = tpu.matmul %88, %89, %cst_37 {dimension_numbers = #tpu.dot_dimension_numbers<[1], [0], [0], [1], [0, 0, 1, 1], [], []>} : vector<32x32xf32>, vector<32x128xf32>, vector<32x128xf32> -> vector<32x128xf32>
    %91 = arith.addf %64, %90 : vector<32x128xf32>
    %92 = vector.extract_strided_slice %6 {offsets = [0, 96], sizes = [32, 32], strides = [1, 1]} : vector<32x384xf32> to vector<32x32xf32>
    %93 = vector.shape_cast %92 : vector<32x32xf32> to vector<2x16x32xf32>
    %94 = vector.extract_strided_slice %6 {offsets = [0, 224], sizes = [32, 32], strides = [1, 1]} : vector<32x384xf32> to vector<32x32xf32>
    %95 = vector.shape_cast %94 : vector<32x32xf32> to vector<2x16x32xf32>
    %96 = vector.extract_strided_slice %6 {offsets = [0, 352], sizes = [32, 32], strides = [1, 1]} : vector<32x384xf32> to vector<32x32xf32>
    %97 = vector.shape_cast %96 : vector<32x32xf32> to vector<2x16x32xf32>
    "tpu.trace_start"() <{level = 10 : i32, message = "bqd,bkd->bqk"}> : () -> ()
    %cst_38 = arith.constant dense<0.000000e+00> : vector<2x16x16xf32>
    %98 = tpu.matmul %93, %95, %cst_38 {dimension_numbers = #tpu.dot_dimension_numbers<[2], [2], [1], [1], [0, 0, 0, 1, 1, 1], [0], [0]>} : vector<2x16x32xf32>, vector<2x16x32xf32>, vector<2x16x16xf32> -> vector<2x16x16xf32>
    "tpu.trace_stop"() : () -> ()
    %c3 = arith.constant 3 : index
    %c0_39 = arith.constant 0 : index
    %c0_40 = arith.constant 0 : index
    %99 = vector.load %arg4[%c3, %c0_39, %c0_40] : memref<4x16x16xf32, #tpu.memory_space<vmem>>, vector<1x16x16xf32>
    %100 = vector.shape_cast %99 : vector<1x16x16xf32> to vector<16x16xf32>
    %101 = vector.shape_cast %100 : vector<16x16xf32> to vector<1x16x16xf32>
    %102 = vector.broadcast %101 : vector<1x16x16xf32> to vector<2x16x16xf32>
    %103 = arith.addf %98, %102 : vector<2x16x16xf32>
    %cst_41 = arith.constant dense<0xFF800000> : vector<2x16xf32>
    %104 = vector.multi_reduction <maximumf>, %103, %cst_41 [2] : vector<2x16x16xf32> to vector<2x16xf32>
    %105 = vector.shape_cast %104 : vector<2x16xf32> to vector<2x16x1xf32>
    %106 = vector.broadcast %105 : vector<2x16x1xf32> to vector<2x16x16xf32>
    %107 = arith.subf %103, %106 : vector<2x16x16xf32>
    %108 = math.exp %107 : vector<2x16x16xf32>
    %cst_42 = arith.constant dense<0.000000e+00> : vector<2x16xf32>
    %109 = vector.multi_reduction <add>, %108, %cst_42 [2] : vector<2x16x16xf32> to vector<2x16xf32>
    %110 = vector.shape_cast %109 : vector<2x16xf32> to vector<2x16x1xf32>
    %111 = tpu.reciprocal %110 {approx = true} : vector<2x16x1xf32> -> vector<2x16x1xf32>
    %112 = vector.broadcast %111 : vector<2x16x1xf32> to vector<2x16x16xf32>
    %113 = arith.mulf %108, %112 : vector<2x16x16xf32>
    "tpu.trace_start"() <{level = 10 : i32, message = "bqk,bkd->bqd"}> : () -> ()
    %cst_43 = arith.constant dense<0.000000e+00> : vector<2x16x32xf32>
    %114 = tpu.matmul %113, %97, %cst_43 {dimension_numbers = #tpu.dot_dimension_numbers<[2], [1], [1], [2], [0, 0, 0, 1, 1, 2], [0], [0]>} : vector<2x16x16xf32>, vector<2x16x32xf32>, vector<2x16x32xf32> -> vector<2x16x32xf32>
    "tpu.trace_stop"() : () -> ()
    %115 = vector.shape_cast %114 : vector<2x16x32xf32> to vector<32x32xf32>
    %c96 = arith.constant 96 : index
    %c0_44 = arith.constant 0 : index
    %116 = vector.load %arg5[%c96, %c0_44] : memref<128x128xf32, #tpu.memory_space<vmem>>, vector<32x128xf32>
    %cst_45 = arith.constant dense<0.000000e+00> : vector<32x128xf32>
    %117 = tpu.matmul %115, %116, %cst_45 {dimension_numbers = #tpu.dot_dimension_numbers<[1], [0], [0], [1], [0, 0, 1, 1], [], []>} : vector<32x32xf32>, vector<32x128xf32>, vector<32x128xf32> -> vector<32x128xf32>
    %118 = arith.addf %91, %117 : vector<32x128xf32>
    %c0_46 = arith.constant 0 : index
    %c0_47 = arith.constant 0 : index
    %119 = vector.load %arg6[%c0_46, %c0_47] : memref<1x128xf32, #tpu.memory_space<vmem>>, vector<1x128xf32>
    %120 = vector.broadcast %119 : vector<1x128xf32> to vector<32x128xf32>
    %121 = arith.addf %118, %120 : vector<32x128xf32>
    %122 = vector.shape_cast %121 : vector<32x128xf32> to vector<2x16x128xf32>
    %c0_48 = arith.constant 0 : index
    %c0_49 = arith.constant 0 : index
    %c0_50 = arith.constant 0 : index
    %123 = vector.load %arg8[%c0_48, %c0_49, %c0_50] : memref<2x16x128xf32, #tpu.memory_space<vmem>>, vector<2x16x128xf32>
    tpu.vector_store %arg8[%c0_48, %c0_49, %c0_50], %122 {strides = array<i32>} : memref<2x16x128xf32, #tpu.memory_space<vmem>>, vector<2x16x128xf32>,
    return
  }
  func.func @transform_0(%arg0: i32) -> (i32, i32, i32) {
    %c0_i32 = arith.constant 0 : i32
    %c0_i32_0 = arith.constant 0 : i32
    %c0_i32_1 = arith.constant 0 : i32
    return %arg0, %c0_i32, %c0_i32_0 : i32, i32, i32
  }
  func.func @transform_1(%arg0: i32) -> (i32, i32) {
    %c0_i32 = arith.constant 0 : i32
    %c0_i32_0 = arith.constant 0 : i32
    %c0_i32_1 = arith.constant 0 : i32
    return %c0_i32, %c0_i32_0 : i32, i32
  }
  func.func @transform_2(%arg0: i32) -> (i32, i32) {
    %c0_i32 = arith.constant 0 : i32
    %c0_i32_0 = arith.constant 0 : i32
    %c0_i32_1 = arith.constant 0 : i32
    return %c0_i32, %c0_i32_0 : i32, i32
  }
  func.func @transform_3(%arg0: i32) -> (i32, i32, i32) {
    %c0_i32 = arith.constant 0 : i32
    %c0_i32_0 = arith.constant 0 : i32
    %c0_i32_1 = arith.constant 0 : i32
    %c0_i32_2 = arith.constant 0 : i32
    return %c0_i32, %c0_i32_0, %c0_i32_1 : i32, i32, i32
  }
  func.func @transform_4(%arg0: i32) -> (i32, i32) {
    %c0_i32 = arith.constant 0 : i32
    %c0_i32_0 = arith.constant 0 : i32
    %c0_i32_1 = arith.constant 0 : i32
    return %c0_i32, %c0_i32_0 : i32, i32
  }
  func.func @transform_5(%arg0: i32) -> (i32, i32) {
    %c0_i32 = arith.constant 0 : i32
    %c0_i32_0 = arith.constant 0 : i32
    %c0_i32_1 = arith.constant 0 : i32
    return %c0_i32, %c0_i32_0 : i32, i32
  }
  func.func @transform_6(%arg0: i32) -> (i32, i32, i32) {
    %c0_i32 = arith.constant 0 : i32
    %c0_i32_0 = arith.constant 0 : i32
    %c0_i32_1 = arith.constant 0 : i32
    return %arg0, %c0_i32, %c0_i32_0 : i32, i32, i32
  }
  func.func @transform_7(%arg0: i32) -> (i32, i32, i32) {
    %c0_i32 = arith.constant 0 : i32
    %c0_i32_0 = arith.constant 0 : i32
    %c0_i32_1 = arith.constant 0 : i32
    return %arg0, %c0_i32, %c0_i32_0 : i32, i32, i32
  }
}

</mosaic_0001>

<llo_original>
// kernel: tpu_custom_call.1
$region0: #{tpu_custom_call.1}
  #allocation0 [shape = 'u32[]', space=smem, size = 0x4, offset = 0x4, fixed_abs, tag = 'smem constant byte address 0x4 - core index']
  #allocation1 [shape = 'u32[144,128]{1,0:T(1,128)}', space=vmem, size = 0x12000, scoped, tag = 'internal scratch']
  %s0 = inlined_call_operand.hbm [shape: f32[8,16,128], index: 0, kind: input, shape index: {}]
  %s1 = inlined_call_operand.hbm [shape: f32[128,384], index: 1, kind: input, shape index: {}]
  %s2 = inlined_call_operand.vmem [shape: f32[1,384], index: 2, kind: input, shape index: {}]
  %s3 = inlined_call_operand.hbm [shape: f32[4,16,16], index: 3, kind: input, shape index: {}]
  %s4 = inlined_call_operand.hbm [shape: f32[128,128], index: 4, kind: input, shape index: {}]
  %s5 = inlined_call_operand.vmem [shape: f32[1,128], index: 5, kind: input, shape index: {}]
  %s6 = inlined_call_operand.hbm [shape: f32[8,16,128], index: 6, kind: input, shape index: {}]
  %s7 = inlined_call_operand.hbm [shape: f32[8,16,128], index: 7, kind: output, shape index: {}]
  %s8 = sld [smem:[#allocation0]]
  $region81: #{tpu_custom_call.1} parent=0
    _
  %s10 = ssub.s32 1, %s8
  %s11 = scalar_select 0, %s10, %s8
  $region1: #{tpu_custom_call.1} parent=0
    #allocation2 [shape = 'u8[32768]{0}', space=vmem, size = 0x8000, scoped, tag = 'input window, operand 0']
    #allocation3 [shape = 's32[2]{0}', space=sflag, size = 0x8, scoped, tag = 'scoped memory for tpu_custom_call.1']
    #allocation4 [shape = 's32[2]{0}', space=sflag, size = 0x8, scoped, tag = 'scoped memory for tpu_custom_call.1']
    #allocation5 [shape = 'u8[196608]{0}', space=vmem, size = 0x30000, scoped, tag = 'input window, operand 1, single buffered']
    #allocation6 [shape = 's32[1]{0}', space=sflag, size = 0x4, scoped, tag = 'scoped memory for tpu_custom_call.1']
    #allocation7 [shape = 'u8[32768]{0}', space=vmem, size = 0x8000, scoped, tag = 'input window, operand 3, single buffered']
    #allocation8 [shape = 'u8[65536]{0}', space=vmem, size = 0x10000, scoped, tag = 'input window, operand 4, single buffered']
    #allocation9 [shape = 's32[1]{0}', space=sflag, size = 0x4, scoped, tag = 'scoped memory for tpu_custom_call.1']
    #allocation10 [shape = 'u8[32768]{0}', space=vmem, size = 0x8000, scoped, tag = 'input window, operand 6']
    #allocation11 [shape = 'u8[32768]{0}', space=vmem, size = 0x8000, scoped, tag = 'output window, operand 0']
    %12 = vsyncpa [#allocation3], 0
    %s13 = scalar_lea.sflag [#allocation3], 1
    %14 = vsyncpa %s13, 0
    %15 = vsyncpa [#allocation6], 0
    %16 = vsyncpa [#allocation9], 0
    %17 = vsyncpa [#allocation4], 0
    %s18 = scalar_lea.sflag [#allocation4], 1
    %19 = vsyncpa %s18, 0
    loop: start=0, step=1, limit=6
    $region2: #{tpu_custom_call.1} parent=1 // loop_pre_header
      _
    $region3: #{tpu_custom_call.1} parent=1 // loop_header
      %s21 = sphi 0, %s25
      %p22 = scmp.ge.s32.totalorder %s21, 6
      %s31 = sphi 0, %s33
      %s34 = sphi 0, %s31
      %s35 = sphi 0, %s34
      %s51 = sphi 0, %s35
      %s55 = sphi 0, %s55
      %s57 = sphi 0, %s55
      %s58 = sphi 0, %s57
      %s72 = sphi 0, %s58
      %s76 = sphi 0, %s76
      %s78 = sphi 0, %s76
      %s79 = sphi 0, %s78
      %s93 = sphi 0, %s79
      %s97 = sphi 0, %s97
      %s99 = sphi 0, %s97
      %s100 = sphi 0, %s99
      %s114 = sphi 0, %s100
      %s118 = sphi 0, %s118
      %s120 = sphi 0, %s118
      %s121 = sphi 0, %s120
      %s135 = sphi 0, %s121
      %s139 = sphi 0, %s139
      %s141 = sphi 0, %s139
      %s142 = sphi 0, %s141
      %s156 = sphi 0, %s142
      %s162 = sphi 0, %s164
      %s165 = sphi 0, %s162
      %s166 = sphi 0, %s165
      %s182 = sphi 0, %s166
      %s188 = sphi 0, %s190
      %s191 = sphi 0, %s188
      %s192 = sphi 0, %s191
      %s208 = sphi 0, %s192
    $region4: #{tpu_custom_call.1} parent=1 // loop_header_branch
      %24 = sbr.rel (%p22) target = $region8
    $region5: #{tpu_custom_call.1} parent=1 // loop_body
      %s26 = ssub.s32 %s21, 1
      %s27 = ssub.s32 %s21, 2
      %s28 = sadd.s32 %s21, 1
      %s29 = ssub.s32 %s21, %s28
      %p30 = scmp.eq.s32.totalorder %s29, 0
      %s32 = sadd.s32 %s31, 1
      %s33 = scalar_select %p30, %s31, %s32
      %p36 = pneg %p30
      %p37 = scmp.eq.s32.totalorder %s21, 3
      %p38 = por %p36, %p37
      %p39 = scmp.ne.s32.totalorder %s31, %s34
      %p40 = scmp.eq.s32.totalorder %s21, 0
      %p41 = por %p39, %p40
      %p42 = scmp.ne.s32.totalorder %s31, %s34
      %p43 = scmp.eq.s32.totalorder %s26, 3
      %p44 = por %p42, %p43
      %p45 = scmp.ne.s32.totalorder %s34, %s35
      %p46 = scmp.eq.s32.totalorder %s26, 0
      %p47 = por %p45, %p46
      %p48 = scmp.ne.s32.totalorder %s34, %s35
      %p49 = scmp.eq.s32.totalorder %s27, 3
      %p50 = por %p48, %p49
      %p52 = scmp.ne.s32.totalorder %s35, %s51
      %p53 = scmp.eq.s32.totalorder %s27, 0
      %p54 = por %p52, %p53
      %s56 = sadd.s32 %s55, 1
      %p59 = scmp.eq.s32.totalorder %s21, 3
      %p60 = scmp.ne.s32.totalorder %s55, %s57
      %p61 = scmp.eq.s32.totalorder %s21, 0
      %p62 = por %p60, %p61
      %p63 = scmp.ne.s32.totalorder %s55, %s57
      %p64 = scmp.eq.s32.totalorder %s26, 3
      %p65 = por %p63, %p64
      %p66 = scmp.ne.s32.totalorder %s57, %s58
      %p67 = scmp.eq.s32.totalorder %s26, 0
      %p68 = por %p66, %p67
      %p69 = scmp.ne.s32.totalorder %s57, %s58
      %p70 = scmp.eq.s32.totalorder %s27, 3
      %p71 = por %p69, %p70
      %p73 = scmp.ne.s32.totalorder %s58, %s72
      %p74 = scmp.eq.s32.totalorder %s27, 0
      %p75 = por %p73, %p74
      %s77 = sadd.s32 %s76, 1
      %p80 = scmp.eq.s32.totalorder %s21, 3
      %p81 = scmp.ne.s32.totalorder %s76, %s78
      %p82 = scmp.eq.s32.totalorder %s21, 0
      %p83 = por %p81, %p82
      %p84 = scmp.ne.s32.totalorder %s76, %s78
      %p85 = scmp.eq.s32.totalorder %s26, 3
      %p86 = por %p84, %p85
      %p87 = scmp.ne.s32.totalorder %s78, %s79
      %p88 = scmp.eq.s32.totalorder %s26, 0
      %p89 = por %p87, %p88
      %p90 = scmp.ne.s32.totalorder %s78, %s79
      %p91 = scmp.eq.s32.totalorder %s27, 3
      %p92 = por %p90, %p91
      %p94 = scmp.ne.s32.totalorder %s79, %s93
      %p95 = scmp.eq.s32.totalorder %s27, 0
      %p96 = por %p94, %p95
      %s98 = sadd.s32 %s97, 1
      %p101 = scmp.eq.s32.totalorder %s21, 3
      %p102 = scmp.ne.s32.totalorder %s97, %s99
      %p103 = scmp.eq.s32.totalorder %s21, 0
      %p104 = por %p102, %p103
      %p105 = scmp.ne.s32.totalorder %s97, %s99
      %p106 = scmp.eq.s32.totalorder %s26, 3
      %p107 = por %p105, %p106
      %p108 = scmp.ne.s32.totalorder %s99, %s100
      %p109 = scmp.eq.s32.totalorder %s26, 0
      %p110 = por %p108, %p109
      %p111 = scmp.ne.s32.totalorder %s99, %s100
      %p112 = scmp.eq.s32.totalorder %s27, 3
      %p113 = por %p111, %p112
      %p115 = scmp.ne.s32.totalorder %s100, %s114
      %p116 = scmp.eq.s32.totalorder %s27, 0
      %p117 = por %p115, %p116
      %s119 = sadd.s32 %s118, 1
      %p122 = scmp.eq.s32.totalorder %s21, 3
      %p123 = scmp.ne.s32.totalorder %s118, %s120
      %p124 = scmp.eq.s32.totalorder %s21, 0
      %p125 = por %p123, %p124
      %p126 = scmp.ne.s32.totalorder %s118, %s120
      %p127 = scmp.eq.s32.totalorder %s26, 3
      %p128 = por %p126, %p127
      %p129 = scmp.ne.s32.totalorder %s120, %s121
      %p130 = scmp.eq.s32.totalorder %s26, 0
      %p131 = por %p129, %p130
      %p132 = scmp.ne.s32.totalorder %s120, %s121
      %p133 = scmp.eq.s32.totalorder %s27, 3
      %p134 = por %p132, %p133
      %p136 = scmp.ne.s32.totalorder %s121, %s135
      %p137 = scmp.eq.s32.totalorder %s27, 0
      %p138 = por %p136, %p137
      %s140 = sadd.s32 %s139, 1
      %p143 = scmp.eq.s32.totalorder %s21, 3
      %p144 = scmp.ne.s32.totalorder %s139, %s141
      %p145 = scmp.eq.s32.totalorder %s21, 0
      %p146 = por %p144, %p145
      %p147 = scmp.ne.s32.totalorder %s139, %s141
      %p148 = scmp.eq.s32.totalorder %s26, 3
      %p149 = por %p147, %p148
      %p150 = scmp.ne.s32.totalorder %s141, %s142
      %p151 = scmp.eq.s32.totalorder %s26, 0
      %p152 = por %p150, %p151
      %p153 = scmp.ne.s32.totalorder %s141, %s142
      %p154 = scmp.eq.s32.totalorder %s27, 3
      %p155 = por %p153, %p154
      %p157 = scmp.ne.s32.totalorder %s142, %s156
      %p158 = scmp.eq.s32.totalorder %s27, 0
      %p159 = por %p157, %p158
      %s160 = ssub.s32 %s21, %s28
      %p161 = scmp.eq.s32.totalorder %s160, 0
      %s163 = sadd.s32 %s162, 1
      %s164 = scalar_select %p161, %s162, %s163
      %p167 = pneg %p161
      %p168 = scmp.eq.s32.totalorder %s21, 3
      %p169 = por %p167, %p168
      %p170 = scmp.ne.s32.totalorder %s162, %s165
      %p171 = scmp.eq.s32.totalorder %s21, 0
      %p172 = por %p170, %p171
      %p173 = scmp.ne.s32.totalorder %s162, %s165
      %p174 = scmp.eq.s32.totalorder %s26, 3
      %p175 = por %p173, %p174
      %p176 = scmp.ne.s32.totalorder %s165, %s166
      %p177 = scmp.eq.s32.totalorder %s26, 0
      %p178 = por %p176, %p177
      %p179 = scmp.ne.s32.totalorder %s165, %s166
      %p180 = scmp.eq.s32.totalorder %s27, 3
      %p181 = por %p179, %p180
      %p183 = scmp.ne.s32.totalorder %s166, %s182
      %p184 = scmp.eq.s32.totalorder %s27, 0
      %p185 = por %p183, %p184
      %s186 = ssub.s32 %s21, %s28
      %p187 = scmp.eq.s32.totalorder %s186, 0
      %s189 = sadd.s32 %s188, 1
      %s190 = scalar_select %p187, %s188, %s189
      %p193 = pneg %p187
      %p194 = scmp.eq.s32.totalorder %s21, 3
      %p195 = por %p193, %p194
      %p196 = scmp.ne.s32.totalorder %s188, %s191
      %p197 = scmp.eq.s32.totalorder %s21, 0
      %p198 = por %p196, %p197
      %p199 = scmp.ne.s32.totalorder %s188, %s191
      %p200 = scmp.eq.s32.totalorder %s26, 3
      %p201 = por %p199, %p200
      %p202 = scmp.ne.s32.totalorder %s191, %s192
      %p203 = scmp.eq.s32.totalorder %s26, 0
      %p204 = por %p202, %p203
      %p205 = scmp.ne.s32.totalorder %s191, %s192
      %p206 = scmp.eq.s32.totalorder %s27, 3
      %p207 = por %p205, %p206
      %p209 = scmp.ne.s32.totalorder %s192, %s208
      %p210 = scmp.eq.s32.totalorder %s27, 0
      %p211 = por %p209, %p210
      %p212 = scmp.le.s32.totalorder 1, %s21
      %p213 = scmp.lt.s32.totalorder %s21, 5
      %p214 = pnand %p212, %p213
      %p215 = pneg %p214
      // Predicated region
      $region9: #{tpu_custom_call.1} parent=5 // pred_check
        _
      $region10: #{tpu_custom_call.1} parent=5 // pred_check_branch
        %217 = sbr.rel (%p214) target = $region12
      $region11: #{tpu_custom_call.1} parent=5 // pred_region
        %s218 = ssub.s32 %s21, 1
        // Predicated region
        $region13: #{tpu_custom_call.1} parent=11 // pred_check
          %p219 = pneg %p68
        $region14: #{tpu_custom_call.1} parent=11 // pred_check_branch
          %221 = sbr.rel (%p219) target = $region16
        $region15: #{tpu_custom_call.1} parent=11 // pred_region
          %s223 = ssub.s32 6144, 6144
          %224 = vsyncadd [#allocation6], %s223
          %s225 = sshll.u32 [#allocation5], 4
          %s226 = int_to_ptr.vmem [resolvable:$true] %s225
          %231 = dma.hbm_to_vmem [thread:$0]  %s1, 6144, %s226, [#allocation6], 384, 384, 24
        $region16: #{tpu_custom_call.1} parent=11 // pred_fallthru
          _
        // Predicated region
        $region17: #{tpu_custom_call.1} parent=11 // pred_check
          %p232 = pneg %p89
        $region18: #{tpu_custom_call.1} parent=11 // pred_check_branch
          %234 = sbr.rel (%p232) target = $region20
        $region19: #{tpu_custom_call.1} parent=11 // pred_region
          _
        $region20: #{tpu_custom_call.1} parent=11 // pred_fallthru
          _
        // Predicated region
        $region21: #{tpu_custom_call.1} parent=11 // pred_check
          %p235 = pneg %p110
        $region22: #{tpu_custom_call.1} parent=11 // pred_check_branch
          %237 = sbr.rel (%p235) target = $region24
        $region23: #{tpu_custom_call.1} parent=11 // pred_region
          %s239 = ssub.s32 1024, 1024
          %240 = vsyncadd [#allocation6], %s239
          %s241 = sshll.u32 [#allocation7], 4
          %s242 = int_to_ptr.vmem [resolvable:$true] %s241
          %247 = dma.hbm_to_vmem [thread:$0]  %s3, 1024, %s242, [#allocation6], 128, 128, 8
        $region24: #{tpu_custom_call.1} parent=11 // pred_fallthru
          _
        // Predicated region
        $region25: #{tpu_custom_call.1} parent=11 // pred_check
          %p248 = pneg %p131
        $region26: #{tpu_custom_call.1} parent=11 // pred_check_branch
          %250 = sbr.rel (%p248) target = $region28
        $region27: #{tpu_custom_call.1} parent=11 // pred_region
          %s252 = ssub.s32 2048, 2048
          %253 = vsyncadd [#allocation9], %s252
          %s254 = sshll.u32 [#allocation8], 4
          %s255 = int_to_ptr.vmem [resolvable:$true] %s254
          %260 = dma.hbm_to_vmem [thread:$0]  %s4, 2048, %s255, [#allocation9], 128, 128, 8
        $region28: #{tpu_custom_call.1} parent=11 // pred_fallthru
          _
        // Predicated region
        $region29: #{tpu_custom_call.1} parent=11 // pred_check
          %p261 = pneg %p152
        $region30: #{tpu_custom_call.1} parent=11 // pred_check_branch
          %263 = sbr.rel (%p261) target = $region32
        $region31: #{tpu_custom_call.1} parent=11 // pred_region
          _
        $region32: #{tpu_custom_call.1} parent=11 // pred_fallthru
          _
      $region12: #{tpu_custom_call.1} parent=5 // pred_fallthru
        _
      %p264 = scmp.lt.s32.totalorder %s21, 4
      // Predicated region
      $region33: #{tpu_custom_call.1} parent=5 // pred_check
        %p265 = pneg %p264
      $region34: #{tpu_custom_call.1} parent=5 // pred_check_branch
        %267 = sbr.rel (%p265) target = $region36
      $region35: #{tpu_custom_call.1} parent=5 // pred_region
        // Predicated region
        $region37: #{tpu_custom_call.1} parent=35 // pred_check
          %p268 = pneg %p41
        $region38: #{tpu_custom_call.1} parent=35 // pred_check_branch
          %270 = sbr.rel (%p268) target = $region40
        $region39: #{tpu_custom_call.1} parent=35 // pred_region
          %s271 = sand.u32 %s21, 1
          %s272 = scalar_lea.sflag [#allocation3], %s271
          %s273 = sand.u32 %s31, 1
          %s274 = smul.addr %s273, 32
          %s275 = scalar_lea.vmem [#allocation2], %s274
          %s276 = smul.u32 2, %s21
          %s278 = ssub.s32 512, 512
          %279 = vsyncadd %s272, %s278
          %s280 = smul.addr %s276, 2
          %s281 = smul.addr %s280, 128
          %s282 = scalar_lea.hbm %s0, %s281
          %s283 = sshll.u32 %s275, 4
          %s284 = int_to_ptr.vmem [resolvable:$true] %s283
          %289 = dma.hbm_to_vmem [thread:$0]  %s282, 512, %s284, %s272, 128, 128, 8
        $region40: #{tpu_custom_call.1} parent=35 // pred_fallthru
          _
        // Predicated region
        $region41: #{tpu_custom_call.1} parent=35 // pred_check
          %p290 = pneg %p172
        $region42: #{tpu_custom_call.1} parent=35 // pred_check_branch
          %292 = sbr.rel (%p290) target = $region44
        $region43: #{tpu_custom_call.1} parent=35 // pred_region
          %s293 = sand.u32 %s21, 1
          %s294 = scalar_lea.sflag [#allocation3], %s293
          %s295 = sand.u32 %s162, 1
          %s296 = smul.addr %s295, 32
          %s297 = scalar_lea.vmem [#allocation10], %s296
          %s298 = smul.u32 2, %s21
          %s300 = ssub.s32 512, 512
          %301 = vsyncadd %s294, %s300
          %s302 = smul.addr %s298, 2
          %s303 = smul.addr %s302, 128
          %s304 = scalar_lea.hbm %s6, %s303
          %s305 = sshll.u32 %s297, 4
          %s306 = int_to_ptr.vmem [resolvable:$true] %s305
          %311 = dma.hbm_to_vmem [thread:$0]  %s304, 512, %s306, %s294, 128, 128, 8
        $region44: #{tpu_custom_call.1} parent=35 // pred_fallthru
          _
      $region36: #{tpu_custom_call.1} parent=5 // pred_fallthru
        _
      %p312 = scmp.le.s32.totalorder 1, %s21
      %p313 = scmp.lt.s32.totalorder %s21, 5
      %p314 = pnand %p312, %p313
      %p315 = pneg %p314
      // Predicated region
      $region45: #{tpu_custom_call.1} parent=5 // pred_check
        _
      $region46: #{tpu_custom_call.1} parent=5 // pred_check_branch
        %317 = sbr.rel (%p314) target = $region48
      $region47: #{tpu_custom_call.1} parent=5 // pred_region
        %s318 = ssub.s32 %s21, 1
        %s319 = sand.u32 %s26, 1
        %s320 = scalar_lea.sflag [#allocation3], %s319
        %s321 = sand.u32 %s34, 1
        %s322 = smul.addr %s321, 32
        %s323 = scalar_lea.vmem [#allocation2], %s322
        // Predicated region
        $region49: #{tpu_custom_call.1} parent=47 // pred_check
          %p324 = pneg %p47
        $region50: #{tpu_custom_call.1} parent=47 // pred_check_branch
          %326 = sbr.rel (%p324) target = $region52
        $region51: #{tpu_custom_call.1} parent=47 // pred_region
          %327 = dma.done %s320, 512
        $region52: #{tpu_custom_call.1} parent=47 // pred_fallthru
          _
        // Predicated region
        $region53: #{tpu_custom_call.1} parent=47 // pred_check
          %p328 = pneg %p68
        $region54: #{tpu_custom_call.1} parent=47 // pred_check_branch
          %330 = sbr.rel (%p328) target = $region56
        $region55: #{tpu_custom_call.1} parent=47 // pred_region
          %331 = dma.done [#allocation6], 6144
        $region56: #{tpu_custom_call.1} parent=47 // pred_fallthru
          _
        // Predicated region
        $region57: #{tpu_custom_call.1} parent=47 // pred_check
          %p332 = pneg %p110
        $region58: #{tpu_custom_call.1} parent=47 // pred_check_branch
          %334 = sbr.rel (%p332) target = $region60
        $region59: #{tpu_custom_call.1} parent=47 // pred_region
          %335 = dma.done [#allocation6], 1024
        $region60: #{tpu_custom_call.1} parent=47 // pred_fallthru
          _
        // Predicated region
        $region61: #{tpu_custom_call.1} parent=47 // pred_check
          %p336 = pneg %p131
        $region62: #{tpu_custom_call.1} parent=47 // pred_check_branch
          %338 = sbr.rel (%p336) target = $region64
        $region63: #{tpu_custom_call.1} parent=47 // pred_region
          %339 = dma.done [#allocation9], 2048
        $region64: #{tpu_custom_call.1} parent=47 // pred_fallthru
          _
        %s340 = sand.u32 %s26, 1
        %s341 = scalar_lea.sflag [#allocation3], %s340
        %s342 = sand.u32 %s165, 1
        %s343 = smul.addr %s342, 32
        %s344 = scalar_lea.vmem [#allocation10], %s343
        // Predicated region
        $region65: #{tpu_custom_call.1} parent=47 // pred_check
          %p345 = pneg %p178
        $region66: #{tpu_custom_call.1} parent=47 // pred_check_branch
          %347 = sbr.rel (%p345) target = $region68
        $region67: #{tpu_custom_call.1} parent=47 // pred_region
          %348 = dma.done %s341, 512
        $region68: #{tpu_custom_call.1} parent=47 // pred_fallthru
          _
        %s349 = sand.u32 %s26, 1
        %s350 = scalar_lea.sflag [#allocation3], %s349
        %s351 = sand.u32 %s34, 1
        %s352 = smul.addr %s351, 32
        %s353 = scalar_lea.vmem [#allocation2], %s352
        %p354 = pneg %p47
        %p355 = pneg %p44
        %p356 = pneg %p68
        %p357 = pneg %p65
        %p358 = pneg %p89
        %p359 = pneg %p86
        %p360 = pneg %p110
        %p361 = pneg %p107
        %p362 = pneg %p131
        %p363 = pneg %p128
        %p364 = pneg %p152
        %p365 = pneg %p149
        %s366 = sand.u32 %s26, 1
        %s367 = scalar_lea.sflag [#allocation3], %s366
        %s368 = sand.u32 %s165, 1
        %s369 = smul.addr %s368, 32
        %s370 = scalar_lea.vmem [#allocation10], %s369
        %p371 = pneg %p178
        %p372 = pneg %p175
        %p373 = pneg %p204
        %p374 = pneg %p201
        %s375 = sand.u32 %s191, 1
        %s376 = scalar_lea.sflag [#allocation4], %s375
        %s377 = sand.u32 %s191, 1
        %s378 = smul.addr %s377, 32
        %s379 = scalar_lea.vmem [#allocation11], %s378
        %s380 = smul.u32 2, %s26
        %s381 = smul.u32 2, %s26
        %s382 = smul.u32 2, %s26
        %v383 = vld [vmem:[%s323] sm:$0xff]
        %v384 = vld [vmem:[%s323 + $0x8] sm:$0xff]
        %v385 = vld [vmem:[%s323 + $0x10] sm:$0xff]
        %v386 = vld [vmem:[%s323 + $0x18] sm:$0xff]
        %v387 = vld [vmem:[#allocation5] sm:$0xff]
        %v388 = vld [vmem:[#allocation5 + $0x8] sm:$0xff]
        %v389 = vld [vmem:[#allocation5 + $0x10] sm:$0xff]
        %v390 = vld [vmem:[#allocation5 + $0x18] sm:$0xff]
        %v391 = vld [vmem:[#allocation5 + $0x20] sm:$0xff]
        %v392 = vld [vmem:[#allocation5 + $0x28] sm:$0xff]
        %v393 = vld [vmem:[#allocation5 + $0x30] sm:$0xff]
        %v394 = vld [vmem:[#allocation5 + $0x38] sm:$0xff]
        %v395 = vld [vmem:[#allocation5 + $0x40] sm:$0xff]
        %v396 = vld [vmem:[#allocation5 + $0x48] sm:$0xff]
        %v397 = vld [vmem:[#allocation5 + $0x50] sm:$0xff]
        %v398 = vld [vmem:[#allocation5 + $0x58] sm:$0xff]
        %v399 = vld [vmem:[#allocation5 + $0x60] sm:$0xff]
        %v400 = vld [vmem:[#allocation5 + $0x68] sm:$0xff]
        %v401 = vld [vmem:[#allocation5 + $0x70] sm:$0xff]
        %v402 = vld [vmem:[#allocation5 + $0x78] sm:$0xff]
        %v403 = vld [vmem:[#allocation5 + $0x80] sm:$0xff]
        %v404 = vld [vmem:[#allocation5 + $0x88] sm:$0xff]
        %v405 = vld [vmem:[#allocation5 + $0x90] sm:$0xff]
        %v406 = vld [vmem:[#allocation5 + $0x98] sm:$0xff]
        %v407 = vld [vmem:[#allocation5 + $0xa0] sm:$0xff]
        %v408 = vld [vmem:[#allocation5 + $0xa8] sm:$0xff]
        %v409 = vld [vmem:[#allocation5 + $0xb0] sm:$0xff]
        %v410 = vld [vmem:[#allocation5 + $0xb8] sm:$0xff]
        %v411 = vld [vmem:[#allocation5 + $0xc0] sm:$0xff]
        %v412 = vld [vmem:[#allocation5 + $0xc8] sm:$0xff]
        %v413 = vld [vmem:[#allocation5 + $0xd0] sm:$0xff]
        %v414 = vld [vmem:[#allocation5 + $0xd8] sm:$0xff]
        %v415 = vld [vmem:[#allocation5 + $0xe0] sm:$0xff]
        %v416 = vld [vmem:[#allocation5 + $0xe8] sm:$0xff]
        %v417 = vld [vmem:[#allocation5 + $0xf0] sm:$0xff]
        %v418 = vld [vmem:[#allocation5 + $0xf8] sm:$0xff]
        %v419 = vld [vmem:[#allocation5 + $0x100] sm:$0xff]
        %v420 = vld [vmem:[#allocation5 + $0x108] sm:$0xff]
        %v421 = vld [vmem:[#allocation5 + $0x110] sm:$0xff]
        %v422 = vld [vmem:[#allocation5 + $0x118] sm:$0xff]
        %v423 = vld [vmem:[#allocation5 + $0x120] sm:$0xff]
        %v424 = vld [vmem:[#allocation5 + $0x128] sm:$0xff]
        %v425 = vld [vmem:[#allocation5 + $0x130] sm:$0xff]
        %v426 = vld [vmem:[#allocation5 + $0x138] sm:$0xff]
        %v427 = vld [vmem:[#allocation5 + $0x140] sm:$0xff]
        %v428 = vld [vmem:[#allocation5 + $0x148] sm:$0xff]
        %v429 = vld [vmem:[#allocation5 + $0x150] sm:$0xff]
        %v430 = vld [vmem:[#allocation5 + $0x158] sm:$0xff]
        %v431 = vld [vmem:[#allocation5 + $0x160] sm:$0xff]
        %v432 = vld [vmem:[#allocation5 + $0x168] sm:$0xff]
        %v433 = vld [vmem:[#allocation5 + $0x170] sm:$0xff]
        %v434 = vld [vmem:[#allocation5 + $0x178] sm:$0xff]
        %v435 = vld [vmem:[%s2] sm:$0x7]
        %v437 = vlaneseq
        %v438 = vshrl.u32 %v437, 7
        %v439 = vsub.s32 0, %v438
        %v440 = vrot.slane %v435, %v439
        %v441 = vlaneseq
        %v442 = vshrl.u32 %v441, 7
        %v443 = vsub.s32 1, %v442
        %v444 = vrot.slane %v435, %v443
        %v445 = vlaneseq
        %v446 = vshrl.u32 %v445, 7
        %v447 = vsub.s32 2, %v446
        %v448 = vrot.slane %v435, %v447
        %452 = vmatprep.subr.mxu0 %v388
        %453 = vmatpush1.msra.mxu0 %v387
        %454 = vmatprep.subr.mxu0 %v391
        %455 = vmatpush1.msra.mxu0 %v390
        %456 = vmatprep.subr.mxu0 %v394
        %457 = vmatpush1.msra.mxu0 %v393
        %458 = vmatprep.subr.mxu0 %v397
        %459 = vmatpush1.msra.mxu0 %v396
        %460 = vmatprep.subr.mxu0 %v400
        %461 = vmatpush1.msra.mxu0 %v399
        %462 = vmatprep.subr.mxu0 %v403
        %463 = vmatpush1.msra.mxu0 %v402
        %464 = vmatprep.subr.mxu0 %v406
        %465 = vmatpush1.msra.mxu0 %v405
        %466 = vmatprep.subr.mxu0 %v409
        %467 = vmatpush1.msra.mxu0 %v408
        %468 = vmatprep.subr.mxu0 %v412
        %469 = vmatpush1.msra.mxu0 %v411
        %470 = vmatprep.subr.mxu0 %v415
        %471 = vmatpush1.msra.mxu0 %v414
        %472 = vmatprep.subr.mxu0 %v418
        %473 = vmatpush1.msra.mxu0 %v417
        %474 = vmatprep.subr.mxu0 %v421
        %475 = vmatpush1.msra.mxu0 %v420
        %476 = vmatprep.subr.mxu0 %v424
        %477 = vmatpush1.msra.mxu0 %v423
        %478 = vmatprep.subr.mxu0 %v427
        %479 = vmatpush1.msra.mxu0 %v426
        %480 = vmatprep.subr.mxu0 %v430
        %481 = vmatpush1.msra.mxu0 %v429
        %482 = vmatprep.subr.mxu0 %v433
        %483 = vmatpush1.msra.mxu0 %v432
        %484 = vmatprep.subr.mxu0 0.0
        %485 = vmatpush1.msra.mxu0 0.0
        %486 = vmatprep.subr.mxu0 0.0
        %487 = vmatpush1.msra.mxu0 0.0
        %488 = vmatprep.subr.mxu0 0.0
        %489 = vmatpush1.msra.mxu0 0.0
        %490 = vmatprep.subr.mxu0 0.0
        %491 = vmatpush1.msra.mxu0 0.0
        %492 = vmatprep.subr.mxu0 0.0
        %493 = vmatpush1.msra.mxu0 0.0
        %494 = vmatprep.subr.mxu0 0.0
        %495 = vmatpush1.msra.mxu0 0.0
        %496 = vmatprep.subr.mxu0 0.0
        %497 = vmatpush1.msra.mxu0 0.0
        %498 = vmatprep.subr.mxu0 0.0
        %499 = vmatpush1.msra.mxu0 0.0
        %500 = vmatprep.subr.mxu0 0.0
        %501 = vmatpush1.msra.mxu0 0.0
        %502 = vmatprep.subr.mxu0 0.0
        %503 = vmatpush1.msra.mxu0 0.0
        %504 = vmatprep.subr.mxu0 0.0
        %505 = vmatpush1.msra.mxu0 0.0
        %506 = vmatprep.subr.mxu0 0.0
        %507 = vmatpush1.msra.mxu0 0.0
        %508 = vmatprep.subr.mxu0 0.0
        %509 = vmatpush1.msra.mxu0 0.0
        %510 = vmatprep.subr.mxu0 0.0
        %511 = vmatpush1.msra.mxu0 0.0
        %512 = vmatprep.subr.mxu0 0.0
        %513 = vmatpush1.msra.mxu0 0.0
        %514 = vmatprep.subr.mxu0 0.0
        %515 = vmatpush1.msra.mxu0 0.0
        %516 = vmatprep.mubr.f32.mxu0 0.0
        %517 = vmatmul.mubr.f32.gmra.mrb[0].mxu0 %v383
        %v518 = vpop.f32.mrb[0].mxu0
        %v519 = vadd.f32 %v440, %v518
        %v520 = vpop.f32.mrb[0].mxu0
        %v521 = vadd.f32 %v444, %v520
        %522 = vmatprep.mubr.f32.mxu0 0.0
        %523 = vmatmul.mubr.f32.gmra.mrb[0].mxu0 %v384
        %v524 = vpop.f32.mrb[0].mxu0
        %v525 = vadd.f32 %v440, %v524
        %v526 = vpop.f32.mrb[0].mxu0
        %v527 = vadd.f32 %v444, %v526
        %528 = vmatprep.mubr.f32.mxu0 0.0
        %529 = vmatmul.mubr.f32.gmra.mrb[0].mxu0 %v385
        %v530 = vpop.f32.mrb[0].mxu0
        %v531 = vadd.f32 %v440, %v530
        %v532 = vpop.f32.mrb[0].mxu0
        %v533 = vadd.f32 %v444, %v532
        %534 = vmatprep.mubr.f32.mxu0 0.0
        %535 = vmatmul.mubr.f32.gmra.mrb[0].mxu0 %v386
        %v536 = vpop.f32.mrb[0].mxu0
        %v537 = vadd.f32 %v440, %v536
        %v538 = vpop.f32.mrb[0].mxu0
        %v539 = vadd.f32 %v444, %v538
        %540 = vdwg.mxu0
        %541 = vmatprep.subr.mxu0 0.0
        %542 = vmatpush1.msra.mxu0 %v389
        %543 = vmatprep.subr.mxu0 0.0
        %544 = vmatpush1.msra.mxu0 %v392
        %545 = vmatprep.subr.mxu0 0.0
        %546 = vmatpush1.msra.mxu0 %v395
        %547 = vmatprep.subr.mxu0 0.0
        %548 = vmatpush1.msra.mxu0 %v398
        %549 = vmatprep.subr.mxu0 0.0
        %550 = vmatpush1.msra.mxu0 %v401
        %551 = vmatprep.subr.mxu0 0.0
        %552 = vmatpush1.msra.mxu0 %v404
        %553 = vmatprep.subr.mxu0 0.0
        %554 = vmatpush1.msra.mxu0 %v407
        %555 = vmatprep.subr.mxu0 0.0
        %556 = vmatpush1.msra.mxu0 %v410
        %557 = vmatprep.subr.mxu0 0.0
        %558 = vmatpush1.msra.mxu0 %v413
        %559 = vmatprep.subr.mxu0 0.0
        %560 = vmatpush1.msra.mxu0 %v416
        %561 = vmatprep.subr.mxu0 0.0
        %562 = vmatpush1.msra.mxu0 %v419
        %563 = vmatprep.subr.mxu0 0.0
        %564 = vmatpush1.msra.mxu0 %v422
        %565 = vmatprep.subr.mxu0 0.0
        %566 = vmatpush1.msra.mxu0 %v425
        %567 = vmatprep.subr.mxu0 0.0
        %568 = vmatpush1.msra.mxu0 %v428
        %569 = vmatprep.subr.mxu0 0.0
        %570 = vmatpush1.msra.mxu0 %v431
        %571 = vmatprep.subr.mxu0 0.0
        %572 = vmatpush1.msra.mxu0 %v434
        %573 = vmatprep.subr.mxu0 0.0
        %574 = vmatpush1.msra.mxu0 0.0
        %575 = vmatprep.subr.mxu0 0.0
        %576 = vmatpush1.msra.mxu0 0.0
        %577 = vmatprep.subr.mxu0 0.0
        %578 = vmatpush1.msra.mxu0 0.0
        %579 = vmatprep.subr.mxu0 0.0
        %580 = vmatpush1.msra.mxu0 0.0
        %581 = vmatprep.subr.mxu0 0.0
        %582 = vmatpush1.msra.mxu0 0.0
        %583 = vmatprep.subr.mxu0 0.0
        %584 = vmatpush1.msra.mxu0 0.0
        %585 = vmatprep.subr.mxu0 0.0
        %586 = vmatpush1.msra.mxu0 0.0
        %587 = vmatprep.subr.mxu0 0.0
        %588 = vmatpush1.msra.mxu0 0.0
        %589 = vmatprep.subr.mxu0 0.0
        %590 = vmatpush1.msra.mxu0 0.0
        %591 = vmatprep.subr.mxu0 0.0
        %592 = vmatpush1.msra.mxu0 0.0
        %593 = vmatprep.subr.mxu0 0.0
        %594 = vmatpush1.msra.mxu0 0.0
        %595 = vmatprep.subr.mxu0 0.0
        %596 = vmatpush1.msra.mxu0 0.0
        %597 = vmatprep.subr.mxu0 0.0
        %598 = vmatpush1.msra.mxu0 0.0
        %599 = vmatprep.subr.mxu0 0.0
        %600 = vmatpush1.msra.mxu0 0.0
        %601 = vmatprep.subr.mxu0 0.0
        %602 = vmatpush1.msra.mxu0 0.0
        %603 = vmatprep.subr.mxu0 0.0
        %604 = vmatpush1.msra.mxu0 0.0
        %605 = vmatprep.mubr.f32.mxu0 0.0
        %606 = vmatmul.mubr.f32.gmra.mrb[0].mxu0 %v383
        %v607 = vpop.f32.mrb[0].mxu0
        %v608 = vadd.f32 %v448, %v607
        %v609 = vpop.f32.mrb[0].mxu0
        %610 = vmatprep.mubr.f32.mxu0 0.0
        %611 = vmatmul.mubr.f32.gmra.mrb[0].mxu0 %v384
        %v612 = vpop.f32.mrb[0].mxu0
        %v613 = vadd.f32 %v448, %v612
        %v614 = vpop.f32.mrb[0].mxu0
        %615 = vmatprep.mubr.f32.mxu0 0.0
        %616 = vmatmul.mubr.f32.gmra.mrb[0].mxu0 %v385
        %v617 = vpop.f32.mrb[0].mxu0
        %v618 = vadd.f32 %v448, %v617
        %v619 = vpop.f32.mrb[0].mxu0
        %620 = vmatprep.mubr.f32.mxu0 0.0
        %621 = vmatmul.mubr.f32.gmra.mrb[0].mxu0 %v386
        %v622 = vpop.f32.mrb[0].mxu0
        %v623 = vadd.f32 %v448, %v622
        %v624 = vpop.f32.mrb[0].mxu0
        %625 = vdwg.mxu0
        %v626 = vld [vmem:[%s344] sm:$0xff]
        %v627 = vld [vmem:[%s344 + $0x8] sm:$0xff]
        %v628 = vld [vmem:[%s344 + $0x10] sm:$0xff]
        %v629 = vld [vmem:[%s344 + $0x18] sm:$0xff]
        %v630 = vld [vmem:[#allocation8] sm:$0xff]
        %v631 = vld [vmem:[#allocation8 + $0x8] sm:$0xff]
        %v632 = vld [vmem:[#allocation8 + $0x10] sm:$0xff]
        %v633 = vld [vmem:[#allocation8 + $0x18] sm:$0xff]
        %v634 = vld [vmem:[#allocation8 + $0x20] sm:$0xff]
        %v635 = vld [vmem:[#allocation8 + $0x28] sm:$0xff]
        %v636 = vld [vmem:[#allocation8 + $0x30] sm:$0xff]
        %v637 = vld [vmem:[#allocation8 + $0x38] sm:$0xff]
        %v638 = vld [vmem:[#allocation8 + $0x40] sm:$0xff]
        %v639 = vld [vmem:[#allocation8 + $0x48] sm:$0xff]
        %v640 = vld [vmem:[#allocation8 + $0x50] sm:$0xff]
        %v641 = vld [vmem:[#allocation8 + $0x58] sm:$0xff]
        %v642 = vld [vmem:[#allocation8 + $0x60] sm:$0xff]
        %v643 = vld [vmem:[#allocation8 + $0x68] sm:$0xff]
        %v644 = vld [vmem:[#allocation8 + $0x70] sm:$0xff]
        %v645 = vld [vmem:[#allocation8 + $0x78] sm:$0xff]
        %v646 = vld [vmem:[#allocation7] sm:$0xff]
        %v647 = vld [vmem:[#allocation7 + $0x8] sm:$0xff]
        %vm648 = vcmask 261120
        %v650 = vsel %vm648, %v519, 0
        %v653 = vsel %vm648, %v525, 0
        %v656 = vsel %vm648, %v521, 0
        %v659 = vsel %vm648, %v527, 0
        %661 = vmatprep.subr.mxu0 0.0
        %662 = vmatpush1.xpose.msra.mxu0 %v656
        %663 = vmatprep.subr.mxu0 0.0
        %664 = vmatpush1.xpose.msra.mxu0 %v659
        %665 = vmatprep.subr.mxu0 0.0
        %666 = vmatpush1.xpose.msra.mxu0 0.0
        %667 = vmatprep.subr.mxu0 0.0
        %668 = vmatpush1.xpose.msra.mxu0 0.0
        %669 = vmatprep.subr.mxu0 0.0
        %670 = vmatpush1.xpose.msra.mxu0 0.0
        %671 = vmatprep.subr.mxu0 0.0
        %672 = vmatpush1.xpose.msra.mxu0 0.0
        %673 = vmatprep.subr.mxu0 0.0
        %674 = vmatpush1.xpose.msra.mxu0 0.0
        %675 = vmatprep.subr.mxu0 0.0
        %676 = vmatpush1.xpose.msra.mxu0 0.0
        %677 = vmatprep.subr.mxu0 0.0
        %678 = vmatpush1.xpose.msra.mxu0 0.0
        %679 = vmatprep.subr.mxu0 0.0
        %680 = vmatpush1.xpose.msra.mxu0 0.0
        %681 = vmatprep.subr.mxu0 0.0
        %682 = vmatpush1.xpose.msra.mxu0 0.0
        %683 = vmatprep.subr.mxu0 0.0
        %684 = vmatpush1.xpose.msra.mxu0 0.0
        %685 = vmatprep.subr.mxu0 0.0
        %686 = vmatpush1.xpose.msra.mxu0 0.0
        %687 = vmatprep.subr.mxu0 0.0
        %688 = vmatpush1.xpose.msra.mxu0 0.0
        %689 = vmatprep.subr.mxu0 0.0
        %690 = vmatpush1.xpose.msra.mxu0 0.0
        %691 = vmatprep.subr.mxu0 0.0
        %692 = vmatpush1.xpose.msra.mxu0 0.0
        %693 = vmatprep.subr.mxu0 0.0
        %694 = vmatpush1.xpose.msra.mxu0 0.0
        %695 = vmatprep.subr.mxu0 0.0
        %696 = vmatpush1.xpose.msra.mxu0 0.0
        %697 = vmatprep.subr.mxu0 0.0
        %698 = vmatpush1.xpose.msra.mxu0 0.0
        %699 = vmatprep.subr.mxu0 0.0
        %700 = vmatpush1.xpose.msra.mxu0 0.0
        %701 = vmatprep.subr.mxu0 0.0
        %702 = vmatpush1.xpose.msra.mxu0 0.0
        %703 = vmatprep.subr.mxu0 0.0
        %704 = vmatpush1.xpose.msra.mxu0 0.0
        %705 = vmatprep.subr.mxu0 0.0
        %706 = vmatpush1.xpose.msra.mxu0 0.0
        %707 = vmatprep.subr.mxu0 0.0
        %708 = vmatpush1.xpose.msra.mxu0 0.0
        %709 = vmatprep.subr.mxu0 0.0
        %710 = vmatpush1.xpose.msra.mxu0 0.0
        %711 = vmatprep.subr.mxu0 0.0
        %712 = vmatpush1.xpose.msra.mxu0 0.0
        %713 = vmatprep.subr.mxu0 0.0
        %714 = vmatpush1.xpose.msra.mxu0 0.0
        %715 = vmatprep.subr.mxu0 0.0
        %716 = vmatpush1.xpose.msra.mxu0 0.0
        %717 = vmatprep.subr.mxu0 0.0
        %718 = vmatpush1.xpose.msra.mxu0 0.0
        %719 = vmatprep.subr.mxu0 0.0
        %720 = vmatpush1.xpose.msra.mxu0 0.0
        %721 = vmatprep.subr.mxu0 0.0
        %722 = vmatpush1.xpose.msra.mxu0 0.0
        %723 = vmatprep.subr.mxu0 0.0
        %724 = vmatpush1.xpose.msra.mxu0 0.0
        %725 = vmatprep.mubr.f32.mxu0 0.0
        %726 = vmatmul.mubr.f32.gmra.mrb[0].mxu0 %v650
        %v727 = vpop.f32.mrb[0].mxu0
        %v728 = vadd.f32 %v646, %v727
        %v729 = vpop.f32.mrb[0].mxu0
        %730 = vmatprep.mubr.f32.mxu0 0.0
        %731 = vmatmul.mubr.f32.gmra.mrb[0].mxu0 %v653
        %v732 = vpop.f32.mrb[0].mxu0
        %v733 = vadd.f32 %v647, %v732
        %v734 = vpop.f32.mrb[0].mxu0
        %735 = vdwg.mxu0
        %v737 = vsel %vm648, %v531, 0
        %v740 = vsel %vm648, %v537, 0
        %v743 = vsel %vm648, %v533, 0
        %v746 = vsel %vm648, %v539, 0
        %748 = vmatprep.subr.mxu0 0.0
        %749 = vmatpush1.xpose.msra.mxu0 %v743
        %750 = vmatprep.subr.mxu0 0.0
        %751 = vmatpush1.xpose.msra.mxu0 %v746
        %752 = vmatprep.subr.mxu0 0.0
        %753 = vmatpush1.xpose.msra.mxu0 0.0
        %754 = vmatprep.subr.mxu0 0.0
        %755 = vmatpush1.xpose.msra.mxu0 0.0
        %756 = vmatprep.subr.mxu0 0.0
        %757 = vmatpush1.xpose.msra.mxu0 0.0
        %758 = vmatprep.subr.mxu0 0.0
        %759 = vmatpush1.xpose.msra.mxu0 0.0
        %760 = vmatprep.subr.mxu0 0.0
        %761 = vmatpush1.xpose.msra.mxu0 0.0
        %762 = vmatprep.subr.mxu0 0.0
        %763 = vmatpush1.xpose.msra.mxu0 0.0
        %764 = vmatprep.subr.mxu0 0.0
        %765 = vmatpush1.xpose.msra.mxu0 0.0
        %766 = vmatprep.subr.mxu0 0.0
        %767 = vmatpush1.xpose.msra.mxu0 0.0
        %768 = vmatprep.subr.mxu0 0.0
        %769 = vmatpush1.xpose.msra.mxu0 0.0
        %770 = vmatprep.subr.mxu0 0.0
        %771 = vmatpush1.xpose.msra.mxu0 0.0
        %772 = vmatprep.subr.mxu0 0.0
        %773 = vmatpush1.xpose.msra.mxu0 0.0
        %774 = vmatprep.subr.mxu0 0.0
        %775 = vmatpush1.xpose.msra.mxu0 0.0
        %776 = vmatprep.subr.mxu0 0.0
        %777 = vmatpush1.xpose.msra.mxu0 0.0
        %778 = vmatprep.subr.mxu0 0.0
        %779 = vmatpush1.xpose.msra.mxu0 0.0
        %780 = vmatprep.subr.mxu0 0.0
        %781 = vmatpush1.xpose.msra.mxu0 0.0
        %782 = vmatprep.subr.mxu0 0.0
        %783 = vmatpush1.xpose.msra.mxu0 0.0
        %784 = vmatprep.subr.mxu0 0.0
        %785 = vmatpush1.xpose.msra.mxu0 0.0
        %786 = vmatprep.subr.mxu0 0.0
        %787 = vmatpush1.xpose.msra.mxu0 0.0
        %788 = vmatprep.subr.mxu0 0.0
        %789 = vmatpush1.xpose.msra.mxu0 0.0
        %790 = vmatprep.subr.mxu0 0.0
        %791 = vmatpush1.xpose.msra.mxu0 0.0
        %792 = vmatprep.subr.mxu0 0.0
        %793 = vmatpush1.xpose.msra.mxu0 0.0
        %794 = vmatprep.subr.mxu0 0.0
        %795 = vmatpush1.xpose.msra.mxu0 0.0
        %796 = vmatprep.subr.mxu0 0.0
        %797 = vmatpush1.xpose.msra.mxu0 0.0
        %798 = vmatprep.subr.mxu0 0.0
        %799 = vmatpush1.xpose.msra.mxu0 0.0
        %800 = vmatprep.subr.mxu0 0.0
        %801 = vmatpush1.xpose.msra.mxu0 0.0
        %802 = vmatprep.subr.mxu0 0.0
        %803 = vmatpush1.xpose.msra.mxu0 0.0
        %804 = vmatprep.subr.mxu0 0.0
        %805 = vmatpush1.xpose.msra.mxu0 0.0
        %806 = vmatprep.subr.mxu0 0.0
        %807 = vmatpush1.xpose.msra.mxu0 0.0
        %808 = vmatprep.subr.mxu0 0.0
        %809 = vmatpush1.xpose.msra.mxu0 0.0
        %810 = vmatprep.subr.mxu0 0.0
        %811 = vmatpush1.xpose.msra.mxu0 0.0
        %812 = vmatprep.mubr.f32.mxu0 0.0
        %813 = vmatmul.mubr.f32.gmra.mrb[0].mxu0 %v737
        %v814 = vpop.f32.mrb[0].mxu0
        %v815 = vadd.f32 %v646, %v814
        %v816 = vpop.f32.mrb[0].mxu0
        %817 = vmatprep.mubr.f32.mxu0 0.0
        %818 = vmatmul.mubr.f32.gmra.mrb[0].mxu0 %v740
        %v819 = vpop.f32.mrb[0].mxu0
        %v820 = vadd.f32 %v647, %v819
        %v821 = vpop.f32.mrb[0].mxu0
        %822 = vdwg.mxu0
        %vm823 = vcmask 130048
        %v824 = vsel %vm823, %v728, -inf
        %825 = vmax.xlane.f32.xlu0 %v824
        %v826 = vpop.xlane.xlu0 %825
        %v827 = vsel %vm823, %v733, -inf
        %828 = vmax.xlane.f32.xlu0 %v827
        %v829 = vpop.xlane.xlu0 %828
        %v830 = vsel %vm823, %v815, -inf
        %831 = vmax.xlane.f32.xlu0 %v830
        %v832 = vpop.xlane.xlu0 %831
        %v833 = vsel %vm823, %v820, -inf
        %834 = vmax.xlane.f32.xlu0 %v833
        %v835 = vpop.xlane.xlu0 %834
        %v836 = vsub.f32 %v728, %v826
        %v837 = vsub.f32 %v733, %v829
        %v838 = vsub.f32 %v815, %v832
        %v839 = vsub.f32 %v820, %v835
        %v840 = vmul.f32 %v836, 1.442695
        %v841 = vpow.pop %v840
        %v842 = vmul.f32 %v837, 1.442695
        %v843 = vpow.pop %v842
        %v844 = vmul.f32 %v838, 1.442695
        %v845 = vpow.pop %v844
        %v846 = vmul.f32 %v839, 1.442695
        %v847 = vpow.pop %v846
        %v848 = vsel %vm823, %v841, 0.0
        %849 = vadd.xlane.f32.xlu0 %v848
        %v850 = vpop.xlane.xlu0 %849
        %v851 = vsel %vm823, %v843, 0.0
        %852 = vadd.xlane.f32.xlu0 %v851
        %v853 = vpop.xlane.xlu0 %852
        %v854 = vsel %vm823, %v845, 0.0
        %855 = vadd.xlane.f32.xlu0 %v854
        %v856 = vpop.xlane.xlu0 %855
        %v857 = vsel %vm823, %v847, 0.0
        %858 = vadd.xlane.f32.xlu0 %v857
        %v859 = vpop.xlane.xlu0 %858
        %v860 = vrcp.pop %v850
        %v861 = vrcp.pop %v853
        %v862 = vrcp.pop %v856
        %v863 = vrcp.pop %v859
        %v864 = vmul.f32 %v841, %v860
        %v865 = vmul.f32 %v843, %v861
        %v866 = vmul.f32 %v845, %v862
        %v867 = vmul.f32 %v847, %v863
        %v869 = vsel %vm823, %v864, 0
        %v872 = vsel %vm823, %v865, 0
        %874 = vmatprep.subr.mxu0 0.0
        %875 = vmatpush1.msra.mxu0 %v608
        %876 = vmatprep.subr.mxu0 0.0
        %877 = vmatpush1.msra.mxu0 %v613
        %878 = vmatprep.subr.mxu0 0.0
        %879 = vmatpush1.msra.mxu0 0.0
        %880 = vmatprep.subr.mxu0 0.0
        %881 = vmatpush1.msra.mxu0 0.0
        %882 = vmatprep.subr.mxu0 0.0
        %883 = vmatpush1.msra.mxu0 0.0
        %884 = vmatprep.subr.mxu0 0.0
        %885 = vmatpush1.msra.mxu0 0.0
        %886 = vmatprep.subr.mxu0 0.0
        %887 = vmatpush1.msra.mxu0 0.0
        %888 = vmatprep.subr.mxu0 0.0
        %889 = vmatpush1.msra.mxu0 0.0
        %890 = vmatprep.subr.mxu0 0.0
        %891 = vmatpush1.msra.mxu0 0.0
        %892 = vmatprep.subr.mxu0 0.0
        %893 = vmatpush1.msra.mxu0 0.0
        %894 = vmatprep.subr.mxu0 0.0
        %895 = vmatpush1.msra.mxu0 0.0
        %896 = vmatprep.subr.mxu0 0.0
        %897 = vmatpush1.msra.mxu0 0.0
        %898 = vmatprep.subr.mxu0 0.0
        %899 = vmatpush1.msra.mxu0 0.0
        %900 = vmatprep.subr.mxu0 0.0
        %901 = vmatpush1.msra.mxu0 0.0
        %902 = vmatprep.subr.mxu0 0.0
        %903 = vmatpush1.msra.mxu0 0.0
        %904 = vmatprep.subr.mxu0 0.0
        %905 = vmatpush1.msra.mxu0 0.0
        %906 = vmatprep.subr.mxu0 0.0
        %907 = vmatpush1.msra.mxu0 0.0
        %908 = vmatprep.subr.mxu0 0.0
        %909 = vmatpush1.msra.mxu0 0.0
        %910 = vmatprep.subr.mxu0 0.0
        %911 = vmatpush1.msra.mxu0 0.0
        %912 = vmatprep.subr.mxu0 0.0
        %913 = vmatpush1.msra.mxu0 0.0
        %914 = vmatprep.subr.mxu0 0.0
        %915 = vmatpush1.msra.mxu0 0.0
        %916 = vmatprep.subr.mxu0 0.0
        %917 = vmatpush1.msra.mxu0 0.0
        %918 = vmatprep.subr.mxu0 0.0
        %919 = vmatpush1.msra.mxu0 0.0
        %920 = vmatprep.subr.mxu0 0.0
        %921 = vmatpush1.msra.mxu0 0.0
        %922 = vmatprep.subr.mxu0 0.0
        %923 = vmatpush1.msra.mxu0 0.0
        %924 = vmatprep.subr.mxu0 0.0
        %925 = vmatpush1.msra.mxu0 0.0
        %926 = vmatprep.subr.mxu0 0.0
        %927 = vmatpush1.msra.mxu0 0.0
        %928 = vmatprep.subr.mxu0 0.0
        %929 = vmatpush1.msra.mxu0 0.0
        %930 = vmatprep.subr.mxu0 0.0
        %931 = vmatpush1.msra.mxu0 0.0
        %932 = vmatprep.subr.mxu0 0.0
        %933 = vmatpush1.msra.mxu0 0.0
        %934 = vmatprep.subr.mxu0 0.0
        %935 = vmatpush1.msra.mxu0 0.0
        %936 = vmatprep.subr.mxu0 0.0
        %937 = vmatpush1.msra.mxu0 0.0
        %938 = vmatprep.mubr.f32.mxu0 0.0
        %939 = vmatmul.mubr.f32.gmra.mrb[0].mxu0 %v869
        %v940 = vpop.f32.mrb[0].mxu0
        %v941 = vadd.f32 0.0, %v940
        %v942 = vpop.f32.mrb[0].mxu0
        %943 = vmatprep.mubr.f32.mxu0 0.0
        %944 = vmatmul.mubr.f32.gmra.mrb[0].mxu0 %v872
        %v945 = vpop.f32.mrb[0].mxu0
        %v946 = vadd.f32 0.0, %v945
        %v947 = vpop.f32.mrb[0].mxu0
        %948 = vdwg.mxu0
        %v950 = vsel %vm823, %v866, 0
        %v953 = vsel %vm823, %v867, 0
        %955 = vmatprep.subr.mxu0 0.0
        %956 = vmatpush1.msra.mxu0 %v618
        %957 = vmatprep.subr.mxu0 0.0
        %958 = vmatpush1.msra.mxu0 %v623
        %959 = vmatprep.subr.mxu0 0.0
        %960 = vmatpush1.msra.mxu0 0.0
        %961 = vmatprep.subr.mxu0 0.0
        %962 = vmatpush1.msra.mxu0 0.0
        %963 = vmatprep.subr.mxu0 0.0
        %964 = vmatpush1.msra.mxu0 0.0
        %965 = vmatprep.subr.mxu0 0.0
        %966 = vmatpush1.msra.mxu0 0.0
        %967 = vmatprep.subr.mxu0 0.0
        %968 = vmatpush1.msra.mxu0 0.0
        %969 = vmatprep.subr.mxu0 0.0
        %970 = vmatpush1.msra.mxu0 0.0
        %971 = vmatprep.subr.mxu0 0.0
        %972 = vmatpush1.msra.mxu0 0.0
        %973 = vmatprep.subr.mxu0 0.0
        %974 = vmatpush1.msra.mxu0 0.0
        %975 = vmatprep.subr.mxu0 0.0
        %976 = vmatpush1.msra.mxu0 0.0
        %977 = vmatprep.subr.mxu0 0.0
        %978 = vmatpush1.msra.mxu0 0.0
        %979 = vmatprep.subr.mxu0 0.0
        %980 = vmatpush1.msra.mxu0 0.0
        %981 = vmatprep.subr.mxu0 0.0
        %982 = vmatpush1.msra.mxu0 0.0
        %983 = vmatprep.subr.mxu0 0.0
        %984 = vmatpush1.msra.mxu0 0.0
        %985 = vmatprep.subr.mxu0 0.0
        %986 = vmatpush1.msra.mxu0 0.0
        %987 = vmatprep.subr.mxu0 0.0
        %988 = vmatpush1.msra.mxu0 0.0
        %989 = vmatprep.subr.mxu0 0.0
        %990 = vmatpush1.msra.mxu0 0.0
        %991 = vmatprep.subr.mxu0 0.0
        %992 = vmatpush1.msra.mxu0 0.0
        %993 = vmatprep.subr.mxu0 0.0
        %994 = vmatpush1.msra.mxu0 0.0
        %995 = vmatprep.subr.mxu0 0.0
        %996 = vmatpush1.msra.mxu0 0.0
        %997 = vmatprep.subr.mxu0 0.0
        %998 = vmatpush1.msra.mxu0 0.0
        %999 = vmatprep.subr.mxu0 0.0
        %1000 = vmatpush1.msra.mxu0 0.0
        %1001 = vmatprep.subr.mxu0 0.0
        %1002 = vmatpush1.msra.mxu0 0.0
        %1003 = vmatprep.subr.mxu0 0.0
        %1004 = vmatpush1.msra.mxu0 0.0
        %1005 = vmatprep.subr.mxu0 0.0
        %1006 = vmatpush1.msra.mxu0 0.0
        %1007 = vmatprep.subr.mxu0 0.0
        %1008 = vmatpush1.msra.mxu0 0.0
        %1009 = vmatprep.subr.mxu0 0.0
        %1010 = vmatpush1.msra.mxu0 0.0
        %1011 = vmatprep.subr.mxu0 0.0
        %1012 = vmatpush1.msra.mxu0 0.0
        %1013 = vmatprep.subr.mxu0 0.0
        %1014 = vmatpush1.msra.mxu0 0.0
        %1015 = vmatprep.subr.mxu0 0.0
        %1016 = vmatpush1.msra.mxu0 0.0
        %1017 = vmatprep.subr.mxu0 0.0
        %1018 = vmatpush1.msra.mxu0 0.0
        %1019 = vmatprep.mubr.f32.mxu0 0.0
        %1020 = vmatmul.mubr.f32.gmra.mrb[0].mxu0 %v950
        %v1021 = vpop.f32.mrb[0].mxu0
        %v1022 = vadd.f32 0.0, %v1021
        %v1023 = vpop.f32.mrb[0].mxu0
        %1024 = vmatprep.mubr.f32.mxu0 0.0
        %1025 = vmatmul.mubr.f32.gmra.mrb[0].mxu0 %v953
        %v1026 = vpop.f32.mrb[0].mxu0
        %v1027 = vadd.f32 0.0, %v1026
        %v1028 = vpop.f32.mrb[0].mxu0
        %1029 = vdwg.mxu0
        %v1030 = vld [vmem:[#allocation8] sm:$0xff]
        %v1031 = vld [vmem:[#allocation8 + $0x8] sm:$0xff]
        %v1032 = vld [vmem:[#allocation8 + $0x10] sm:$0xff]
        %v1033 = vld [vmem:[#allocation8 + $0x18] sm:$0xff]
        %v1035 = vsel %vm648, %v941, 0
        %v1038 = vsel %vm648, %v946, 0
        %v1041 = vsel %vm648, %v1022, 0
        %v1044 = vsel %vm648, %v1027, 0
        %1046 = vmatprep.subr.mxu0 0.0
        %1047 = vmatpush1.msra.mxu0 %v1030
        %1048 = vmatprep.subr.mxu0 0.0
        %1049 = vmatpush1.msra.mxu0 %v1031
        %1050 = vmatprep.subr.mxu0 0.0
        %1051 = vmatpush1.msra.mxu0 %v1032
        %1052 = vmatprep.subr.mxu0 0.0
        %1053 = vmatpush1.msra.mxu0 %v1033
        %1054 = vmatprep.subr.mxu0 0.0
        %1055 = vmatpush1.msra.mxu0 0.0
        %1056 = vmatprep.subr.mxu0 0.0
        %1057 = vmatpush1.msra.mxu0 0.0
        %1058 = vmatprep.subr.mxu0 0.0
        %1059 = vmatpush1.msra.mxu0 0.0
        %1060 = vmatprep.subr.mxu0 0.0
        %1061 = vmatpush1.msra.mxu0 0.0
        %1062 = vmatprep.subr.mxu0 0.0
        %1063 = vmatpush1.msra.mxu0 0.0
        %1064 = vmatprep.subr.mxu0 0.0
        %1065 = vmatpush1.msra.mxu0 0.0
        %1066 = vmatprep.subr.mxu0 0.0
        %1067 = vmatpush1.msra.mxu0 0.0
        %1068 = vmatprep.subr.mxu0 0.0
        %1069 = vmatpush1.msra.mxu0 0.0
        %1070 = vmatprep.subr.mxu0 0.0
        %1071 = vmatpush1.msra.mxu0 0.0
        %1072 = vmatprep.subr.mxu0 0.0
        %1073 = vmatpush1.msra.mxu0 0.0
        %1074 = vmatprep.subr.mxu0 0.0
        %1075 = vmatpush1.msra.mxu0 0.0
        %1076 = vmatprep.subr.mxu0 0.0
        %1077 = vmatpush1.msra.mxu0 0.0
        %1078 = vmatprep.subr.mxu0 0.0
        %1079 = vmatpush1.msra.mxu0 0.0
        %1080 = vmatprep.subr.mxu0 0.0
        %1081 = vmatpush1.msra.mxu0 0.0
        %1082 = vmatprep.subr.mxu0 0.0
        %1083 = vmatpush1.msra.mxu0 0.0
        %1084 = vmatprep.subr.mxu0 0.0
        %1085 = vmatpush1.msra.mxu0 0.0
        %1086 = vmatprep.subr.mxu0 0.0
        %1087 = vmatpush1.msra.mxu0 0.0
        %1088 = vmatprep.subr.mxu0 0.0
        %1089 = vmatpush1.msra.mxu0 0.0
        %1090 = vmatprep.subr.mxu0 0.0
        %1091 = vmatpush1.msra.mxu0 0.0
        %1092 = vmatprep.subr.mxu0 0.0
        %1093 = vmatpush1.msra.mxu0 0.0
        %1094 = vmatprep.subr.mxu0 0.0
        %1095 = vmatpush1.msra.mxu0 0.0
        %1096 = vmatprep.subr.mxu0 0.0
        %1097 = vmatpush1.msra.mxu0 0.0
        %1098 = vmatprep.subr.mxu0 0.0
        %1099 = vmatpush1.msra.mxu0 0.0
        %1100 = vmatprep.subr.mxu0 0.0
        %1101 = vmatpush1.msra.mxu0 0.0
        %1102 = vmatprep.subr.mxu0 0.0
        %1103 = vmatpush1.msra.mxu0 0.0
        %1104 = vmatprep.subr.mxu0 0.0
        %1105 = vmatpush1.msra.mxu0 0.0
        %1106 = vmatprep.subr.mxu0 0.0
        %1107 = vmatpush1.msra.mxu0 0.0
        %1108 = vmatprep.subr.mxu0 0.0
        %1109 = vmatpush1.msra.mxu0 0.0
        %1110 = vmatprep.mubr.f32.mxu0 0.0
        %1111 = vmatmul.mubr.f32.gmra.mrb[0].mxu0 %v1035
        %v1112 = vpop.f32.mrb[0].mxu0
        %v1113 = vadd.f32 0.0, %v1112
        %v1114 = vpop.f32.mrb[0].mxu0
        %1115 = vmatprep.mubr.f32.mxu0 0.0
        %1116 = vmatmul.mubr.f32.gmra.mrb[0].mxu0 %v1038
        %v1117 = vpop.f32.mrb[0].mxu0
        %v1118 = vadd.f32 0.0, %v1117
        %v1119 = vpop.f32.mrb[0].mxu0
        %1120 = vmatprep.mubr.f32.mxu0 0.0
        %1121 = vmatmul.mubr.f32.gmra.mrb[0].mxu0 %v1041
        %v1122 = vpop.f32.mrb[0].mxu0
        %v1123 = vadd.f32 0.0, %v1122
        %v1124 = vpop.f32.mrb[0].mxu0
        %1125 = vmatprep.mubr.f32.mxu0 0.0
        %1126 = vmatmul.mubr.f32.gmra.mrb[0].mxu0 %v1044
        %v1127 = vpop.f32.mrb[0].mxu0
        %v1128 = vadd.f32 0.0, %v1127
        %v1129 = vpop.f32.mrb[0].mxu0
        %1130 = vdwg.mxu0
        %1131 = vmatprep.subr.mxu0 0.0
        %1132 = vmatpush1.msra.mxu0 %v630
        %1133 = vmatprep.subr.mxu0 0.0
        %1134 = vmatpush1.msra.mxu0 %v631
        %1135 = vmatprep.subr.mxu0 0.0
        %1136 = vmatpush1.msra.mxu0 %v632
        %1137 = vmatprep.subr.mxu0 0.0
        %1138 = vmatpush1.msra.mxu0 %v633
        %1139 = vmatprep.subr.mxu0 0.0
        %1140 = vmatpush1.msra.mxu0 %v634
        %1141 = vmatprep.subr.mxu0 0.0
        %1142 = vmatpush1.msra.mxu0 %v635
        %1143 = vmatprep.subr.mxu0 0.0
        %1144 = vmatpush1.msra.mxu0 %v636
        %1145 = vmatprep.subr.mxu0 0.0
        %1146 = vmatpush1.msra.mxu0 %v637
        %1147 = vmatprep.subr.mxu0 0.0
        %1148 = vmatpush1.msra.mxu0 %v638
        %1149 = vmatprep.subr.mxu0 0.0
        %1150 = vmatpush1.msra.mxu0 %v639
        %1151 = vmatprep.subr.mxu0 0.0
        %1152 = vmatpush1.msra.mxu0 %v640
        %1153 = vmatprep.subr.mxu0 0.0
        %1154 = vmatpush1.msra.mxu0 %v641
        %1155 = vmatprep.subr.mxu0 0.0
        %1156 = vmatpush1.msra.mxu0 %v642
        %1157 = vmatprep.subr.mxu0 0.0
        %1158 = vmatpush1.msra.mxu0 %v643
        %1159 = vmatprep.subr.mxu0 0.0
        %1160 = vmatpush1.msra.mxu0 %v644
        %1161 = vmatprep.subr.mxu0 0.0
        %1162 = vmatpush1.msra.mxu0 %v645
        %1163 = vmatprep.subr.mxu0 0.0
        %1164 = vmatpush1.msra.mxu0 0.0
        %1165 = vmatprep.subr.mxu0 0.0
        %1166 = vmatpush1.msra.mxu0 0.0
        %1167 = vmatprep.subr.mxu0 0.0
        %1168 = vmatpush1.msra.mxu0 0.0
        %1169 = vmatprep.subr.mxu0 0.0
        %1170 = vmatpush1.msra.mxu0 0.0
        %1171 = vmatprep.subr.mxu0 0.0
        %1172 = vmatpush1.msra.mxu0 0.0
        %1173 = vmatprep.subr.mxu0 0.0
        %1174 = vmatpush1.msra.mxu0 0.0
        %1175 = vmatprep.subr.mxu0 0.0
        %1176 = vmatpush1.msra.mxu0 0.0
        %1177 = vmatprep.subr.mxu0 0.0
        %1178 = vmatpush1.msra.mxu0 0.0
        %1179 = vmatprep.subr.mxu0 0.0
        %1180 = vmatpush1.msra.mxu0 0.0
        %1181 = vmatprep.subr.mxu0 0.0
        %1182 = vmatpush1.msra.mxu0 0.0
        %1183 = vmatprep.subr.mxu0 0.0
        %1184 = vmatpush1.msra.mxu0 0.0
        %1185 = vmatprep.subr.mxu0 0.0
        %1186 = vmatpush1.msra.mxu0 0.0
        %1187 = vmatprep.subr.mxu0 0.0
        %1188 = vmatpush1.msra.mxu0 0.0
        %1189 = vmatprep.subr.mxu0 0.0
        %1190 = vmatpush1.msra.mxu0 0.0
        %1191 = vmatprep.subr.mxu0 0.0
        %1192 = vmatpush1.msra.mxu0 0.0
        %1193 = vmatprep.subr.mxu0 0.0
        %1194 = vmatpush1.msra.mxu0 0.0
        %1195 = vmatprep.mubr.f32.mxu0 0.0
        %1196 = vmatmul.mubr.f32.gmra.mrb[0].mxu0 %v626
        %v1197 = vpop.f32.mrb[0].mxu0
        %v1198 = vadd.f32 %v1113, %v1197
        %v1199 = vpop.f32.mrb[0].mxu0
        %1200 = vmatprep.mubr.f32.mxu0 0.0
        %1201 = vmatmul.mubr.f32.gmra.mrb[0].mxu0 %v627
        %v1202 = vpop.f32.mrb[0].mxu0
        %v1203 = vadd.f32 %v1118, %v1202
        %v1204 = vpop.f32.mrb[0].mxu0
        %1205 = vmatprep.mubr.f32.mxu0 0.0
        %1206 = vmatmul.mubr.f32.gmra.mrb[0].mxu0 %v628
        %v1207 = vpop.f32.mrb[0].mxu0
        %v1208 = vadd.f32 %v1123, %v1207
        %v1209 = vpop.f32.mrb[0].mxu0
        %1210 = vmatprep.mubr.f32.mxu0 0.0
        %1211 = vmatmul.mubr.f32.gmra.mrb[0].mxu0 %v629
        %v1212 = vpop.f32.mrb[0].mxu0
        %v1213 = vadd.f32 %v1128, %v1212
        %v1214 = vpop.f32.mrb[0].mxu0
        %1215 = vdwg.mxu0
        %s1216 = scalar_lea.vmem [#allocation7], 16
        %v1217 = vld [vmem:[%s1216] sm:$0xff]
        %v1218 = vld [vmem:[%s1216 + $0x8] sm:$0xff]
        %1219 = vrot.lane.b32.xlu0 %v519, 96
        %v1220 = vpop.permute.xlu0 %1219
        %1221 = vrot.lane.b32.xlu0 %v525, 96
        %v1222 = vpop.permute.xlu0 %1221
        %1223 = vrot.lane.b32.xlu0 %v521, 96
        %v1224 = vpop.permute.xlu0 %1223
        %1225 = vrot.lane.b32.xlu0 %v527, 96
        %v1226 = vpop.permute.xlu0 %1225
        %v1227 = vsel %vm648, %v1220, 0
        %v1229 = vsel %vm648, %v1222, 0
        %v1231 = vsel %vm648, %v1224, 0
        %v1233 = vsel %vm648, %v1226, 0
        %1235 = vmatprep.subr.mxu0 0.0
        %1236 = vmatpush1.xpose.msra.mxu0 %v1231
        %1237 = vmatprep.subr.mxu0 0.0
        %1238 = vmatpush1.xpose.msra.mxu0 %v1233
        %1239 = vmatprep.subr.mxu0 0.0
        %1240 = vmatpush1.xpose.msra.mxu0 0.0
        %1241 = vmatprep.subr.mxu0 0.0
        %1242 = vmatpush1.xpose.msra.mxu0 0.0
        %1243 = vmatprep.subr.mxu0 0.0
        %1244 = vmatpush1.xpose.msra.mxu0 0.0
        %1245 = vmatprep.subr.mxu0 0.0
        %1246 = vmatpush1.xpose.msra.mxu0 0.0
        %1247 = vmatprep.subr.mxu0 0.0
        %1248 = vmatpush1.xpose.msra.mxu0 0.0
        %1249 = vmatprep.subr.mxu0 0.0
        %1250 = vmatpush1.xpose.msra.mxu0 0.0
        %1251 = vmatprep.subr.mxu0 0.0
        %1252 = vmatpush1.xpose.msra.mxu0 0.0
        %1253 = vmatprep.subr.mxu0 0.0
        %1254 = vmatpush1.xpose.msra.mxu0 0.0
        %1255 = vmatprep.subr.mxu0 0.0
        %1256 = vmatpush1.xpose.msra.mxu0 0.0
        %1257 = vmatprep.subr.mxu0 0.0
        %1258 = vmatpush1.xpose.msra.mxu0 0.0
        %1259 = vmatprep.subr.mxu0 0.0
        %1260 = vmatpush1.xpose.msra.mxu0 0.0
        %1261 = vmatprep.subr.mxu0 0.0
        %1262 = vmatpush1.xpose.msra.mxu0 0.0
        %1263 = vmatprep.subr.mxu0 0.0
        %1264 = vmatpush1.xpose.msra.mxu0 0.0
        %1265 = vmatprep.subr.mxu0 0.0
        %1266 = vmatpush1.xpose.msra.mxu0 0.0
        %1267 = vmatprep.subr.mxu0 0.0
        %1268 = vmatpush1.xpose.msra.mxu0 0.0
        %1269 = vmatprep.subr.mxu0 0.0
        %1270 = vmatpush1.xpose.msra.mxu0 0.0
        %1271 = vmatprep.subr.mxu0 0.0
        %1272 = vmatpush1.xpose.msra.mxu0 0.0
        %1273 = vmatprep.subr.mxu0 0.0
        %1274 = vmatpush1.xpose.msra.mxu0 0.0
        %1275 = vmatprep.subr.mxu0 0.0
        %1276 = vmatpush1.xpose.msra.mxu0 0.0
        %1277 = vmatprep.subr.mxu0 0.0
        %1278 = vmatpush1.xpose.msra.mxu0 0.0
        %1279 = vmatprep.subr.mxu0 0.0
        %1280 = vmatpush1.xpose.msra.mxu0 0.0
        %1281 = vmatprep.subr.mxu0 0.0
        %1282 = vmatpush1.xpose.msra.mxu0 0.0
        %1283 = vmatprep.subr.mxu0 0.0
        %1284 = vmatpush1.xpose.msra.mxu0 0.0
        %1285 = vmatprep.subr.mxu0 0.0
        %1286 = vmatpush1.xpose.msra.mxu0 0.0
        %1287 = vmatprep.subr.mxu0 0.0
        %1288 = vmatpush1.xpose.msra.mxu0 0.0
        %1289 = vmatprep.subr.mxu0 0.0
        %1290 = vmatpush1.xpose.msra.mxu0 0.0
        %1291 = vmatprep.subr.mxu0 0.0
        %1292 = vmatpush1.xpose.msra.mxu0 0.0
        %1293 = vmatprep.subr.mxu0 0.0
        %1294 = vmatpush1.xpose.msra.mxu0 0.0
        %1295 = vmatprep.subr.mxu0 0.0
        %1296 = vmatpush1.xpose.msra.mxu0 0.0
        %1297 = vmatprep.subr.mxu0 0.0
        %1298 = vmatpush1.xpose.msra.mxu0 0.0
        %1299 = vmatprep.mubr.f32.mxu0 0.0
        %1300 = vmatmul.mubr.f32.gmra.mrb[0].mxu0 %v1227
        %v1301 = vpop.f32.mrb[0].mxu0
        %v1302 = vadd.f32 %v1217, %v1301
        %v1303 = vpop.f32.mrb[0].mxu0
        %1304 = vmatprep.mubr.f32.mxu0 0.0
        %1305 = vmatmul.mubr.f32.gmra.mrb[0].mxu0 %v1229
        %v1306 = vpop.f32.mrb[0].mxu0
        %v1307 = vadd.f32 %v1218, %v1306
        %v1308 = vpop.f32.mrb[0].mxu0
        %1309 = vdwg.mxu0
        %1310 = vrot.lane.b32.xlu0 %v531, 96
        %v1311 = vpop.permute.xlu0 %1310
        %1312 = vrot.lane.b32.xlu0 %v537, 96
        %v1313 = vpop.permute.xlu0 %1312
        %1314 = vrot.lane.b32.xlu0 %v533, 96
        %v1315 = vpop.permute.xlu0 %1314
        %1316 = vrot.lane.b32.xlu0 %v539, 96
        %v1317 = vpop.permute.xlu0 %1316
        %v1318 = vsel %vm648, %v1311, 0
        %v1320 = vsel %vm648, %v1313, 0
        %v1322 = vsel %vm648, %v1315, 0
        %v1324 = vsel %vm648, %v1317, 0
        %1326 = vmatprep.subr.mxu0 0.0
        %1327 = vmatpush1.xpose.msra.mxu0 %v1322
        %1328 = vmatprep.subr.mxu0 0.0
        %1329 = vmatpush1.xpose.msra.mxu0 %v1324
        %1330 = vmatprep.subr.mxu0 0.0
        %1331 = vmatpush1.xpose.msra.mxu0 0.0
        %1332 = vmatprep.subr.mxu0 0.0
        %1333 = vmatpush1.xpose.msra.mxu0 0.0
        %1334 = vmatprep.subr.mxu0 0.0
        %1335 = vmatpush1.xpose.msra.mxu0 0.0
        %1336 = vmatprep.subr.mxu0 0.0
        %1337 = vmatpush1.xpose.msra.mxu0 0.0
        %1338 = vmatprep.subr.mxu0 0.0
        %1339 = vmatpush1.xpose.msra.mxu0 0.0
        %1340 = vmatprep.subr.mxu0 0.0
        %1341 = vmatpush1.xpose.msra.mxu0 0.0
        %1342 = vmatprep.subr.mxu0 0.0
        %1343 = vmatpush1.xpose.msra.mxu0 0.0
        %1344 = vmatprep.subr.mxu0 0.0
        %1345 = vmatpush1.xpose.msra.mxu0 0.0
        %1346 = vmatprep.subr.mxu0 0.0
        %1347 = vmatpush1.xpose.msra.mxu0 0.0
        %1348 = vmatprep.subr.mxu0 0.0
        %1349 = vmatpush1.xpose.msra.mxu0 0.0
        %1350 = vmatprep.subr.mxu0 0.0
        %1351 = vmatpush1.xpose.msra.mxu0 0.0
        %1352 = vmatprep.subr.mxu0 0.0
        %1353 = vmatpush1.xpose.msra.mxu0 0.0
        %1354 = vmatprep.subr.mxu0 0.0
        %1355 = vmatpush1.xpose.msra.mxu0 0.0
        %1356 = vmatprep.subr.mxu0 0.0
        %1357 = vmatpush1.xpose.msra.mxu0 0.0
        %1358 = vmatprep.subr.mxu0 0.0
        %1359 = vmatpush1.xpose.msra.mxu0 0.0
        %1360 = vmatprep.subr.mxu0 0.0
        %1361 = vmatpush1.xpose.msra.mxu0 0.0
        %1362 = vmatprep.subr.mxu0 0.0
        %1363 = vmatpush1.xpose.msra.mxu0 0.0
        %1364 = vmatprep.subr.mxu0 0.0
        %1365 = vmatpush1.xpose.msra.mxu0 0.0
        %1366 = vmatprep.subr.mxu0 0.0
        %1367 = vmatpush1.xpose.msra.mxu0 0.0
        %1368 = vmatprep.subr.mxu0 0.0
        %1369 = vmatpush1.xpose.msra.mxu0 0.0
        %1370 = vmatprep.subr.mxu0 0.0
        %1371 = vmatpush1.xpose.msra.mxu0 0.0
        %1372 = vmatprep.subr.mxu0 0.0
        %1373 = vmatpush1.xpose.msra.mxu0 0.0
        %1374 = vmatprep.subr.mxu0 0.0
        %1375 = vmatpush1.xpose.msra.mxu0 0.0
        %1376 = vmatprep.subr.mxu0 0.0
        %1377 = vmatpush1.xpose.msra.mxu0 0.0
        %1378 = vmatprep.subr.mxu0 0.0
        %1379 = vmatpush1.xpose.msra.mxu0 0.0
        %1380 = vmatprep.subr.mxu0 0.0
        %1381 = vmatpush1.xpose.msra.mxu0 0.0
        %1382 = vmatprep.subr.mxu0 0.0
        %1383 = vmatpush1.xpose.msra.mxu0 0.0
        %1384 = vmatprep.subr.mxu0 0.0
        %1385 = vmatpush1.xpose.msra.mxu0 0.0
        %1386 = vmatprep.subr.mxu0 0.0
        %1387 = vmatpush1.xpose.msra.mxu0 0.0
        %1388 = vmatprep.subr.mxu0 0.0
        %1389 = vmatpush1.xpose.msra.mxu0 0.0
        %1390 = vmatprep.mubr.f32.mxu0 0.0
        %1391 = vmatmul.mubr.f32.gmra.mrb[0].mxu0 %v1318
        %v1392 = vpop.f32.mrb[0].mxu0
        %v1393 = vadd.f32 %v1217, %v1392
        %v1394 = vpop.f32.mrb[0].mxu0
        %1395 = vmatprep.mubr.f32.mxu0 0.0
        %1396 = vmatmul.mubr.f32.gmra.mrb[0].mxu0 %v1320
        %v1397 = vpop.f32.mrb[0].mxu0
        %v1398 = vadd.f32 %v1218, %v1397
        %v1399 = vpop.f32.mrb[0].mxu0
        %1400 = vdwg.mxu0
        %v1401 = vsel %vm823, %v1302, -inf
        %1402 = vmax.xlane.f32.xlu0 %v1401
        %v1403 = vpop.xlane.xlu0 %1402
        %v1404 = vsel %vm823, %v1307, -inf
        %1405 = vmax.xlane.f32.xlu0 %v1404
        %v1406 = vpop.xlane.xlu0 %1405
        %v1407 = vsel %vm823, %v1393, -inf
        %1408 = vmax.xlane.f32.xlu0 %v1407
        %v1409 = vpop.xlane.xlu0 %1408
        %v1410 = vsel %vm823, %v1398, -inf
        %1411 = vmax.xlane.f32.xlu0 %v1410
        %v1412 = vpop.xlane.xlu0 %1411
        %v1413 = vsub.f32 %v1302, %v1403
        %v1414 = vsub.f32 %v1307, %v1406
        %v1415 = vsub.f32 %v1393, %v1409
        %v1416 = vsub.f32 %v1398, %v1412
        %v1417 = vmul.f32 %v1413, 1.442695
        %v1418 = vpow.pop %v1417
        %v1419 = vmul.f32 %v1414, 1.442695
        %v1420 = vpow.pop %v1419
        %v1421 = vmul.f32 %v1415, 1.442695
        %v1422 = vpow.pop %v1421
        %v1423 = vmul.f32 %v1416, 1.442695
        %v1424 = vpow.pop %v1423
        %v1425 = vsel %vm823, %v1418, 0.0
        %1426 = vadd.xlane.f32.xlu0 %v1425
        %v1427 = vpop.xlane.xlu0 %1426
        %v1428 = vsel %vm823, %v1420, 0.0
        %1429 = vadd.xlane.f32.xlu0 %v1428
        %v1430 = vpop.xlane.xlu0 %1429
        %v1431 = vsel %vm823, %v1422, 0.0
        %1432 = vadd.xlane.f32.xlu0 %v1431
        %v1433 = vpop.xlane.xlu0 %1432
        %v1434 = vsel %vm823, %v1424, 0.0
        %1435 = vadd.xlane.f32.xlu0 %v1434
        %v1436 = vpop.xlane.xlu0 %1435
        %v1437 = vrcp.pop %v1427
        %v1438 = vrcp.pop %v1430
        %v1439 = vrcp.pop %v1433
        %v1440 = vrcp.pop %v1436
        %v1441 = vmul.f32 %v1418, %v1437
        %v1442 = vmul.f32 %v1420, %v1438
        %v1443 = vmul.f32 %v1422, %v1439
        %v1444 = vmul.f32 %v1424, %v1440
        %1447 = vrot.lane.b32.xlu0 %v608, 96
        %v1448 = vpop.permute.xlu0 %1447
        %1449 = vrot.lane.b32.xlu0 %v613, 96
        %v1450 = vpop.permute.xlu0 %1449
        %v1454 = vsel %vm823, %v1441, 0
        %v1457 = vsel %vm823, %v1442, 0
        %1459 = vmatprep.subr.mxu0 0.0
        %1460 = vmatpush1.msra.mxu0 %v1448
        %1461 = vmatprep.subr.mxu0 0.0
        %1462 = vmatpush1.msra.mxu0 %v1450
        %1463 = vmatprep.subr.mxu0 0.0
        %1464 = vmatpush1.msra.mxu0 0.0
        %1465 = vmatprep.subr.mxu0 0.0
        %1466 = vmatpush1.msra.mxu0 0.0
        %1467 = vmatprep.subr.mxu0 0.0
        %1468 = vmatpush1.msra.mxu0 0.0
        %1469 = vmatprep.subr.mxu0 0.0
        %1470 = vmatpush1.msra.mxu0 0.0
        %1471 = vmatprep.subr.mxu0 0.0
        %1472 = vmatpush1.msra.mxu0 0.0
        %1473 = vmatprep.subr.mxu0 0.0
        %1474 = vmatpush1.msra.mxu0 0.0
        %1475 = vmatprep.subr.mxu0 0.0
        %1476 = vmatpush1.msra.mxu0 0.0
        %1477 = vmatprep.subr.mxu0 0.0
        %1478 = vmatpush1.msra.mxu0 0.0
        %1479 = vmatprep.subr.mxu0 0.0
        %1480 = vmatpush1.msra.mxu0 0.0
        %1481 = vmatprep.subr.mxu0 0.0
        %1482 = vmatpush1.msra.mxu0 0.0
        %1483 = vmatprep.subr.mxu0 0.0
        %1484 = vmatpush1.msra.mxu0 0.0
        %1485 = vmatprep.subr.mxu0 0.0
        %1486 = vmatpush1.msra.mxu0 0.0
        %1487 = vmatprep.subr.mxu0 0.0
        %1488 = vmatpush1.msra.mxu0 0.0
        %1489 = vmatprep.subr.mxu0 0.0
        %1490 = vmatpush1.msra.mxu0 0.0
        %1491 = vmatprep.subr.mxu0 0.0
        %1492 = vmatpush1.msra.mxu0 0.0
        %1493 = vmatprep.subr.mxu0 0.0
        %1494 = vmatpush1.msra.mxu0 0.0
        %1495 = vmatprep.subr.mxu0 0.0
        %1496 = vmatpush1.msra.mxu0 0.0
        %1497 = vmatprep.subr.mxu0 0.0
        %1498 = vmatpush1.msra.mxu0 0.0
        %1499 = vmatprep.subr.mxu0 0.0
        %1500 = vmatpush1.msra.mxu0 0.0
        %1501 = vmatprep.subr.mxu0 0.0
        %1502 = vmatpush1.msra.mxu0 0.0
        %1503 = vmatprep.subr.mxu0 0.0
        %1504 = vmatpush1.msra.mxu0 0.0
        %1505 = vmatprep.subr.mxu0 0.0
        %1506 = vmatpush1.msra.mxu0 0.0
        %1507 = vmatprep.subr.mxu0 0.0
        %1508 = vmatpush1.msra.mxu0 0.0
        %1509 = vmatprep.subr.mxu0 0.0
        %1510 = vmatpush1.msra.mxu0 0.0
        %1511 = vmatprep.subr.mxu0 0.0
        %1512 = vmatpush1.msra.mxu0 0.0
        %1513 = vmatprep.subr.mxu0 0.0
        %1514 = vmatpush1.msra.mxu0 0.0
        %1515 = vmatprep.subr.mxu0 0.0
        %1516 = vmatpush1.msra.mxu0 0.0
        %1517 = vmatprep.subr.mxu0 0.0
        %1518 = vmatpush1.msra.mxu0 0.0
        %1519 = vmatprep.subr.mxu0 0.0
        %1520 = vmatpush1.msra.mxu0 0.0
        %1521 = vmatprep.subr.mxu0 0.0
        %1522 = vmatpush1.msra.mxu0 0.0
        %1523 = vmatprep.mubr.f32.mxu0 0.0
        %1524 = vmatmul.mubr.f32.gmra.mrb[0].mxu0 %v1454
        %v1525 = vpop.f32.mrb[0].mxu0
        %v1526 = vadd.f32 0.0, %v1525
        %v1527 = vpop.f32.mrb[0].mxu0
        %1528 = vmatprep.mubr.f32.mxu0 0.0
        %1529 = vmatmul.mubr.f32.gmra.mrb[0].mxu0 %v1457
        %v1530 = vpop.f32.mrb[0].mxu0
        %v1531 = vadd.f32 0.0, %v1530
        %v1532 = vpop.f32.mrb[0].mxu0
        %1533 = vdwg.mxu0
        %1536 = vrot.lane.b32.xlu0 %v618, 96
        %v1537 = vpop.permute.xlu0 %1536
        %1538 = vrot.lane.b32.xlu0 %v623, 96
        %v1539 = vpop.permute.xlu0 %1538
        %v1543 = vsel %vm823, %v1443, 0
        %v1546 = vsel %vm823, %v1444, 0
        %1548 = vmatprep.subr.mxu0 0.0
        %1549 = vmatpush1.msra.mxu0 %v1537
        %1550 = vmatprep.subr.mxu0 0.0
        %1551 = vmatpush1.msra.mxu0 %v1539
        %1552 = vmatprep.subr.mxu0 0.0
        %1553 = vmatpush1.msra.mxu0 0.0
        %1554 = vmatprep.subr.mxu0 0.0
        %1555 = vmatpush1.msra.mxu0 0.0
        %1556 = vmatprep.subr.mxu0 0.0
        %1557 = vmatpush1.msra.mxu0 0.0
        %1558 = vmatprep.subr.mxu0 0.0
        %1559 = vmatpush1.msra.mxu0 0.0
        %1560 = vmatprep.subr.mxu0 0.0
        %1561 = vmatpush1.msra.mxu0 0.0
        %1562 = vmatprep.subr.mxu0 0.0
        %1563 = vmatpush1.msra.mxu0 0.0
        %1564 = vmatprep.subr.mxu0 0.0
        %1565 = vmatpush1.msra.mxu0 0.0
        %1566 = vmatprep.subr.mxu0 0.0
        %1567 = vmatpush1.msra.mxu0 0.0
        %1568 = vmatprep.subr.mxu0 0.0
        %1569 = vmatpush1.msra.mxu0 0.0
        %1570 = vmatprep.subr.mxu0 0.0
        %1571 = vmatpush1.msra.mxu0 0.0
        %1572 = vmatprep.subr.mxu0 0.0
        %1573 = vmatpush1.msra.mxu0 0.0
        %1574 = vmatprep.subr.mxu0 0.0
        %1575 = vmatpush1.msra.mxu0 0.0
        %1576 = vmatprep.subr.mxu0 0.0
        %1577 = vmatpush1.msra.mxu0 0.0
        %1578 = vmatprep.subr.mxu0 0.0
        %1579 = vmatpush1.msra.mxu0 0.0
        %1580 = vmatprep.subr.mxu0 0.0
        %1581 = vmatpush1.msra.mxu0 0.0
        %1582 = vmatprep.subr.mxu0 0.0
        %1583 = vmatpush1.msra.mxu0 0.0
        %1584 = vmatprep.subr.mxu0 0.0
        %1585 = vmatpush1.msra.mxu0 0.0
        %1586 = vmatprep.subr.mxu0 0.0
        %1587 = vmatpush1.msra.mxu0 0.0
        %1588 = vmatprep.subr.mxu0 0.0
        %1589 = vmatpush1.msra.mxu0 0.0
        %1590 = vmatprep.subr.mxu0 0.0
        %1591 = vmatpush1.msra.mxu0 0.0
        %1592 = vmatprep.subr.mxu0 0.0
        %1593 = vmatpush1.msra.mxu0 0.0
        %1594 = vmatprep.subr.mxu0 0.0
        %1595 = vmatpush1.msra.mxu0 0.0
        %1596 = vmatprep.subr.mxu0 0.0
        %1597 = vmatpush1.msra.mxu0 0.0
        %1598 = vmatprep.subr.mxu0 0.0
        %1599 = vmatpush1.msra.mxu0 0.0
        %1600 = vmatprep.subr.mxu0 0.0
        %1601 = vmatpush1.msra.mxu0 0.0
        %1602 = vmatprep.subr.mxu0 0.0
        %1603 = vmatpush1.msra.mxu0 0.0
        %1604 = vmatprep.subr.mxu0 0.0
        %1605 = vmatpush1.msra.mxu0 0.0
        %1606 = vmatprep.subr.mxu0 0.0
        %1607 = vmatpush1.msra.mxu0 0.0
        %1608 = vmatprep.subr.mxu0 0.0
        %1609 = vmatpush1.msra.mxu0 0.0
        %1610 = vmatprep.subr.mxu0 0.0
        %1611 = vmatpush1.msra.mxu0 0.0
        %1612 = vmatprep.mubr.f32.mxu0 0.0
        %1613 = vmatmul.mubr.f32.gmra.mrb[0].mxu0 %v1543
        %v1614 = vpop.f32.mrb[0].mxu0
        %v1615 = vadd.f32 0.0, %v1614
        %v1616 = vpop.f32.mrb[0].mxu0
        %1617 = vmatprep.mubr.f32.mxu0 0.0
        %1618 = vmatmul.mubr.f32.gmra.mrb[0].mxu0 %v1546
        %v1619 = vpop.f32.mrb[0].mxu0
        %v1620 = vadd.f32 0.0, %v1619
        %v1621 = vpop.f32.mrb[0].mxu0
        %1622 = vdwg.mxu0
        %v1623 = vld [vmem:[#allocation8 + $0x20] sm:$0xff]
        %v1624 = vld [vmem:[#allocation8 + $0x28] sm:$0xff]
        %v1625 = vld [vmem:[#allocation8 + $0x30] sm:$0xff]
        %v1626 = vld [vmem:[#allocation8 + $0x38] sm:$0xff]
        %v1628 = vsel %vm648, %v1526, 0
        %v1631 = vsel %vm648, %v1531, 0
        %v1634 = vsel %vm648, %v1615, 0
        %v1637 = vsel %vm648, %v1620, 0
        %1639 = vmatprep.subr.mxu0 0.0
        %1640 = vmatpush1.msra.mxu0 %v1623
        %1641 = vmatprep.subr.mxu0 0.0
        %1642 = vmatpush1.msra.mxu0 %v1624
        %1643 = vmatprep.subr.mxu0 0.0
        %1644 = vmatpush1.msra.mxu0 %v1625
        %1645 = vmatprep.subr.mxu0 0.0
        %1646 = vmatpush1.msra.mxu0 %v1626
        %1647 = vmatprep.subr.mxu0 0.0
        %1648 = vmatpush1.msra.mxu0 0.0
        %1649 = vmatprep.subr.mxu0 0.0
        %1650 = vmatpush1.msra.mxu0 0.0
        %1651 = vmatprep.subr.mxu0 0.0
        %1652 = vmatpush1.msra.mxu0 0.0
        %1653 = vmatprep.subr.mxu0 0.0
        %1654 = vmatpush1.msra.mxu0 0.0
        %1655 = vmatprep.subr.mxu0 0.0
        %1656 = vmatpush1.msra.mxu0 0.0
        %1657 = vmatprep.subr.mxu0 0.0
        %1658 = vmatpush1.msra.mxu0 0.0
        %1659 = vmatprep.subr.mxu0 0.0
        %1660 = vmatpush1.msra.mxu0 0.0
        %1661 = vmatprep.subr.mxu0 0.0
        %1662 = vmatpush1.msra.mxu0 0.0
        %1663 = vmatprep.subr.mxu0 0.0
        %1664 = vmatpush1.msra.mxu0 0.0
        %1665 = vmatprep.subr.mxu0 0.0
        %1666 = vmatpush1.msra.mxu0 0.0
        %1667 = vmatprep.subr.mxu0 0.0
        %1668 = vmatpush1.msra.mxu0 0.0
        %1669 = vmatprep.subr.mxu0 0.0
        %1670 = vmatpush1.msra.mxu0 0.0
        %1671 = vmatprep.subr.mxu0 0.0
        %1672 = vmatpush1.msra.mxu0 0.0
        %1673 = vmatprep.subr.mxu0 0.0
        %1674 = vmatpush1.msra.mxu0 0.0
        %1675 = vmatprep.subr.mxu0 0.0
        %1676 = vmatpush1.msra.mxu0 0.0
        %1677 = vmatprep.subr.mxu0 0.0
        %1678 = vmatpush1.msra.mxu0 0.0
        %1679 = vmatprep.subr.mxu0 0.0
        %1680 = vmatpush1.msra.mxu0 0.0
        %1681 = vmatprep.subr.mxu0 0.0
        %1682 = vmatpush1.msra.mxu0 0.0
        %1683 = vmatprep.subr.mxu0 0.0
        %1684 = vmatpush1.msra.mxu0 0.0
        %1685 = vmatprep.subr.mxu0 0.0
        %1686 = vmatpush1.msra.mxu0 0.0
        %1687 = vmatprep.subr.mxu0 0.0
        %1688 = vmatpush1.msra.mxu0 0.0
        %1689 = vmatprep.subr.mxu0 0.0
        %1690 = vmatpush1.msra.mxu0 0.0
        %1691 = vmatprep.subr.mxu0 0.0
        %1692 = vmatpush1.msra.mxu0 0.0
        %1693 = vmatprep.subr.mxu0 0.0
        %1694 = vmatpush1.msra.mxu0 0.0
        %1695 = vmatprep.subr.mxu0 0.0
        %1696 = vmatpush1.msra.mxu0 0.0
        %1697 = vmatprep.subr.mxu0 0.0
        %1698 = vmatpush1.msra.mxu0 0.0
        %1699 = vmatprep.subr.mxu0 0.0
        %1700 = vmatpush1.msra.mxu0 0.0
        %1701 = vmatprep.subr.mxu0 0.0
        %1702 = vmatpush1.msra.mxu0 0.0
        %1703 = vmatprep.mubr.f32.mxu0 0.0
        %1704 = vmatmul.mubr.f32.gmra.mrb[0].mxu0 %v1628
        %v1705 = vpop.f32.mrb[0].mxu0
        %v1706 = vadd.f32 0.0, %v1705
        %v1707 = vpop.f32.mrb[0].mxu0
        %1708 = vmatprep.mubr.f32.mxu0 0.0
        %1709 = vmatmul.mubr.f32.gmra.mrb[0].mxu0 %v1631
        %v1710 = vpop.f32.mrb[0].mxu0
        %v1711 = vadd.f32 0.0, %v1710
        %v1712 = vpop.f32.mrb[0].mxu0
        %1713 = vmatprep.mubr.f32.mxu0 0.0
        %1714 = vmatmul.mubr.f32.gmra.mrb[0].mxu0 %v1634
        %v1715 = vpop.f32.mrb[0].mxu0
        %v1716 = vadd.f32 0.0, %v1715
        %v1717 = vpop.f32.mrb[0].mxu0
        %1718 = vmatprep.mubr.f32.mxu0 0.0
        %1719 = vmatmul.mubr.f32.gmra.mrb[0].mxu0 %v1637
        %v1720 = vpop.f32.mrb[0].mxu0
        %v1721 = vadd.f32 0.0, %v1720
        %v1722 = vpop.f32.mrb[0].mxu0
        %1723 = vdwg.mxu0
        %v1724 = vadd.f32 %v1198, %v1706
        %v1725 = vadd.f32 %v1203, %v1711
        %v1726 = vadd.f32 %v1208, %v1716
        %v1727 = vadd.f32 %v1213, %v1721
        %s1728 = scalar_lea.vmem [#allocation7], 32
        %v1729 = vld [vmem:[%s1728] sm:$0xff]
        %v1730 = vld [vmem:[%s1728 + $0x8] sm:$0xff]
        %1731 = vrot.lane.b32.xlu0 %v519, 64
        %v1732 = vpop.permute.xlu0 %1731
        %1733 = vrot.lane.b32.xlu0 %v525, 64
        %v1734 = vpop.permute.xlu0 %1733
        %1735 = vrot.lane.b32.xlu0 %v521, 64
        %v1736 = vpop.permute.xlu0 %1735
        %1737 = vrot.lane.b32.xlu0 %v527, 64
        %v1738 = vpop.permute.xlu0 %1737
        %v1739 = vsel %vm648, %v1732, 0
        %v1741 = vsel %vm648, %v1734, 0
        %v1743 = vsel %vm648, %v1736, 0
        %v1745 = vsel %vm648, %v1738, 0
        %1747 = vmatprep.subr.mxu0 0.0
        %1748 = vmatpush1.xpose.msra.mxu0 %v1743
        %1749 = vmatprep.subr.mxu0 0.0
        %1750 = vmatpush1.xpose.msra.mxu0 %v1745
        %1751 = vmatprep.subr.mxu0 0.0
        %1752 = vmatpush1.xpose.msra.mxu0 0.0
        %1753 = vmatprep.subr.mxu0 0.0
        %1754 = vmatpush1.xpose.msra.mxu0 0.0
        %1755 = vmatprep.subr.mxu0 0.0
        %1756 = vmatpush1.xpose.msra.mxu0 0.0
        %1757 = vmatprep.subr.mxu0 0.0
        %1758 = vmatpush1.xpose.msra.mxu0 0.0
        %1759 = vmatprep.subr.mxu0 0.0
        %1760 = vmatpush1.xpose.msra.mxu0 0.0
        %1761 = vmatprep.subr.mxu0 0.0
        %1762 = vmatpush1.xpose.msra.mxu0 0.0
        %1763 = vmatprep.subr.mxu0 0.0
        %1764 = vmatpush1.xpose.msra.mxu0 0.0
        %1765 = vmatprep.subr.mxu0 0.0
        %1766 = vmatpush1.xpose.msra.mxu0 0.0
        %1767 = vmatprep.subr.mxu0 0.0
        %1768 = vmatpush1.xpose.msra.mxu0 0.0
        %1769 = vmatprep.subr.mxu0 0.0
        %1770 = vmatpush1.xpose.msra.mxu0 0.0
        %1771 = vmatprep.subr.mxu0 0.0
        %1772 = vmatpush1.xpose.msra.mxu0 0.0
        %1773 = vmatprep.subr.mxu0 0.0
        %1774 = vmatpush1.xpose.msra.mxu0 0.0
        %1775 = vmatprep.subr.mxu0 0.0
        %1776 = vmatpush1.xpose.msra.mxu0 0.0
        %1777 = vmatprep.subr.mxu0 0.0
        %1778 = vmatpush1.xpose.msra.mxu0 0.0
        %1779 = vmatprep.subr.mxu0 0.0
        %1780 = vmatpush1.xpose.msra.mxu0 0.0
        %1781 = vmatprep.subr.mxu0 0.0
        %1782 = vmatpush1.xpose.msra.mxu0 0.0
        %1783 = vmatprep.subr.mxu0 0.0
        %1784 = vmatpush1.xpose.msra.mxu0 0.0
        %1785 = vmatprep.subr.mxu0 0.0
        %1786 = vmatpush1.xpose.msra.mxu0 0.0
        %1787 = vmatprep.subr.mxu0 0.0
        %1788 = vmatpush1.xpose.msra.mxu0 0.0
        %1789 = vmatprep.subr.mxu0 0.0
        %1790 = vmatpush1.xpose.msra.mxu0 0.0
        %1791 = vmatprep.subr.mxu0 0.0
        %1792 = vmatpush1.xpose.msra.mxu0 0.0
        %1793 = vmatprep.subr.mxu0 0.0
        %1794 = vmatpush1.xpose.msra.mxu0 0.0
        %1795 = vmatprep.subr.mxu0 0.0
        %1796 = vmatpush1.xpose.msra.mxu0 0.0
        %1797 = vmatprep.subr.mxu0 0.0
        %1798 = vmatpush1.xpose.msra.mxu0 0.0
        %1799 = vmatprep.subr.mxu0 0.0
        %1800 = vmatpush1.xpose.msra.mxu0 0.0
        %1801 = vmatprep.subr.mxu0 0.0
        %1802 = vmatpush1.xpose.msra.mxu0 0.0
        %1803 = vmatprep.subr.mxu0 0.0
        %1804 = vmatpush1.xpose.msra.mxu0 0.0
        %1805 = vmatprep.subr.mxu0 0.0
        %1806 = vmatpush1.xpose.msra.mxu0 0.0
        %1807 = vmatprep.subr.mxu0 0.0
        %1808 = vmatpush1.xpose.msra.mxu0 0.0
        %1809 = vmatprep.subr.mxu0 0.0
        %1810 = vmatpush1.xpose.msra.mxu0 0.0
        %1811 = vmatprep.mubr.f32.mxu0 0.0
        %1812 = vmatmul.mubr.f32.gmra.mrb[0].mxu0 %v1739
        %v1813 = vpop.f32.mrb[0].mxu0
        %v1814 = vadd.f32 %v1729, %v1813
        %v1815 = vpop.f32.mrb[0].mxu0
        %1816 = vmatprep.mubr.f32.mxu0 0.0
        %1817 = vmatmul.mubr.f32.gmra.mrb[0].mxu0 %v1741
        %v1818 = vpop.f32.mrb[0].mxu0
        %v1819 = vadd.f32 %v1730, %v1818
        %v1820 = vpop.f32.mrb[0].mxu0
        %1821 = vdwg.mxu0
        %1822 = vrot.lane.b32.xlu0 %v531, 64
        %v1823 = vpop.permute.xlu0 %1822
        %1824 = vrot.lane.b32.xlu0 %v537, 64
        %v1825 = vpop.permute.xlu0 %1824
        %1826 = vrot.lane.b32.xlu0 %v533, 64
        %v1827 = vpop.permute.xlu0 %1826
        %1828 = vrot.lane.b32.xlu0 %v539, 64
        %v1829 = vpop.permute.xlu0 %1828
        %v1830 = vsel %vm648, %v1823, 0
        %v1832 = vsel %vm648, %v1825, 0
        %v1834 = vsel %vm648, %v1827, 0
        %v1836 = vsel %vm648, %v1829, 0
        %1838 = vmatprep.subr.mxu0 0.0
        %1839 = vmatpush1.xpose.msra.mxu0 %v1834
        %1840 = vmatprep.subr.mxu0 0.0
        %1841 = vmatpush1.xpose.msra.mxu0 %v1836
        %1842 = vmatprep.subr.mxu0 0.0
        %1843 = vmatpush1.xpose.msra.mxu0 0.0
        %1844 = vmatprep.subr.mxu0 0.0
        %1845 = vmatpush1.xpose.msra.mxu0 0.0
        %1846 = vmatprep.subr.mxu0 0.0
        %1847 = vmatpush1.xpose.msra.mxu0 0.0
        %1848 = vmatprep.subr.mxu0 0.0
        %1849 = vmatpush1.xpose.msra.mxu0 0.0
        %1850 = vmatprep.subr.mxu0 0.0
        %1851 = vmatpush1.xpose.msra.mxu0 0.0
        %1852 = vmatprep.subr.mxu0 0.0
        %1853 = vmatpush1.xpose.msra.mxu0 0.0
        %1854 = vmatprep.subr.mxu0 0.0
        %1855 = vmatpush1.xpose.msra.mxu0 0.0
        %1856 = vmatprep.subr.mxu0 0.0
        %1857 = vmatpush1.xpose.msra.mxu0 0.0
        %1858 = vmatprep.subr.mxu0 0.0
        %1859 = vmatpush1.xpose.msra.mxu0 0.0
        %1860 = vmatprep.subr.mxu0 0.0
        %1861 = vmatpush1.xpose.msra.mxu0 0.0
        %1862 = vmatprep.subr.mxu0 0.0
        %1863 = vmatpush1.xpose.msra.mxu0 0.0
        %1864 = vmatprep.subr.mxu0 0.0
        %1865 = vmatpush1.xpose.msra.mxu0 0.0
        %1866 = vmatprep.subr.mxu0 0.0
        %1867 = vmatpush1.xpose.msra.mxu0 0.0
        %1868 = vmatprep.subr.mxu0 0.0
        %1869 = vmatpush1.xpose.msra.mxu0 0.0
        %1870 = vmatprep.subr.mxu0 0.0
        %1871 = vmatpush1.xpose.msra.mxu0 0.0
        %1872 = vmatprep.subr.mxu0 0.0
        %1873 = vmatpush1.xpose.msra.mxu0 0.0
        %1874 = vmatprep.subr.mxu0 0.0
        %1875 = vmatpush1.xpose.msra.mxu0 0.0
        %1876 = vmatprep.subr.mxu0 0.0
        %1877 = vmatpush1.xpose.msra.mxu0 0.0
        %1878 = vmatprep.subr.mxu0 0.0
        %1879 = vmatpush1.xpose.msra.mxu0 0.0
        %1880 = vmatprep.subr.mxu0 0.0
        %1881 = vmatpush1.xpose.msra.mxu0 0.0
        %1882 = vmatprep.subr.mxu0 0.0
        %1883 = vmatpush1.xpose.msra.mxu0 0.0
        %1884 = vmatprep.subr.mxu0 0.0
        %1885 = vmatpush1.xpose.msra.mxu0 0.0
        %1886 = vmatprep.subr.mxu0 0.0
        %1887 = vmatpush1.xpose.msra.mxu0 0.0
        %1888 = vmatprep.subr.mxu0 0.0
        %1889 = vmatpush1.xpose.msra.mxu0 0.0
        %1890 = vmatprep.subr.mxu0 0.0
        %1891 = vmatpush1.xpose.msra.mxu0 0.0
        %1892 = vmatprep.subr.mxu0 0.0
        %1893 = vmatpush1.xpose.msra.mxu0 0.0
        %1894 = vmatprep.subr.mxu0 0.0
        %1895 = vmatpush1.xpose.msra.mxu0 0.0
        %1896 = vmatprep.subr.mxu0 0.0
        %1897 = vmatpush1.xpose.msra.mxu0 0.0
        %1898 = vmatprep.subr.mxu0 0.0
        %1899 = vmatpush1.xpose.msra.mxu0 0.0
        %1900 = vmatprep.subr.mxu0 0.0
        %1901 = vmatpush1.xpose.msra.mxu0 0.0
        %1902 = vmatprep.mubr.f32.mxu0 0.0
        %1903 = vmatmul.mubr.f32.gmra.mrb[0].mxu0 %v1830
        %v1904 = vpop.f32.mrb[0].mxu0
        %v1905 = vadd.f32 %v1729, %v1904
        %v1906 = vpop.f32.mrb[0].mxu0
        %1907 = vmatprep.mubr.f32.mxu0 0.0
        %1908 = vmatmul.mubr.f32.gmra.mrb[0].mxu0 %v1832
        %v1909 = vpop.f32.mrb[0].mxu0
        %v1910 = vadd.f32 %v1730, %v1909
        %v1911 = vpop.f32.mrb[0].mxu0
        %1912 = vdwg.mxu0
        %v1913 = vsel %vm823, %v1814, -inf
        %1914 = vmax.xlane.f32.xlu0 %v1913
        %v1915 = vpop.xlane.xlu0 %1914
        %v1916 = vsel %vm823, %v1819, -inf
        %1917 = vmax.xlane.f32.xlu0 %v1916
        %v1918 = vpop.xlane.xlu0 %1917
        %v1919 = vsel %vm823, %v1905, -inf
        %1920 = vmax.xlane.f32.xlu0 %v1919
        %v1921 = vpop.xlane.xlu0 %1920
        %v1922 = vsel %vm823, %v1910, -inf
        %1923 = vmax.xlane.f32.xlu0 %v1922
        %v1924 = vpop.xlane.xlu0 %1923
        %v1925 = vsub.f32 %v1814, %v1915
        %v1926 = vsub.f32 %v1819, %v1918
        %v1927 = vsub.f32 %v1905, %v1921
        %v1928 = vsub.f32 %v1910, %v1924
        %v1929 = vmul.f32 %v1925, 1.442695
        %v1930 = vpow.pop %v1929
        %v1931 = vmul.f32 %v1926, 1.442695
        %v1932 = vpow.pop %v1931
        %v1933 = vmul.f32 %v1927, 1.442695
        %v1934 = vpow.pop %v1933
        %v1935 = vmul.f32 %v1928, 1.442695
        %v1936 = vpow.pop %v1935
        %v1937 = vsel %vm823, %v1930, 0.0
        %1938 = vadd.xlane.f32.xlu0 %v1937
        %v1939 = vpop.xlane.xlu0 %1938
        %v1940 = vsel %vm823, %v1932, 0.0
        %1941 = vadd.xlane.f32.xlu0 %v1940
        %v1942 = vpop.xlane.xlu0 %1941
        %v1943 = vsel %vm823, %v1934, 0.0
        %1944 = vadd.xlane.f32.xlu0 %v1943
        %v1945 = vpop.xlane.xlu0 %1944
        %v1946 = vsel %vm823, %v1936, 0.0
        %1947 = vadd.xlane.f32.xlu0 %v1946
        %v1948 = vpop.xlane.xlu0 %1947
        %v1949 = vrcp.pop %v1939
        %v1950 = vrcp.pop %v1942
        %v1951 = vrcp.pop %v1945
        %v1952 = vrcp.pop %v1948
        %v1953 = vmul.f32 %v1930, %v1949
        %v1954 = vmul.f32 %v1932, %v1950
        %v1955 = vmul.f32 %v1934, %v1951
        %v1956 = vmul.f32 %v1936, %v1952
        %1957 = vrot.lane.b32.xlu0 %v608, 64
        %v1958 = vpop.permute.xlu0 %1957
        %1959 = vrot.lane.b32.xlu0 %v613, 64
        %v1960 = vpop.permute.xlu0 %1959
        %v1964 = vsel %vm823, %v1953, 0
        %v1967 = vsel %vm823, %v1954, 0
        %1969 = vmatprep.subr.mxu0 0.0
        %1970 = vmatpush1.msra.mxu0 %v1958
        %1971 = vmatprep.subr.mxu0 0.0
        %1972 = vmatpush1.msra.mxu0 %v1960
        %1973 = vmatprep.subr.mxu0 0.0
        %1974 = vmatpush1.msra.mxu0 0.0
        %1975 = vmatprep.subr.mxu0 0.0
        %1976 = vmatpush1.msra.mxu0 0.0
        %1977 = vmatprep.subr.mxu0 0.0
        %1978 = vmatpush1.msra.mxu0 0.0
        %1979 = vmatprep.subr.mxu0 0.0
        %1980 = vmatpush1.msra.mxu0 0.0
        %1981 = vmatprep.subr.mxu0 0.0
        %1982 = vmatpush1.msra.mxu0 0.0
        %1983 = vmatprep.subr.mxu0 0.0
        %1984 = vmatpush1.msra.mxu0 0.0
        %1985 = vmatprep.subr.mxu0 0.0
        %1986 = vmatpush1.msra.mxu0 0.0
        %1987 = vmatprep.subr.mxu0 0.0
        %1988 = vmatpush1.msra.mxu0 0.0
        %1989 = vmatprep.subr.mxu0 0.0
        %1990 = vmatpush1.msra.mxu0 0.0
        %1991 = vmatprep.subr.mxu0 0.0
        %1992 = vmatpush1.msra.mxu0 0.0
        %1993 = vmatprep.subr.mxu0 0.0
        %1994 = vmatpush1.msra.mxu0 0.0
        %1995 = vmatprep.subr.mxu0 0.0
        %1996 = vmatpush1.msra.mxu0 0.0
        %1997 = vmatprep.subr.mxu0 0.0
        %1998 = vmatpush1.msra.mxu0 0.0
        %1999 = vmatprep.subr.mxu0 0.0
        %2000 = vmatpush1.msra.mxu0 0.0
        %2001 = vmatprep.subr.mxu0 0.0
        %2002 = vmatpush1.msra.mxu0 0.0
        %2003 = vmatprep.subr.mxu0 0.0
        %2004 = vmatpush1.msra.mxu0 0.0
        %2005 = vmatprep.subr.mxu0 0.0
        %2006 = vmatpush1.msra.mxu0 0.0
        %2007 = vmatprep.subr.mxu0 0.0
        %2008 = vmatpush1.msra.mxu0 0.0
        %2009 = vmatprep.subr.mxu0 0.0
        %2010 = vmatpush1.msra.mxu0 0.0
        %2011 = vmatprep.subr.mxu0 0.0
        %2012 = vmatpush1.msra.mxu0 0.0
        %2013 = vmatprep.subr.mxu0 0.0
        %2014 = vmatpush1.msra.mxu0 0.0
        %2015 = vmatprep.subr.mxu0 0.0
        %2016 = vmatpush1.msra.mxu0 0.0
        %2017 = vmatprep.subr.mxu0 0.0
        %2018 = vmatpush1.msra.mxu0 0.0
        %2019 = vmatprep.subr.mxu0 0.0
        %2020 = vmatpush1.msra.mxu0 0.0
        %2021 = vmatprep.subr.mxu0 0.0
        %2022 = vmatpush1.msra.mxu0 0.0
        %2023 = vmatprep.subr.mxu0 0.0
        %2024 = vmatpush1.msra.mxu0 0.0
        %2025 = vmatprep.subr.mxu0 0.0
        %2026 = vmatpush1.msra.mxu0 0.0
        %2027 = vmatprep.subr.mxu0 0.0
        %2028 = vmatpush1.msra.mxu0 0.0
        %2029 = vmatprep.subr.mxu0 0.0
        %2030 = vmatpush1.msra.mxu0 0.0
        %2031 = vmatprep.subr.mxu0 0.0
        %2032 = vmatpush1.msra.mxu0 0.0
        %2033 = vmatprep.mubr.f32.mxu0 0.0
        %2034 = vmatmul.mubr.f32.gmra.mrb[0].mxu0 %v1964
        %v2035 = vpop.f32.mrb[0].mxu0
        %v2036 = vadd.f32 0.0, %v2035
        %v2037 = vpop.f32.mrb[0].mxu0
        %2038 = vmatprep.mubr.f32.mxu0 0.0
        %2039 = vmatmul.mubr.f32.gmra.mrb[0].mxu0 %v1967
        %v2040 = vpop.f32.mrb[0].mxu0
        %v2041 = vadd.f32 0.0, %v2040
        %v2042 = vpop.f32.mrb[0].mxu0
        %2043 = vdwg.mxu0
        %2044 = vrot.lane.b32.xlu0 %v618, 64
        %v2045 = vpop.permute.xlu0 %2044
        %2046 = vrot.lane.b32.xlu0 %v623, 64
        %v2047 = vpop.permute.xlu0 %2046
        %v2051 = vsel %vm823, %v1955, 0
        %v2054 = vsel %vm823, %v1956, 0
        %2056 = vmatprep.subr.mxu0 0.0
        %2057 = vmatpush1.msra.mxu0 %v2045
        %2058 = vmatprep.subr.mxu0 0.0
        %2059 = vmatpush1.msra.mxu0 %v2047
        %2060 = vmatprep.subr.mxu0 0.0
        %2061 = vmatpush1.msra.mxu0 0.0
        %2062 = vmatprep.subr.mxu0 0.0
        %2063 = vmatpush1.msra.mxu0 0.0
        %2064 = vmatprep.subr.mxu0 0.0
        %2065 = vmatpush1.msra.mxu0 0.0
        %2066 = vmatprep.subr.mxu0 0.0
        %2067 = vmatpush1.msra.mxu0 0.0
        %2068 = vmatprep.subr.mxu0 0.0
        %2069 = vmatpush1.msra.mxu0 0.0
        %2070 = vmatprep.subr.mxu0 0.0
        %2071 = vmatpush1.msra.mxu0 0.0
        %2072 = vmatprep.subr.mxu0 0.0
        %2073 = vmatpush1.msra.mxu0 0.0
        %2074 = vmatprep.subr.mxu0 0.0
        %2075 = vmatpush1.msra.mxu0 0.0
        %2076 = vmatprep.subr.mxu0 0.0
        %2077 = vmatpush1.msra.mxu0 0.0
        %2078 = vmatprep.subr.mxu0 0.0
        %2079 = vmatpush1.msra.mxu0 0.0
        %2080 = vmatprep.subr.mxu0 0.0
        %2081 = vmatpush1.msra.mxu0 0.0
        %2082 = vmatprep.subr.mxu0 0.0
        %2083 = vmatpush1.msra.mxu0 0.0
        %2084 = vmatprep.subr.mxu0 0.0
        %2085 = vmatpush1.msra.mxu0 0.0
        %2086 = vmatprep.subr.mxu0 0.0
        %2087 = vmatpush1.msra.mxu0 0.0
        %2088 = vmatprep.subr.mxu0 0.0
        %2089 = vmatpush1.msra.mxu0 0.0
        %2090 = vmatprep.subr.mxu0 0.0
        %2091 = vmatpush1.msra.mxu0 0.0
        %2092 = vmatprep.subr.mxu0 0.0
        %2093 = vmatpush1.msra.mxu0 0.0
        %2094 = vmatprep.subr.mxu0 0.0
        %2095 = vmatpush1.msra.mxu0 0.0
        %2096 = vmatprep.subr.mxu0 0.0
        %2097 = vmatpush1.msra.mxu0 0.0
        %2098 = vmatprep.subr.mxu0 0.0
        %2099 = vmatpush1.msra.mxu0 0.0
        %2100 = vmatprep.subr.mxu0 0.0
        %2101 = vmatpush1.msra.mxu0 0.0
        %2102 = vmatprep.subr.mxu0 0.0
        %2103 = vmatpush1.msra.mxu0 0.0
        %2104 = vmatprep.subr.mxu0 0.0
        %2105 = vmatpush1.msra.mxu0 0.0
        %2106 = vmatprep.subr.mxu0 0.0
        %2107 = vmatpush1.msra.mxu0 0.0
        %2108 = vmatprep.subr.mxu0 0.0
        %2109 = vmatpush1.msra.mxu0 0.0
        %2110 = vmatprep.subr.mxu0 0.0
        %2111 = vmatpush1.msra.mxu0 0.0
        %2112 = vmatprep.subr.mxu0 0.0
        %2113 = vmatpush1.msra.mxu0 0.0
        %2114 = vmatprep.subr.mxu0 0.0
        %2115 = vmatpush1.msra.mxu0 0.0
        %2116 = vmatprep.subr.mxu0 0.0
        %2117 = vmatpush1.msra.mxu0 0.0
        %2118 = vmatprep.subr.mxu0 0.0
        %2119 = vmatpush1.msra.mxu0 0.0
        %2120 = vmatprep.mubr.f32.mxu0 0.0
        %2121 = vmatmul.mubr.f32.gmra.mrb[0].mxu0 %v2051
        %v2122 = vpop.f32.mrb[0].mxu0
        %v2123 = vadd.f32 0.0, %v2122
        %v2124 = vpop.f32.mrb[0].mxu0
        %2125 = vmatprep.mubr.f32.mxu0 0.0
        %2126 = vmatmul.mubr.f32.gmra.mrb[0].mxu0 %v2054
        %v2127 = vpop.f32.mrb[0].mxu0
        %v2128 = vadd.f32 0.0, %v2127
        %v2129 = vpop.f32.mrb[0].mxu0
        %2130 = vdwg.mxu0
        %v2131 = vld [vmem:[#allocation8 + $0x40] sm:$0xff]
        %v2132 = vld [vmem:[#allocation8 + $0x48] sm:$0xff]
        %v2133 = vld [vmem:[#allocation8 + $0x50] sm:$0xff]
        %v2134 = vld [vmem:[#allocation8 + $0x58] sm:$0xff]
        %v2136 = vsel %vm648, %v2036, 0
        %v2139 = vsel %vm648, %v2041, 0
        %v2142 = vsel %vm648, %v2123, 0
        %v2145 = vsel %vm648, %v2128, 0
        %2147 = vmatprep.subr.mxu0 0.0
        %2148 = vmatpush1.msra.mxu0 %v2131
        %2149 = vmatprep.subr.mxu0 0.0
        %2150 = vmatpush1.msra.mxu0 %v2132
        %2151 = vmatprep.subr.mxu0 0.0
        %2152 = vmatpush1.msra.mxu0 %v2133
        %2153 = vmatprep.subr.mxu0 0.0
        %2154 = vmatpush1.msra.mxu0 %v2134
        %2155 = vmatprep.subr.mxu0 0.0
        %2156 = vmatpush1.msra.mxu0 0.0
        %2157 = vmatprep.subr.mxu0 0.0
        %2158 = vmatpush1.msra.mxu0 0.0
        %2159 = vmatprep.subr.mxu0 0.0
        %2160 = vmatpush1.msra.mxu0 0.0
        %2161 = vmatprep.subr.mxu0 0.0
        %2162 = vmatpush1.msra.mxu0 0.0
        %2163 = vmatprep.subr.mxu0 0.0
        %2164 = vmatpush1.msra.mxu0 0.0
        %2165 = vmatprep.subr.mxu0 0.0
        %2166 = vmatpush1.msra.mxu0 0.0
        %2167 = vmatprep.subr.mxu0 0.0
        %2168 = vmatpush1.msra.mxu0 0.0
        %2169 = vmatprep.subr.mxu0 0.0
        %2170 = vmatpush1.msra.mxu0 0.0
        %2171 = vmatprep.subr.mxu0 0.0
        %2172 = vmatpush1.msra.mxu0 0.0
        %2173 = vmatprep.subr.mxu0 0.0
        %2174 = vmatpush1.msra.mxu0 0.0
        %2175 = vmatprep.subr.mxu0 0.0
        %2176 = vmatpush1.msra.mxu0 0.0
        %2177 = vmatprep.subr.mxu0 0.0
        %2178 = vmatpush1.msra.mxu0 0.0
        %2179 = vmatprep.subr.mxu0 0.0
        %2180 = vmatpush1.msra.mxu0 0.0
        %2181 = vmatprep.subr.mxu0 0.0
        %2182 = vmatpush1.msra.mxu0 0.0
        %2183 = vmatprep.subr.mxu0 0.0
        %2184 = vmatpush1.msra.mxu0 0.0
        %2185 = vmatprep.subr.mxu0 0.0
        %2186 = vmatpush1.msra.mxu0 0.0
        %2187 = vmatprep.subr.mxu0 0.0
        %2188 = vmatpush1.msra.mxu0 0.0
        %2189 = vmatprep.subr.mxu0 0.0
        %2190 = vmatpush1.msra.mxu0 0.0
        %2191 = vmatprep.subr.mxu0 0.0
        %2192 = vmatpush1.msra.mxu0 0.0
        %2193 = vmatprep.subr.mxu0 0.0
        %2194 = vmatpush1.msra.mxu0 0.0
        %2195 = vmatprep.subr.mxu0 0.0
        %2196 = vmatpush1.msra.mxu0 0.0
        %2197 = vmatprep.subr.mxu0 0.0
        %2198 = vmatpush1.msra.mxu0 0.0
        %2199 = vmatprep.subr.mxu0 0.0
        %2200 = vmatpush1.msra.mxu0 0.0
        %2201 = vmatprep.subr.mxu0 0.0
        %2202 = vmatpush1.msra.mxu0 0.0
        %2203 = vmatprep.subr.mxu0 0.0
        %2204 = vmatpush1.msra.mxu0 0.0
        %2205 = vmatprep.subr.mxu0 0.0
        %2206 = vmatpush1.msra.mxu0 0.0
        %2207 = vmatprep.subr.mxu0 0.0
        %2208 = vmatpush1.msra.mxu0 0.0
        %2209 = vmatprep.subr.mxu0 0.0
        %2210 = vmatpush1.msra.mxu0 0.0
        %2211 = vmatprep.mubr.f32.mxu0 0.0
        %2212 = vmatmul.mubr.f32.gmra.mrb[0].mxu0 %v2136
        %v2213 = vpop.f32.mrb[0].mxu0
        %v2214 = vadd.f32 0.0, %v2213
        %v2215 = vpop.f32.mrb[0].mxu0
        %2216 = vmatprep.mubr.f32.mxu0 0.0
        %2217 = vmatmul.mubr.f32.gmra.mrb[0].mxu0 %v2139
        %v2218 = vpop.f32.mrb[0].mxu0
        %v2219 = vadd.f32 0.0, %v2218
        %v2220 = vpop.f32.mrb[0].mxu0
        %2221 = vmatprep.mubr.f32.mxu0 0.0
        %2222 = vmatmul.mubr.f32.gmra.mrb[0].mxu0 %v2142
        %v2223 = vpop.f32.mrb[0].mxu0
        %v2224 = vadd.f32 0.0, %v2223
        %v2225 = vpop.f32.mrb[0].mxu0
        %2226 = vmatprep.mubr.f32.mxu0 0.0
        %2227 = vmatmul.mubr.f32.gmra.mrb[0].mxu0 %v2145
        %v2228 = vpop.f32.mrb[0].mxu0
        %v2229 = vadd.f32 0.0, %v2228
        %v2230 = vpop.f32.mrb[0].mxu0
        %2231 = vdwg.mxu0
        %v2232 = vadd.f32 %v1724, %v2214
        %v2233 = vadd.f32 %v1725, %v2219
        %v2234 = vadd.f32 %v1726, %v2224
        %v2235 = vadd.f32 %v1727, %v2229
        %s2236 = scalar_lea.vmem [#allocation7], 48
        %v2237 = vld [vmem:[%s2236] sm:$0xff]
        %v2238 = vld [vmem:[%s2236 + $0x8] sm:$0xff]
        %2239 = vrot.lane.b32.xlu0 %v519, 32
        %v2240 = vpop.permute.xlu0 %2239
        %2241 = vrot.lane.b32.xlu0 %v525, 32
        %v2242 = vpop.permute.xlu0 %2241
        %2243 = vrot.lane.b32.xlu0 %v521, 32
        %v2244 = vpop.permute.xlu0 %2243
        %2245 = vrot.lane.b32.xlu0 %v527, 32
        %v2246 = vpop.permute.xlu0 %2245
        %v2247 = vsel %vm648, %v2240, 0
        %v2249 = vsel %vm648, %v2242, 0
        %v2251 = vsel %vm648, %v2244, 0
        %v2253 = vsel %vm648, %v2246, 0
        %2255 = vmatprep.subr.mxu0 0.0
        %2256 = vmatpush1.xpose.msra.mxu0 %v2251
        %2257 = vmatprep.subr.mxu0 0.0
        %2258 = vmatpush1.xpose.msra.mxu0 %v2253
        %2259 = vmatprep.subr.mxu0 0.0
        %2260 = vmatpush1.xpose.msra.mxu0 0.0
        %2261 = vmatprep.subr.mxu0 0.0
        %2262 = vmatpush1.xpose.msra.mxu0 0.0
        %2263 = vmatprep.subr.mxu0 0.0
        %2264 = vmatpush1.xpose.msra.mxu0 0.0
        %2265 = vmatprep.subr.mxu0 0.0
        %2266 = vmatpush1.xpose.msra.mxu0 0.0
        %2267 = vmatprep.subr.mxu0 0.0
        %2268 = vmatpush1.xpose.msra.mxu0 0.0
        %2269 = vmatprep.subr.mxu0 0.0
        %2270 = vmatpush1.xpose.msra.mxu0 0.0
        %2271 = vmatprep.subr.mxu0 0.0
        %2272 = vmatpush1.xpose.msra.mxu0 0.0
        %2273 = vmatprep.subr.mxu0 0.0
        %2274 = vmatpush1.xpose.msra.mxu0 0.0
        %2275 = vmatprep.subr.mxu0 0.0
        %2276 = vmatpush1.xpose.msra.mxu0 0.0
        %2277 = vmatprep.subr.mxu0 0.0
        %2278 = vmatpush1.xpose.msra.mxu0 0.0
        %2279 = vmatprep.subr.mxu0 0.0
        %2280 = vmatpush1.xpose.msra.mxu0 0.0
        %2281 = vmatprep.subr.mxu0 0.0
        %2282 = vmatpush1.xpose.msra.mxu0 0.0
        %2283 = vmatprep.subr.mxu0 0.0
        %2284 = vmatpush1.xpose.msra.mxu0 0.0
        %2285 = vmatprep.subr.mxu0 0.0
        %2286 = vmatpush1.xpose.msra.mxu0 0.0
        %2287 = vmatprep.subr.mxu0 0.0
        %2288 = vmatpush1.xpose.msra.mxu0 0.0
        %2289 = vmatprep.subr.mxu0 0.0
        %2290 = vmatpush1.xpose.msra.mxu0 0.0
        %2291 = vmatprep.subr.mxu0 0.0
        %2292 = vmatpush1.xpose.msra.mxu0 0.0
        %2293 = vmatprep.subr.mxu0 0.0
        %2294 = vmatpush1.xpose.msra.mxu0 0.0
        %2295 = vmatprep.subr.mxu0 0.0
        %2296 = vmatpush1.xpose.msra.mxu0 0.0
        %2297 = vmatprep.subr.mxu0 0.0
        %2298 = vmatpush1.xpose.msra.mxu0 0.0
        %2299 = vmatprep.subr.mxu0 0.0
        %2300 = vmatpush1.xpose.msra.mxu0 0.0
        %2301 = vmatprep.subr.mxu0 0.0
        %2302 = vmatpush1.xpose.msra.mxu0 0.0
        %2303 = vmatprep.subr.mxu0 0.0
        %2304 = vmatpush1.xpose.msra.mxu0 0.0
        %2305 = vmatprep.subr.mxu0 0.0
        %2306 = vmatpush1.xpose.msra.mxu0 0.0
        %2307 = vmatprep.subr.mxu0 0.0
        %2308 = vmatpush1.xpose.msra.mxu0 0.0
        %2309 = vmatprep.subr.mxu0 0.0
        %2310 = vmatpush1.xpose.msra.mxu0 0.0
        %2311 = vmatprep.subr.mxu0 0.0
        %2312 = vmatpush1.xpose.msra.mxu0 0.0
        %2313 = vmatprep.subr.mxu0 0.0
        %2314 = vmatpush1.xpose.msra.mxu0 0.0
        %2315 = vmatprep.subr.mxu0 0.0
        %2316 = vmatpush1.xpose.msra.mxu0 0.0
        %2317 = vmatprep.subr.mxu0 0.0
        %2318 = vmatpush1.xpose.msra.mxu0 0.0
        %2319 = vmatprep.mubr.f32.mxu0 0.0
        %2320 = vmatmul.mubr.f32.gmra.mrb[0].mxu0 %v2247
        %v2321 = vpop.f32.mrb[0].mxu0
        %v2322 = vadd.f32 %v2237, %v2321
        %v2323 = vpop.f32.mrb[0].mxu0
        %2324 = vmatprep.mubr.f32.mxu0 0.0
        %2325 = vmatmul.mubr.f32.gmra.mrb[0].mxu0 %v2249
        %v2326 = vpop.f32.mrb[0].mxu0
        %v2327 = vadd.f32 %v2238, %v2326
        %v2328 = vpop.f32.mrb[0].mxu0
        %2329 = vdwg.mxu0
        %2330 = vrot.lane.b32.xlu0 %v531, 32
        %v2331 = vpop.permute.xlu0 %2330
        %2332 = vrot.lane.b32.xlu0 %v537, 32
        %v2333 = vpop.permute.xlu0 %2332
        %2334 = vrot.lane.b32.xlu0 %v533, 32
        %v2335 = vpop.permute.xlu0 %2334
        %2336 = vrot.lane.b32.xlu0 %v539, 32
        %v2337 = vpop.permute.xlu0 %2336
        %v2338 = vsel %vm648, %v2331, 0
        %v2340 = vsel %vm648, %v2333, 0
        %v2342 = vsel %vm648, %v2335, 0
        %v2344 = vsel %vm648, %v2337, 0
        %2346 = vmatprep.subr.mxu0 0.0
        %2347 = vmatpush1.xpose.msra.mxu0 %v2342
        %2348 = vmatprep.subr.mxu0 0.0
        %2349 = vmatpush1.xpose.msra.mxu0 %v2344
        %2350 = vmatprep.subr.mxu0 0.0
        %2351 = vmatpush1.xpose.msra.mxu0 0.0
        %2352 = vmatprep.subr.mxu0 0.0
        %2353 = vmatpush1.xpose.msra.mxu0 0.0
        %2354 = vmatprep.subr.mxu0 0.0
        %2355 = vmatpush1.xpose.msra.mxu0 0.0
        %2356 = vmatprep.subr.mxu0 0.0
        %2357 = vmatpush1.xpose.msra.mxu0 0.0
        %2358 = vmatprep.subr.mxu0 0.0
        %2359 = vmatpush1.xpose.msra.mxu0 0.0
        %2360 = vmatprep.subr.mxu0 0.0
        %2361 = vmatpush1.xpose.msra.mxu0 0.0
        %2362 = vmatprep.subr.mxu0 0.0
        %2363 = vmatpush1.xpose.msra.mxu0 0.0
        %2364 = vmatprep.subr.mxu0 0.0
        %2365 = vmatpush1.xpose.msra.mxu0 0.0
        %2366 = vmatprep.subr.mxu0 0.0
        %2367 = vmatpush1.xpose.msra.mxu0 0.0
        %2368 = vmatprep.subr.mxu0 0.0
        %2369 = vmatpush1.xpose.msra.mxu0 0.0
        %2370 = vmatprep.subr.mxu0 0.0
        %2371 = vmatpush1.xpose.msra.mxu0 0.0
        %2372 = vmatprep.subr.mxu0 0.0
        %2373 = vmatpush1.xpose.msra.mxu0 0.0
        %2374 = vmatprep.subr.mxu0 0.0
        %2375 = vmatpush1.xpose.msra.mxu0 0.0
        %2376 = vmatprep.subr.mxu0 0.0
        %2377 = vmatpush1.xpose.msra.mxu0 0.0
        %2378 = vmatprep.subr.mxu0 0.0
        %2379 = vmatpush1.xpose.msra.mxu0 0.0
        %2380 = vmatprep.subr.mxu0 0.0
        %2381 = vmatpush1.xpose.msra.mxu0 0.0
        %2382 = vmatprep.subr.mxu0 0.0
        %2383 = vmatpush1.xpose.msra.mxu0 0.0
        %2384 = vmatprep.subr.mxu0 0.0
        %2385 = vmatpush1.xpose.msra.mxu0 0.0
        %2386 = vmatprep.subr.mxu0 0.0
        %2387 = vmatpush1.xpose.msra.mxu0 0.0
        %2388 = vmatprep.subr.mxu0 0.0
        %2389 = vmatpush1.xpose.msra.mxu0 0.0
        %2390 = vmatprep.subr.mxu0 0.0
        %2391 = vmatpush1.xpose.msra.mxu0 0.0
        %2392 = vmatprep.subr.mxu0 0.0
        %2393 = vmatpush1.xpose.msra.mxu0 0.0
        %2394 = vmatprep.subr.mxu0 0.0
        %2395 = vmatpush1.xpose.msra.mxu0 0.0
        %2396 = vmatprep.subr.mxu0 0.0
        %2397 = vmatpush1.xpose.msra.mxu0 0.0
        %2398 = vmatprep.subr.mxu0 0.0
        %2399 = vmatpush1.xpose.msra.mxu0 0.0
        %2400 = vmatprep.subr.mxu0 0.0
        %2401 = vmatpush1.xpose.msra.mxu0 0.0
        %2402 = vmatprep.subr.mxu0 0.0
        %2403 = vmatpush1.xpose.msra.mxu0 0.0
        %2404 = vmatprep.subr.mxu0 0.0
        %2405 = vmatpush1.xpose.msra.mxu0 0.0
        %2406 = vmatprep.subr.mxu0 0.0
        %2407 = vmatpush1.xpose.msra.mxu0 0.0
        %2408 = vmatprep.subr.mxu0 0.0
        %2409 = vmatpush1.xpose.msra.mxu0 0.0
        %2410 = vmatprep.mubr.f32.mxu0 0.0
        %2411 = vmatmul.mubr.f32.gmra.mrb[0].mxu0 %v2338
        %v2412 = vpop.f32.mrb[0].mxu0
        %v2413 = vadd.f32 %v2237, %v2412
        %v2414 = vpop.f32.mrb[0].mxu0
        %2415 = vmatprep.mubr.f32.mxu0 0.0
        %2416 = vmatmul.mubr.f32.gmra.mrb[0].mxu0 %v2340
        %v2417 = vpop.f32.mrb[0].mxu0
        %v2418 = vadd.f32 %v2238, %v2417
        %v2419 = vpop.f32.mrb[0].mxu0
        %2420 = vdwg.mxu0
        %v2421 = vsel %vm823, %v2322, -inf
        %2422 = vmax.xlane.f32.xlu0 %v2421
        %v2423 = vpop.xlane.xlu0 %2422
        %v2424 = vsel %vm823, %v2327, -inf
        %2425 = vmax.xlane.f32.xlu0 %v2424
        %v2426 = vpop.xlane.xlu0 %2425
        %v2427 = vsel %vm823, %v2413, -inf
        %2428 = vmax.xlane.f32.xlu0 %v2427
        %v2429 = vpop.xlane.xlu0 %2428
        %v2430 = vsel %vm823, %v2418, -inf
        %2431 = vmax.xlane.f32.xlu0 %v2430
        %v2432 = vpop.xlane.xlu0 %2431
        %v2433 = vsub.f32 %v2322, %v2423
        %v2434 = vsub.f32 %v2327, %v2426
        %v2435 = vsub.f32 %v2413, %v2429
        %v2436 = vsub.f32 %v2418, %v2432
        %v2437 = vmul.f32 %v2433, 1.442695
        %v2438 = vpow.pop %v2437
        %v2439 = vmul.f32 %v2434, 1.442695
        %v2440 = vpow.pop %v2439
        %v2441 = vmul.f32 %v2435, 1.442695
        %v2442 = vpow.pop %v2441
        %v2443 = vmul.f32 %v2436, 1.442695
        %v2444 = vpow.pop %v2443
        %v2445 = vsel %vm823, %v2438, 0.0
        %2446 = vadd.xlane.f32.xlu0 %v2445
        %v2447 = vpop.xlane.xlu0 %2446
        %v2448 = vsel %vm823, %v2440, 0.0
        %2449 = vadd.xlane.f32.xlu0 %v2448
        %v2450 = vpop.xlane.xlu0 %2449
        %v2451 = vsel %vm823, %v2442, 0.0
        %2452 = vadd.xlane.f32.xlu0 %v2451
        %v2453 = vpop.xlane.xlu0 %2452
        %v2454 = vsel %vm823, %v2444, 0.0
        %2455 = vadd.xlane.f32.xlu0 %v2454
        %v2456 = vpop.xlane.xlu0 %2455
        %v2457 = vrcp.pop %v2447
        %v2458 = vrcp.pop %v2450
        %v2459 = vrcp.pop %v2453
        %v2460 = vrcp.pop %v2456
        %v2461 = vmul.f32 %v2438, %v2457
        %v2462 = vmul.f32 %v2440, %v2458
        %v2463 = vmul.f32 %v2442, %v2459
        %v2464 = vmul.f32 %v2444, %v2460
        %2465 = vrot.lane.b32.xlu0 %v608, 32
        %v2466 = vpop.permute.xlu0 %2465
        %2467 = vrot.lane.b32.xlu0 %v613, 32
        %v2468 = vpop.permute.xlu0 %2467
        %v2472 = vsel %vm823, %v2461, 0
        %v2475 = vsel %vm823, %v2462, 0
        %2477 = vmatprep.subr.mxu0 0.0
        %2478 = vmatpush1.msra.mxu0 %v2466
        %2479 = vmatprep.subr.mxu0 0.0
        %2480 = vmatpush1.msra.mxu0 %v2468
        %2481 = vmatprep.subr.mxu0 0.0
        %2482 = vmatpush1.msra.mxu0 0.0
        %2483 = vmatprep.subr.mxu0 0.0
        %2484 = vmatpush1.msra.mxu0 0.0
        %2485 = vmatprep.subr.mxu0 0.0
        %2486 = vmatpush1.msra.mxu0 0.0
        %2487 = vmatprep.subr.mxu0 0.0
        %2488 = vmatpush1.msra.mxu0 0.0
        %2489 = vmatprep.subr.mxu0 0.0
        %2490 = vmatpush1.msra.mxu0 0.0
        %2491 = vmatprep.subr.mxu0 0.0
        %2492 = vmatpush1.msra.mxu0 0.0
        %2493 = vmatprep.subr.mxu0 0.0
        %2494 = vmatpush1.msra.mxu0 0.0
        %2495 = vmatprep.subr.mxu0 0.0
        %2496 = vmatpush1.msra.mxu0 0.0
        %2497 = vmatprep.subr.mxu0 0.0
        %2498 = vmatpush1.msra.mxu0 0.0
        %2499 = vmatprep.subr.mxu0 0.0
        %2500 = vmatpush1.msra.mxu0 0.0
        %2501 = vmatprep.subr.mxu0 0.0
        %2502 = vmatpush1.msra.mxu0 0.0
        %2503 = vmatprep.subr.mxu0 0.0
        %2504 = vmatpush1.msra.mxu0 0.0
        %2505 = vmatprep.subr.mxu0 0.0
        %2506 = vmatpush1.msra.mxu0 0.0
        %2507 = vmatprep.subr.mxu0 0.0
        %2508 = vmatpush1.msra.mxu0 0.0
        %2509 = vmatprep.subr.mxu0 0.0
        %2510 = vmatpush1.msra.mxu0 0.0
        %2511 = vmatprep.subr.mxu0 0.0
        %2512 = vmatpush1.msra.mxu0 0.0
        %2513 = vmatprep.subr.mxu0 0.0
        %2514 = vmatpush1.msra.mxu0 0.0
        %2515 = vmatprep.subr.mxu0 0.0
        %2516 = vmatpush1.msra.mxu0 0.0
        %2517 = vmatprep.subr.mxu0 0.0
        %2518 = vmatpush1.msra.mxu0 0.0
        %2519 = vmatprep.subr.mxu0 0.0
        %2520 = vmatpush1.msra.mxu0 0.0
        %2521 = vmatprep.subr.mxu0 0.0
        %2522 = vmatpush1.msra.mxu0 0.0
        %2523 = vmatprep.subr.mxu0 0.0
        %2524 = vmatpush1.msra.mxu0 0.0
        %2525 = vmatprep.subr.mxu0 0.0
        %2526 = vmatpush1.msra.mxu0 0.0
        %2527 = vmatprep.subr.mxu0 0.0
        %2528 = vmatpush1.msra.mxu0 0.0
        %2529 = vmatprep.subr.mxu0 0.0
        %2530 = vmatpush1.msra.mxu0 0.0
        %2531 = vmatprep.subr.mxu0 0.0
        %2532 = vmatpush1.msra.mxu0 0.0
        %2533 = vmatprep.subr.mxu0 0.0
        %2534 = vmatpush1.msra.mxu0 0.0
        %2535 = vmatprep.subr.mxu0 0.0
        %2536 = vmatpush1.msra.mxu0 0.0
        %2537 = vmatprep.subr.mxu0 0.0
        %2538 = vmatpush1.msra.mxu0 0.0
        %2539 = vmatprep.subr.mxu0 0.0
        %2540 = vmatpush1.msra.mxu0 0.0
        %2541 = vmatprep.mubr.f32.mxu0 0.0
        %2542 = vmatmul.mubr.f32.gmra.mrb[0].mxu0 %v2472
        %v2543 = vpop.f32.mrb[0].mxu0
        %v2544 = vadd.f32 0.0, %v2543
        %v2545 = vpop.f32.mrb[0].mxu0
        %2546 = vmatprep.mubr.f32.mxu0 0.0
        %2547 = vmatmul.mubr.f32.gmra.mrb[0].mxu0 %v2475
        %v2548 = vpop.f32.mrb[0].mxu0
        %v2549 = vadd.f32 0.0, %v2548
        %v2550 = vpop.f32.mrb[0].mxu0
        %2551 = vdwg.mxu0
        %2552 = vrot.lane.b32.xlu0 %v618, 32
        %v2553 = vpop.permute.xlu0 %2552
        %2554 = vrot.lane.b32.xlu0 %v623, 32
        %v2555 = vpop.permute.xlu0 %2554
        %v2559 = vsel %vm823, %v2463, 0
        %v2562 = vsel %vm823, %v2464, 0
        %2564 = vmatprep.subr.mxu0 0.0
        %2565 = vmatpush1.msra.mxu0 %v2553
        %2566 = vmatprep.subr.mxu0 0.0
        %2567 = vmatpush1.msra.mxu0 %v2555
        %2568 = vmatprep.subr.mxu0 0.0
        %2569 = vmatpush1.msra.mxu0 0.0
        %2570 = vmatprep.subr.mxu0 0.0
        %2571 = vmatpush1.msra.mxu0 0.0
        %2572 = vmatprep.subr.mxu0 0.0
        %2573 = vmatpush1.msra.mxu0 0.0
        %2574 = vmatprep.subr.mxu0 0.0
        %2575 = vmatpush1.msra.mxu0 0.0
        %2576 = vmatprep.subr.mxu0 0.0
        %2577 = vmatpush1.msra.mxu0 0.0
        %2578 = vmatprep.subr.mxu0 0.0
        %2579 = vmatpush1.msra.mxu0 0.0
        %2580 = vmatprep.subr.mxu0 0.0
        %2581 = vmatpush1.msra.mxu0 0.0
        %2582 = vmatprep.subr.mxu0 0.0
        %2583 = vmatpush1.msra.mxu0 0.0
        %2584 = vmatprep.subr.mxu0 0.0
        %2585 = vmatpush1.msra.mxu0 0.0
        %2586 = vmatprep.subr.mxu0 0.0
        %2587 = vmatpush1.msra.mxu0 0.0
        %2588 = vmatprep.subr.mxu0 0.0
        %2589 = vmatpush1.msra.mxu0 0.0
        %2590 = vmatprep.subr.mxu0 0.0
        %2591 = vmatpush1.msra.mxu0 0.0
        %2592 = vmatprep.subr.mxu0 0.0
        %2593 = vmatpush1.msra.mxu0 0.0
        %2594 = vmatprep.subr.mxu0 0.0
        %2595 = vmatpush1.msra.mxu0 0.0
        %2596 = vmatprep.subr.mxu0 0.0
        %2597 = vmatpush1.msra.mxu0 0.0
        %2598 = vmatprep.subr.mxu0 0.0
        %2599 = vmatpush1.msra.mxu0 0.0
        %2600 = vmatprep.subr.mxu0 0.0
        %2601 = vmatpush1.msra.mxu0 0.0
        %2602 = vmatprep.subr.mxu0 0.0
        %2603 = vmatpush1.msra.mxu0 0.0
        %2604 = vmatprep.subr.mxu0 0.0
        %2605 = vmatpush1.msra.mxu0 0.0
        %2606 = vmatprep.subr.mxu0 0.0
        %2607 = vmatpush1.msra.mxu0 0.0
        %2608 = vmatprep.subr.mxu0 0.0
        %2609 = vmatpush1.msra.mxu0 0.0
        %2610 = vmatprep.subr.mxu0 0.0
        %2611 = vmatpush1.msra.mxu0 0.0
        %2612 = vmatprep.subr.mxu0 0.0
        %2613 = vmatpush1.msra.mxu0 0.0
        %2614 = vmatprep.subr.mxu0 0.0
        %2615 = vmatpush1.msra.mxu0 0.0
        %2616 = vmatprep.subr.mxu0 0.0
        %2617 = vmatpush1.msra.mxu0 0.0
        %2618 = vmatprep.subr.mxu0 0.0
        %2619 = vmatpush1.msra.mxu0 0.0
        %2620 = vmatprep.subr.mxu0 0.0
        %2621 = vmatpush1.msra.mxu0 0.0
        %2622 = vmatprep.subr.mxu0 0.0
        %2623 = vmatpush1.msra.mxu0 0.0
        %2624 = vmatprep.subr.mxu0 0.0
        %2625 = vmatpush1.msra.mxu0 0.0
        %2626 = vmatprep.subr.mxu0 0.0
        %2627 = vmatpush1.msra.mxu0 0.0
        %2628 = vmatprep.mubr.f32.mxu0 0.0
        %2629 = vmatmul.mubr.f32.gmra.mrb[0].mxu0 %v2559
        %v2630 = vpop.f32.mrb[0].mxu0
        %v2631 = vadd.f32 0.0, %v2630
        %v2632 = vpop.f32.mrb[0].mxu0
        %2633 = vmatprep.mubr.f32.mxu0 0.0
        %2634 = vmatmul.mubr.f32.gmra.mrb[0].mxu0 %v2562
        %v2635 = vpop.f32.mrb[0].mxu0
        %v2636 = vadd.f32 0.0, %v2635
        %v2637 = vpop.f32.mrb[0].mxu0
        %2638 = vdwg.mxu0
        %v2639 = vld [vmem:[#allocation8 + $0x60] sm:$0xff]
        %v2640 = vld [vmem:[#allocation8 + $0x68] sm:$0xff]
        %v2641 = vld [vmem:[#allocation8 + $0x70] sm:$0xff]
        %v2642 = vld [vmem:[#allocation8 + $0x78] sm:$0xff]
        %v2644 = vsel %vm648, %v2544, 0
        %v2647 = vsel %vm648, %v2549, 0
        %v2650 = vsel %vm648, %v2631, 0
        %v2653 = vsel %vm648, %v2636, 0
        %2655 = vmatprep.subr.mxu0 0.0
        %2656 = vmatpush1.msra.mxu0 %v2639
        %2657 = vmatprep.subr.mxu0 0.0
        %2658 = vmatpush1.msra.mxu0 %v2640
        %2659 = vmatprep.subr.mxu0 0.0
        %2660 = vmatpush1.msra.mxu0 %v2641
        %2661 = vmatprep.subr.mxu0 0.0
        %2662 = vmatpush1.msra.mxu0 %v2642
        %2663 = vmatprep.subr.mxu0 0.0
        %2664 = vmatpush1.msra.mxu0 0.0
        %2665 = vmatprep.subr.mxu0 0.0
        %2666 = vmatpush1.msra.mxu0 0.0
        %2667 = vmatprep.subr.mxu0 0.0
        %2668 = vmatpush1.msra.mxu0 0.0
        %2669 = vmatprep.subr.mxu0 0.0
        %2670 = vmatpush1.msra.mxu0 0.0
        %2671 = vmatprep.subr.mxu0 0.0
        %2672 = vmatpush1.msra.mxu0 0.0
        %2673 = vmatprep.subr.mxu0 0.0
        %2674 = vmatpush1.msra.mxu0 0.0
        %2675 = vmatprep.subr.mxu0 0.0
        %2676 = vmatpush1.msra.mxu0 0.0
        %2677 = vmatprep.subr.mxu0 0.0
        %2678 = vmatpush1.msra.mxu0 0.0
        %2679 = vmatprep.subr.mxu0 0.0
        %2680 = vmatpush1.msra.mxu0 0.0
        %2681 = vmatprep.subr.mxu0 0.0
        %2682 = vmatpush1.msra.mxu0 0.0
        %2683 = vmatprep.subr.mxu0 0.0
        %2684 = vmatpush1.msra.mxu0 0.0
        %2685 = vmatprep.subr.mxu0 0.0
        %2686 = vmatpush1.msra.mxu0 0.0
        %2687 = vmatprep.subr.mxu0 0.0
        %2688 = vmatpush1.msra.mxu0 0.0
        %2689 = vmatprep.subr.mxu0 0.0
        %2690 = vmatpush1.msra.mxu0 0.0
        %2691 = vmatprep.subr.mxu0 0.0
        %2692 = vmatpush1.msra.mxu0 0.0
        %2693 = vmatprep.subr.mxu0 0.0
        %2694 = vmatpush1.msra.mxu0 0.0
        %2695 = vmatprep.subr.mxu0 0.0
        %2696 = vmatpush1.msra.mxu0 0.0
        %2697 = vmatprep.subr.mxu0 0.0
        %2698 = vmatpush1.msra.mxu0 0.0
        %2699 = vmatprep.subr.mxu0 0.0
        %2700 = vmatpush1.msra.mxu0 0.0
        %2701 = vmatprep.subr.mxu0 0.0
        %2702 = vmatpush1.msra.mxu0 0.0
        %2703 = vmatprep.subr.mxu0 0.0
        %2704 = vmatpush1.msra.mxu0 0.0
        %2705 = vmatprep.subr.mxu0 0.0
        %2706 = vmatpush1.msra.mxu0 0.0
        %2707 = vmatprep.subr.mxu0 0.0
        %2708 = vmatpush1.msra.mxu0 0.0
        %2709 = vmatprep.subr.mxu0 0.0
        %2710 = vmatpush1.msra.mxu0 0.0
        %2711 = vmatprep.subr.mxu0 0.0
        %2712 = vmatpush1.msra.mxu0 0.0
        %2713 = vmatprep.subr.mxu0 0.0
        %2714 = vmatpush1.msra.mxu0 0.0
        %2715 = vmatprep.subr.mxu0 0.0
        %2716 = vmatpush1.msra.mxu0 0.0
        %2717 = vmatprep.subr.mxu0 0.0
        %2718 = vmatpush1.msra.mxu0 0.0
        %2719 = vmatprep.mubr.f32.mxu0 0.0
        %2720 = vmatmul.mubr.f32.gmra.mrb[0].mxu0 %v2644
        %v2721 = vpop.f32.mrb[0].mxu0
        %v2722 = vadd.f32 0.0, %v2721
        %v2723 = vpop.f32.mrb[0].mxu0
        %2724 = vmatprep.mubr.f32.mxu0 0.0
        %2725 = vmatmul.mubr.f32.gmra.mrb[0].mxu0 %v2647
        %v2726 = vpop.f32.mrb[0].mxu0
        %v2727 = vadd.f32 0.0, %v2726
        %v2728 = vpop.f32.mrb[0].mxu0
        %2729 = vmatprep.mubr.f32.mxu0 0.0
        %2730 = vmatmul.mubr.f32.gmra.mrb[0].mxu0 %v2650
        %v2731 = vpop.f32.mrb[0].mxu0
        %v2732 = vadd.f32 0.0, %v2731
        %v2733 = vpop.f32.mrb[0].mxu0
        %2734 = vmatprep.mubr.f32.mxu0 0.0
        %2735 = vmatmul.mubr.f32.gmra.mrb[0].mxu0 %v2653
        %v2736 = vpop.f32.mrb[0].mxu0
        %v2737 = vadd.f32 0.0, %v2736
        %v2738 = vpop.f32.mrb[0].mxu0
        %2739 = vdwg.mxu0
        %v2740 = vadd.f32 %v2232, %v2722
        %v2741 = vadd.f32 %v2233, %v2727
        %v2742 = vadd.f32 %v2234, %v2732
        %v2743 = vadd.f32 %v2235, %v2737
        %v2744 = vld [vmem:[%s5] sm:$0x1]
        %v2746 = vlaneseq
        %v2747 = vshrl.u32 %v2746, 7
        %v2748 = vsub.s32 0, %v2747
        %v2749 = vrot.slane %v2744, %v2748
        %v2751 = vadd.f32 %v2740, %v2749
        %v2752 = vadd.f32 %v2741, %v2749
        %v2753 = vadd.f32 %v2742, %v2749
        %v2754 = vadd.f32 %v2743, %v2749
        %2755 = vst [vmem:[%s379] sm:$0xff] %v2751
        %2756 = vst [vmem:[%s379 + $0x8] sm:$0xff] %v2752
        %2757 = vst [vmem:[%s379 + $0x10] sm:$0xff] %v2753
        %2758 = vst [vmem:[%s379 + $0x18] sm:$0xff] %v2754
        %s2759 = sand.u32 %s191, 1
        %s2760 = scalar_lea.sflag [#allocation4], %s2759
        %s2761 = sand.u32 %s191, 1
        %s2762 = smul.addr %s2761, 32
        %s2763 = scalar_lea.vmem [#allocation11], %s2762
        // Predicated region
        $region69: #{tpu_custom_call.1} parent=47 // pred_check
          %p2764 = pneg %p201
        $region70: #{tpu_custom_call.1} parent=47 // pred_check_branch
          %2766 = sbr.rel (%p2764) target = $region72
        $region71: #{tpu_custom_call.1} parent=47 // pred_region
          %s2767 = smul.u32 2, %s26
          %s2769 = ssub.s32 512, 512
          %2770 = vsyncadd %s2760, %s2769
          %s2771 = smul.addr %s2767, 2
          %s2772 = smul.addr %s2771, 128
          %s2773 = scalar_lea.hbm %s7, %s2772
          %s2774 = sshll.u32 %s2763, 4
          %s2775 = int_to_ptr.vmem [resolvable:$true] %s2774
          %2780 = dma.vmem_to_hbm [thread:$0]  %s2775, 512, %s2773, %s2760, 128, 128, 8
        $region72: #{tpu_custom_call.1} parent=47 // pred_fallthru
          _
      $region48: #{tpu_custom_call.1} parent=5 // pred_fallthru
        _
      %p2781 = scmp.le.s32.totalorder 2, %s21
      // Predicated region
      $region73: #{tpu_custom_call.1} parent=5 // pred_check
        %p2782 = pneg %p2781
      $region74: #{tpu_custom_call.1} parent=5 // pred_check_branch
        %2784 = sbr.rel (%p2782) target = $region76
      $region75: #{tpu_custom_call.1} parent=5 // pred_region
        %s2785 = ssub.s32 %s21, 2
        // Predicated region
        $region77: #{tpu_custom_call.1} parent=75 // pred_check
          %p2786 = pneg %p207
        $region78: #{tpu_custom_call.1} parent=75 // pred_check_branch
          %2788 = sbr.rel (%p2786) target = $region80
        $region79: #{tpu_custom_call.1} parent=75 // pred_region
          %s2789 = sand.u32 %s192, 1
          %s2790 = scalar_lea.sflag [#allocation4], %s2789
          %s2791 = sand.u32 %s192, 1
          %s2792 = smul.addr %s2791, 32
          %s2793 = scalar_lea.vmem [#allocation11], %s2792
          %2794 = dma.done %s2790, 512
        $region80: #{tpu_custom_call.1} parent=75 // pred_fallthru
          _
      $region76: #{tpu_custom_call.1} parent=5 // pred_fallthru
        _
    $region6: #{tpu_custom_call.1} parent=1 // loop_footer
      %s25 = sadd.s32 1, %s21
    $region7: #{tpu_custom_call.1} parent=1 // loop_footer_branch
      %20 = sbr.rel target = $region3
    $region8: #{tpu_custom_call.1} parent=1 // loop_exit
      _
    %2795 = vsyncpa [#allocation3], 1
    %s2796 = scalar_lea.sflag [#allocation3], 1
    %2797 = vsyncpa %s2796, 1
    %2798 = vsyncpa [#allocation6], 1
    %2799 = vsyncpa [#allocation9], 1
    %2800 = vsyncpa [#allocation4], 1
    %s2801 = scalar_lea.sflag [#allocation4], 1
    %2802 = vsyncpa %s2801, 1

</llo_original>
